<compile_context>
chip_gen: v7x
topology: tpu7x:2x2x1
jax: 0.10.0
libtpu: 0.0.40
codegen_flags: <defaults>
</compile_context>

<pallas_src>
import jax
import jax.numpy as jnp
from jax import lax
from jax.experimental import pallas as pl
from jax.experimental.pallas import tpu as pltpu


def bottleneck_kernel(x_top_ref, x_mid_ref, x_bot_ref,
                      w1_ref, b1_ref, w2_ref, b2_ref, w3_ref, b3_ref,
                      o_ref):
    # x_mid_ref: (1, TH, W, Cin)   rows [i*TH, i*TH+TH)
    # x_top_ref/x_bot_ref: (1, 1, W, Cin)  clamped halo rows (masked at border)
    TH = x_mid_ref.shape[1]
    W = x_mid_ref.shape[2]
    Cin = x_mid_ref.shape[3]
    width = w1_ref.shape[1]
    Cout = w3_ref.shape[1]

    i = pl.program_id(1)
    nt = pl.num_programs(1)

    # Extended slab: TH central rows + one clamped halo row on each side.
    x_ext = jnp.concatenate(
        [x_top_ref[0], x_mid_ref[0], x_bot_ref[0]], axis=0)       # (TH+2, W, Cin)
    x_ext = x_ext.reshape((TH + 2) * W, Cin).astype(jnp.bfloat16)

    # ---- conv1 (1x1, BN scale folded into w1) + shift + ReLU ----------------
    y1 = jnp.dot(x_ext, w1_ref[...], preferred_element_type=jnp.float32)
    y1 = jnp.maximum(y1 + b1_ref[...], 0.0).reshape(TH + 2, W, width)

    # conv2's zero padding: halo rows outside the image must be zero *after*
    # conv1+BN+ReLU.  Scale rows 0 / TH+1 with scalar predicates (folded into
    # the bf16 cast) instead of the old full-slab iota/compare/select mask.
    top_keep = jnp.where(i > 0, 1.0, 0.0)
    bot_keep = jnp.where(i < nt - 1, 1.0, 0.0)
    row = lax.broadcasted_iota(jnp.int32, (TH + 2, 1, 1), 0)
    row_scale = jnp.where(row == 0, top_keep,
                          jnp.where(row == TH + 1, bot_keep, 1.0))
    y1b = (y1 * row_scale).astype(jnp.bfloat16)                   # (TH+2, W, width)

    # ---- conv2 (3x3, pad=1): single im2col matmul, K = 9*width --------------
    # dx taps via column-shifted copies; dy taps via row-window slices of the
    # extended slab, so the matmul covers only the TH output rows (no halo
    # flops) and needs no per-tap partial-sum adds afterwards.
    zcol = jnp.zeros((TH + 2, 1, width), jnp.bfloat16)
    left = jnp.concatenate([zcol, y1b[:, :W - 1, :]], axis=1)      # y1[h, w-1]
    right = jnp.concatenate([y1b[:, 1:, :], zcol], axis=1)         # y1[h, w+1]
    zx = jnp.concatenate([left, y1b, right], axis=-1)              # (TH+2, W, 3*width)
    # TODO(synk): for width < 128 these sub-lane-tile concats materialize
    # relayout copies; pltpu.roll(axis=1) + an edge-column zero is the XLU-slot
    # alternative, and for width >= 128 the concats become tile-aligned.
    z9 = jnp.concatenate([zx[:TH], zx[1:TH + 1], zx[2:]], axis=-1)  # (TH, W, 9*width)
    y2 = jnp.dot(z9.reshape(TH * W, 9 * width), w2_ref[...],
                 preferred_element_type=jnp.float32)
    y2 = jnp.maximum(y2 + b2_ref[...], 0.0)                        # (TH*W, width)

    # ---- conv3 (1x1, BN scale folded) + shift, residual add, ReLU -----------
    y3 = jnp.dot(y2.astype(jnp.bfloat16), w3_ref[...],
                 preferred_element_type=jnp.float32) + b3_ref[...]
    # Residual read/cast deferred to here: no TH*W*Cin f32 copy lives across
    # the three convs (smaller VMEM/vreg pressure -> bigger TH fits on v7x).
    identity = x_mid_ref[0].reshape(TH * W, Cin).astype(jnp.float32)
    out = jnp.maximum(y3 + identity, 0.0)
    o_ref[...] = out.reshape(1, TH, W, Cout).astype(o_ref.dtype)


def _vmem_bytes_estimate(TH, W, Cin, width, Cout, act_bytes):
    """Rough per-grid-step VMEM footprint: double-buffered I/O blocks,
    (conservatively double-buffered) weights, and live kernel intermediates."""
    ext = TH + 2
    io = 2 * act_bytes * (TH * W * Cin + 2 * W * Cin + TH * W * Cout)
    weights = (2 * 2 * (Cin * width + 9 * width * width + width * Cout)
               + 4 * (2 * width + Cout))
    inter = (2 * ext * W * Cin                 # x_ext (bf16)
             + 4 * ext * W * width             # y1 (f32)
             + 2 * ext * W * width * 3         # y1b + left/right (bf16)
             + 2 * ext * W * 3 * width         # zx (bf16)
             + 2 * TH * W * 9 * width          # z9 (bf16)
             + 4 * TH * W * width              # y2 (f32)
             + 4 * TH * W * Cout * 2           # y3 / out (f32)
             + 4 * TH * W * Cin)               # identity (f32)
    return io + weights + inter


def _pick_tile_h(N, H, W, Cin, width, Cout, act_bytes, vmem_cap_bytes):
    """Largest divisor of H whose footprint fits the budget; when N == 1 keep
    at least two grid steps so both v7x TensorCores get work."""
    budget = int(0.65 * vmem_cap_bytes)
    divisors = [d for d in range(H, 0, -1) if H % d == 0]
    for TH in divisors:
        if N == 1 and TH == H and H > 1:
            continue
        if _vmem_bytes_estimate(TH, W, Cin, width, Cout, act_bytes) <= budget:
            return TH
    return divisors[-1]


def bottleneck_pallas_nhwc(x_nhwc, w1, s1, b1, w2, s2, b2, w3, s3, b3, *,
                           tile_h=None, act_dtype=jnp.bfloat16,
                           vmem_cap_bytes=64 * 1024 * 1024):
    """NHWC-native Bottleneck forward. x_nhwc: (N, H, W, Cin) -> (N, H, W, Cout).

    Activations travel HBM<->VMEM in `act_dtype` (bf16 default: the block is
    HBM-bound at small widths, so halving activation bytes is ~2x there); all
    matmuls run bf16 x bf16 -> f32 on the MXU; bias/residual/ReLU stay f32.
    """
    N, H, W, Cin = x_nhwc.shape
    width = w1.shape[-1]
    Cout = w3.shape[-1]
    assert Cin == Cout, "identity residual requires Cin == Cout (downsample=None)"
    # TODO(synk): stride>1 / groups>1 / dilation>1 / downsample branch are not
    # implemented (module defaults: stride=1, groups=1, dilation=1, downsample=None).
    # TODO(synk): for small-spatial stages (14x14 / 7x7) fold several batch
    # images into one block so the matmul M dimension stays >= ~128-256.

    act_bytes = jnp.dtype(act_dtype).itemsize
    if tile_h is None:
        TH = _pick_tile_h(N, H, W, Cin, width, Cout, act_bytes, vmem_cap_bytes)
    else:
        TH = tile_h
        assert H % TH == 0, "tile_h must divide H"
        # TODO(synk): ragged H needs a masked last tile before this is general.
    nt = H // TH

    x_act = x_nhwc.astype(act_dtype)

    # Fold eval-mode BN scales into the conv weights (f32 on host), cast bf16
    # for the MXU; per-channel shifts stay f32 and are applied in-kernel.
    # TODO(synk): on v7x, fp8 weights double MXU rate for the compute-bound
    # deep stages (width >= 256).
    s1 = s1.reshape(-1).astype(jnp.float32)
    s2 = s2.reshape(-1).astype(jnp.float32)
    s3 = s3.reshape(-1).astype(jnp.float32)
    w1f = (w1.reshape(Cin, width) * s1[None, :]).astype(jnp.bfloat16)
    # conv2 weights packed for the single im2col matmul: rows ordered (ky, kx, ci).
    w2f = (w2.reshape(3, 3, width, width) * s2[None, None, None, :]
           ).reshape(9 * width, width).astype(jnp.bfloat16)
    w3f = (w3.reshape(width, Cout) * s3[None, :]).astype(jnp.bfloat16)
    b1f = b1.reshape(1, width).astype(jnp.float32)
    b2f = b2.reshape(1, width).astype(jnp.float32)
    b3f = b3.reshape(1, Cout).astype(jnp.float32)

    vmem_limit = int(min(vmem_cap_bytes,
                         max(32 * 1024 * 1024,
                             2 * _vmem_bytes_estimate(TH, W, Cin, width, Cout,
                                                      act_bytes))))

    def run(single_buffer_weights):
        # Grid-invariant weights/biases: index_map never changes, so with
        # pl.Buffered(1) only one copy lives in VMEM (matters on v7x's 64 MiB
        # at production widths); default double buffering is the fallback.
        wkw = ({"pipeline_mode": pl.Buffered(1)}
               if single_buffer_weights else {})
        const = lambda *shape: pl.BlockSpec(
            shape, lambda n, i: (0,) * len(shape), **wkw)
        return pl.pallas_call(
            bottleneck_kernel,
            out_shape=jax.ShapeDtypeStruct((N, H, W, Cout), act_dtype),
            grid_spec=pltpu.PrefetchScalarGridSpec(
                num_scalar_prefetch=0,
                grid=(N, nt),
                in_specs=[
                    # 1-row top halo (clamped at the border; masked in-kernel)
                    pl.BlockSpec((1, 1, W, Cin),
                                 lambda n, i: (n, jnp.maximum(i * TH - 1, 0), 0, 0)),
                    # main TH-row slab
                    pl.BlockSpec((1, TH, W, Cin), lambda n, i: (n, i, 0, 0)),
                    # 1-row bottom halo (clamped; masked in-kernel)
                    pl.BlockSpec((1, 1, W, Cin),
                                 lambda n, i: (n, jnp.minimum(i * TH + TH, H - 1), 0, 0)),
                    # grid-invariant weights / biases
                    const(Cin, width), const(1, width),
                    const(9 * width, width), const(1, width),
                    const(width, Cout), const(1, Cout),
                ],
                out_specs=pl.BlockSpec((1, TH, W, Cout), lambda n, i: (n, i, 0, 0)),
            ),
            compiler_params=pltpu.CompilerParams(
                dimension_semantics=("parallel", "parallel"),
                vmem_limit_bytes=vmem_limit),
        )(x_act, x_act, x_act, w1f, b1f, w2f, b2f, w3f, b3f)

    try:
        return run(True)
    except Exception:  # pl.Buffered(1) unsupported on this jax/libtpu version
        return run(False)


def bottleneck_pallas(x_nchw, w1, s1, b1, w2, s2, b2, w3, s3, b3, *, tile_h=None):
    """NCHW adapter (PyTorch parity). For a full network, keep activations bf16
    NHWC end-to-end and call bottleneck_pallas_nhwc directly (one layout
    conversion per model instead of two HBM round trips per block)."""
    x_nhwc = jnp.transpose(x_nchw, (0, 2, 3, 1))                  # NCHW -> NHWC
    out = bottleneck_pallas_nhwc(x_nhwc, w1, s1, b1, w2, s2, b2, w3, s3, b3,
                                 tile_h=tile_h)
    return jnp.transpose(out, (0, 3, 1, 2))                       # NHWC -> NCHW


# ------------------------- pure-JAX f32 reference (NCHW) ---------------------
def bottleneck_ref(x, w1, s1, b1, w2, s2, b2, w3, s3, b3):
    def conv(t, w_hwio, pad):
        return lax.conv_general_dilated(
            t, w_hwio, window_strides=(1, 1), padding=pad,
            dimension_numbers=("NCHW", "HWIO", "NCHW"),
            precision=lax.Precision.HIGHEST)

    def bn(t, s, b):
        return t * s.reshape(1, -1, 1, 1) + b.reshape(1, -1, 1, 1)

    w1_hwio = w1.reshape(1, 1, *w1.shape)
    w3_hwio = w3.reshape(1, 1, *w3.shape)
    out = jax.nn.relu(bn(conv(x, w1_hwio, "VALID"), s1, b1))
    out = jax.nn.relu(bn(conv(out, w2, [(1, 1), (1, 1)]), s2, b2))
    out = bn(conv(out, w3_hwio, "VALID"), s3, b3)
    return jax.nn.relu(out + x)


if __name__ == "__main__":
    # inplanes = planes * expansion so the identity skip works (downsample=None).
    # planes=32 -> width=32, inplanes=Cout=128 (lane-dense skip/output channels).
    N, planes, H, W = 2, 32, 16, 16
    expansion = 4
    width = planes                           # base_width=64, groups=1
    inplanes = planes * expansion            # 128
    Cout = planes * expansion                # 128

    key = jax.random.PRNGKey(0)
    ks = jax.random.split(key, 16)

    x = jax.random.normal(ks[0], (N, inplanes, H, W), jnp.float32)

    # Conv weights (channels-last storage for the kernel): 1x1 -> (Cin, Cout2d),
    # 3x3 -> HWIO.
    w1 = jax.random.normal(ks[1], (inplanes, width), jnp.float32) / jnp.sqrt(
        float(inplanes))
    w2 = jax.random.normal(ks[2], (3, 3, width, width), jnp.float32) / jnp.sqrt(
        9.0 * width)
    w3 = jax.random.normal(ks[3], (width, Cout), jnp.float32) / jnp.sqrt(
        float(width))

    # BatchNorm (eval mode) folded to per-channel scale/shift.
    def fold_bn(kg, kb, km, kv, C):
        gamma = 1.0 + 0.1 * jax.random.normal(kg, (C,), jnp.float32)
        beta = 0.1 * jax.random.normal(kb, (C,), jnp.float32)
        mean = 0.1 * jax.random.normal(km, (C,), jnp.float32)
        var = jnp.abs(jax.random.normal(kv, (C,), jnp.float32)) + 0.5
        eps = 1e-5
        scale = gamma / jnp.sqrt(var + eps)
        shift = beta - mean * scale
        return scale, shift

    s1, b1 = fold_bn(ks[4], ks[5], ks[6], ks[7], width)
    s2, b2 = fold_bn(ks[8], ks[9], ks[10], ks[11], width)
    s3, b3 = fold_bn(ks[12], ks[13], ks[14], ks[15], Cout)

    ref = bottleneck_ref(x, w1, s1, b1, w2, s2, b2, w3, s3, b3)

    # Auto-picked tile (full-H here) and an explicit multi-tile run so the
    # interior-halo path is exercised as well.
    for th in (None, 8):
        out = bottleneck_pallas(x, w1, s1, b1, w2, s2, b2, w3, s3, b3, tile_h=th)
        out = jax.block_until_ready(out)
        assert out.shape == (N, Cout, H, W)
        # bf16 MXU operands + bf16 HBM activations (f32 accumulation) vs a
        # strict f32 reference: allow a small numerical drift; a layout/halo
        # bug would produce O(1) errors.
        err = float(jnp.max(jnp.abs(out.astype(jnp.float32) - ref)))
        assert err < 0.25, (th, err)

    print("KERNEL_OK")
</pallas_src>

<mosaic_0001>
module attributes {stable_mosaic.version = 11 : i64} {
  func.func @bottleneck_kernel(%arg0: i32, %arg1: i32, %arg2: memref<1x1x16x128xbf16, #tpu.memory_space<vmem>>, %arg3: memref<1x16x16x128xbf16, #tpu.memory_space<vmem>>, %arg4: memref<1x1x16x128xbf16, #tpu.memory_space<vmem>>, %arg5: memref<128x32xbf16, #tpu.memory_space<vmem>>, %arg6: memref<1x32xf32, #tpu.memory_space<vmem>>, %arg7: memref<288x32xbf16, #tpu.memory_space<vmem>>, %arg8: memref<1x32xf32, #tpu.memory_space<vmem>>, %arg9: memref<32x128xbf16, #tpu.memory_space<vmem>>, %arg10: memref<1x128xf32, #tpu.memory_space<vmem>>, %arg11: memref<1x16x16x128xbf16, #tpu.memory_space<vmem>>) attributes {dimension_semantics = [#tpu.dimension_semantics<parallel>, #tpu.dimension_semantics<parallel>], iteration_bounds = array<i64: 2, 1>, scalar_prefetch = 0 : i64, scratch_operands = 0 : i64, tpu.core_type = #tpu.core_type<tc>, window_params = [{transform_indices = @transform_0, window_bounds = array<i64: 1, 1, 16, 128>}, {transform_indices = @transform_1, window_bounds = array<i64: 1, 16, 16, 128>}, {transform_indices = @transform_2, window_bounds = array<i64: 1, 1, 16, 128>}, {pipeline_mode = #tpu.pipeline_mode<synchronous>, transform_indices = @transform_3, window_bounds = array<i64: 128, 32>}, {pipeline_mode = #tpu.pipeline_mode<synchronous>, transform_indices = @transform_4, window_bounds = array<i64: 1, 32>}, {pipeline_mode = #tpu.pipeline_mode<synchronous>, transform_indices = @transform_5, window_bounds = array<i64: 288, 32>}, {pipeline_mode = #tpu.pipeline_mode<synchronous>, transform_indices = @transform_6, window_bounds = array<i64: 1, 32>}, {pipeline_mode = #tpu.pipeline_mode<synchronous>, transform_indices = @transform_7, window_bounds = array<i64: 32, 128>}, {pipeline_mode = #tpu.pipeline_mode<synchronous>, transform_indices = @transform_8, window_bounds = array<i64: 1, 128>}, {transform_indices = @transform_9, window_bounds = array<i64: 1, 16, 16, 128>}]} {
    %c0 = arith.constant 0 : index
    %c0_0 = arith.constant 0 : index
    %c0_1 = arith.constant 0 : index
    %c0_2 = arith.constant 0 : index
    %0 = vector.load %arg2[%c0, %c0_0, %c0_1, %c0_2] : memref<1x1x16x128xbf16, #tpu.memory_space<vmem>>, vector<1x1x16x128xbf16>
    %1 = vector.shape_cast %0 : vector<1x1x16x128xbf16> to vector<1x16x128xbf16>
    %c0_3 = arith.constant 0 : index
    %c0_4 = arith.constant 0 : index
    %c0_5 = arith.constant 0 : index
    %c0_6 = arith.constant 0 : index
    %2 = vector.load %arg3[%c0_3, %c0_4, %c0_5, %c0_6] : memref<1x16x16x128xbf16, #tpu.memory_space<vmem>>, vector<1x16x16x128xbf16>
    %3 = vector.shape_cast %2 : vector<1x16x16x128xbf16> to vector<16x16x128xbf16>
    %c0_7 = arith.constant 0 : index
    %c0_8 = arith.constant 0 : index
    %c0_9 = arith.constant 0 : index
    %c0_10 = arith.constant 0 : index
    %4 = vector.load %arg4[%c0_7, %c0_8, %c0_9, %c0_10] : memref<1x1x16x128xbf16, #tpu.memory_space<vmem>>, vector<1x1x16x128xbf16>
    %5 = vector.shape_cast %4 : vector<1x1x16x128xbf16> to vector<1x16x128xbf16>
    %6 = tpu.concatenate %1, %3, %5 in 0 : vector<1x16x128xbf16>, vector<16x16x128xbf16>, vector<1x16x128xbf16> -> vector<18x16x128xbf16>
    %7 = vector.shape_cast %6 : vector<18x16x128xbf16> to vector<288x128xbf16>
    %c0_11 = arith.constant 0 : index
    %c0_12 = arith.constant 0 : index
    %8 = vector.load %arg5[%c0_11, %c0_12] : memref<128x32xbf16, #tpu.memory_space<vmem>>, vector<128x32xbf16>
    %cst = arith.constant dense<0.000000e+00> : vector<288x32xf32>
    %9 = tpu.matmul %7, %8, %cst {dimension_numbers = #tpu.dot_dimension_numbers<[1], [0], [0], [1], [0, 0, 1, 1], [], []>} : vector<288x128xbf16>, vector<128x32xbf16>, vector<288x32xf32> -> vector<288x32xf32>
    %c0_13 = arith.constant 0 : index
    %c0_14 = arith.constant 0 : index
    %10 = vector.load %arg6[%c0_13, %c0_14] : memref<1x32xf32, #tpu.memory_space<vmem>>, vector<1x32xf32>
    %11 = vector.broadcast %10 : vector<1x32xf32> to vector<288x32xf32>
    %12 = arith.addf %9, %11 : vector<288x32xf32>
    %cst_15 = arith.constant 0.000000e+00 : f32
    %13 = vector.broadcast %cst_15 : f32 to vector<288x32xf32>
    %14 = arith.maximumf %12, %13 : vector<288x32xf32>
    %15 = vector.shape_cast %14 : vector<288x32xf32> to vector<18x16x32xf32>
    %c0_i32 = arith.constant 0 : i32
    %16 = arith.cmpi sgt, %arg1, %c0_i32 : i32
    %cst_16 = arith.constant 1.000000e+00 : f32
    %cst_17 = arith.constant 0.000000e+00 : f32
    %17 = arith.select %16, %cst_16, %cst_17 : f32
    %c0_i32_18 = arith.constant 0 : i32
    %18 = arith.cmpi slt, %arg1, %c0_i32_18 : i32
    %cst_19 = arith.constant 1.000000e+00 : f32
    %cst_20 = arith.constant 0.000000e+00 : f32
    %19 = arith.select %18, %cst_19, %cst_20 : f32
    %20 = tpu.iota {dimensions = array<i32: 0>} : vector<18x1x1xi32>
    %c0_i32_21 = arith.constant 0 : i32
    %21 = vector.broadcast %c0_i32_21 : i32 to vector<18x1x1xi32>
    %22 = arith.cmpi eq, %20, %21 : vector<18x1x1xi32>
    %c17_i32 = arith.constant 17 : i32
    %23 = vector.broadcast %c17_i32 : i32 to vector<18x1x1xi32>
    %24 = arith.cmpi eq, %20, %23 : vector<18x1x1xi32>
    %cst_22 = arith.constant 1.000000e+00 : f32
    %25 = vector.broadcast %19 : f32 to vector<18x1x1xf32>
    %26 = vector.broadcast %cst_22 : f32 to vector<18x1x1xf32>
    %27 = arith.select %24, %25, %26 : vector<18x1x1xi1>, vector<18x1x1xf32>
    %28 = vector.broadcast %17 : f32 to vector<18x1x1xf32>
    %29 = arith.select %22, %28, %27 : vector<18x1x1xi1>, vector<18x1x1xf32>
    %30 = vector.broadcast %29 : vector<18x1x1xf32> to vector<18x16x32xf32>
    %31 = arith.mulf %15, %30 : vector<18x16x32xf32>
    %32 = arith.truncf %31 : vector<18x16x32xf32> to vector<18x16x32xbf16>
    %cst_23 = arith.constant 0.000000e+00 : bf16
    %33 = vector.broadcast %cst_23 : bf16 to vector<18x1x32xbf16>
    %34 = vector.extract_strided_slice %32 {offsets = [0, 0, 0], sizes = [18, 15, 32], strides = [1, 1, 1]} : vector<18x16x32xbf16> to vector<18x15x32xbf16>
    %35 = tpu.concatenate %33, %34 in 1 : vector<18x1x32xbf16>, vector<18x15x32xbf16> -> vector<18x16x32xbf16>
    %36 = vector.extract_strided_slice %32 {offsets = [0, 1, 0], sizes = [18, 15, 32], strides = [1, 1, 1]} : vector<18x16x32xbf16> to vector<18x15x32xbf16>
    %37 = tpu.concatenate %36, %33 in 1 : vector<18x15x32xbf16>, vector<18x1x32xbf16> -> vector<18x16x32xbf16>
    %38 = tpu.concatenate %35, %32, %37 in 2 : vector<18x16x32xbf16>, vector<18x16x32xbf16>, vector<18x16x32xbf16> -> vector<18x16x96xbf16>
    %39 = vector.extract_strided_slice %38 {offsets = [0, 0, 0], sizes = [16, 16, 96], strides = [1, 1, 1]} : vector<18x16x96xbf16> to vector<16x16x96xbf16>
    %40 = vector.extract_strided_slice %38 {offsets = [1, 0, 0], sizes = [16, 16, 96], strides = [1, 1, 1]} : vector<18x16x96xbf16> to vector<16x16x96xbf16>
    %41 = vector.extract_strided_slice %38 {offsets = [2, 0, 0], sizes = [16, 16, 96], strides = [1, 1, 1]} : vector<18x16x96xbf16> to vector<16x16x96xbf16>
    %42 = tpu.concatenate %39, %40, %41 in 2 : vector<16x16x96xbf16>, vector<16x16x96xbf16>, vector<16x16x96xbf16> -> vector<16x16x288xbf16>
    %43 = vector.shape_cast %42 : vector<16x16x288xbf16> to vector<256x288xbf16>
    %c0_24 = arith.constant 0 : index
    %c0_25 = arith.constant 0 : index
    %44 = vector.load %arg7[%c0_24, %c0_25] : memref<288x32xbf16, #tpu.memory_space<vmem>>, vector<288x32xbf16>
    %cst_26 = arith.constant dense<0.000000e+00> : vector<256x32xf32>
    %45 = tpu.matmul %43, %44, %cst_26 {dimension_numbers = #tpu.dot_dimension_numbers<[1], [0], [0], [1], [0, 0, 1, 1], [], []>} : vector<256x288xbf16>, vector<288x32xbf16>, vector<256x32xf32> -> vector<256x32xf32>
    %c0_27 = arith.constant 0 : index
    %c0_28 = arith.constant 0 : index
    %46 = vector.load %arg8[%c0_27, %c0_28] : memref<1x32xf32, #tpu.memory_space<vmem>>, vector<1x32xf32>
    %47 = vector.broadcast %46 : vector<1x32xf32> to vector<256x32xf32>
    %48 = arith.addf %45, %47 : vector<256x32xf32>
    %cst_29 = arith.constant 0.000000e+00 : f32
    %49 = vector.broadcast %cst_29 : f32 to vector<256x32xf32>
    %50 = arith.maximumf %48, %49 : vector<256x32xf32>
    %51 = arith.truncf %50 : vector<256x32xf32> to vector<256x32xbf16>
    %c0_30 = arith.constant 0 : index
    %c0_31 = arith.constant 0 : index
    %52 = vector.load %arg9[%c0_30, %c0_31] : memref<32x128xbf16, #tpu.memory_space<vmem>>, vector<32x128xbf16>
    %cst_32 = arith.constant dense<0.000000e+00> : vector<256x128xf32>
    %53 = tpu.matmul %51, %52, %cst_32 {dimension_numbers = #tpu.dot_dimension_numbers<[1], [0], [0], [1], [0, 0, 1, 1], [], []>} : vector<256x32xbf16>, vector<32x128xbf16>, vector<256x128xf32> -> vector<256x128xf32>
    %c0_33 = arith.constant 0 : index
    %c0_34 = arith.constant 0 : index
    %54 = vector.load %arg10[%c0_33, %c0_34] : memref<1x128xf32, #tpu.memory_space<vmem>>, vector<1x128xf32>
    %55 = vector.broadcast %54 : vector<1x128xf32> to vector<256x128xf32>
    %56 = arith.addf %53, %55 : vector<256x128xf32>
    %c0_35 = arith.constant 0 : index
    %c0_36 = arith.constant 0 : index
    %c0_37 = arith.constant 0 : index
    %c0_38 = arith.constant 0 : index
    %57 = vector.load %arg3[%c0_35, %c0_36, %c0_37, %c0_38] : memref<1x16x16x128xbf16, #tpu.memory_space<vmem>>, vector<1x16x16x128xbf16>
    %58 = vector.shape_cast %57 : vector<1x16x16x128xbf16> to vector<16x16x128xbf16>
    %59 = vector.shape_cast %58 : vector<16x16x128xbf16> to vector<256x128xbf16>
    %60 = arith.extf %59 : vector<256x128xbf16> to vector<256x128xf32>
    %61 = arith.addf %56, %60 : vector<256x128xf32>
    %cst_39 = arith.constant 0.000000e+00 : f32
    %62 = vector.broadcast %cst_39 : f32 to vector<256x128xf32>
    %63 = arith.maximumf %61, %62 : vector<256x128xf32>
    %64 = vector.shape_cast %63 : vector<256x128xf32> to vector<1x16x16x128xf32>
    %65 = arith.truncf %64 : vector<1x16x16x128xf32> to vector<1x16x16x128xbf16>
    %c0_40 = arith.constant 0 : index
    %c0_41 = arith.constant 0 : index
    %c0_42 = arith.constant 0 : index
    %c0_43 = arith.constant 0 : index
    %66 = vector.load %arg11[%c0_40, %c0_41, %c0_42, %c0_43] : memref<1x16x16x128xbf16, #tpu.memory_space<vmem>>, vector<1x16x16x128xbf16>
    tpu.vector_store %arg11[%c0_40, %c0_41, %c0_42, %c0_43], %65 {strides = array<i32>} : memref<1x16x16x128xbf16, #tpu.memory_space<vmem>>, vector<1x16x16x128xbf16>,
    return
  }
  func.func @transform_0(%arg0: i32, %arg1: i32) -> (i32, i32, i32, i32) {
    %c16_i32 = arith.constant 16 : i32
    %0 = arith.muli %arg1, %c16_i32 : i32
    %c1_i32 = arith.constant 1 : i32
    %1 = arith.subi %0, %c1_i32 : i32
    %c0_i32 = arith.constant 0 : i32
    %2 = arith.maxsi %1, %c0_i32 : i32
    %c0_i32_0 = arith.constant 0 : i32
    %c0_i32_1 = arith.constant 0 : i32
    %c0_i32_2 = arith.constant 0 : i32
    return %arg0, %2, %c0_i32_0, %c0_i32_1 : i32, i32, i32, i32
  }
  func.func @transform_1(%arg0: i32, %arg1: i32) -> (i32, i32, i32, i32) {
    %c0_i32 = arith.constant 0 : i32
    %c0_i32_0 = arith.constant 0 : i32
    %c0_i32_1 = arith.constant 0 : i32
    return %arg0, %arg1, %c0_i32, %c0_i32_0 : i32, i32, i32, i32
  }
  func.func @transform_2(%arg0: i32, %arg1: i32) -> (i32, i32, i32, i32) {
    %c16_i32 = arith.constant 16 : i32
    %0 = arith.muli %arg1, %c16_i32 : i32
    %c16_i32_0 = arith.constant 16 : i32
    %1 = arith.addi %0, %c16_i32_0 : i32
    %c15_i32 = arith.constant 15 : i32
    %2 = arith.minsi %1, %c15_i32 : i32
    %c0_i32 = arith.constant 0 : i32
    %c0_i32_1 = arith.constant 0 : i32
    %c0_i32_2 = arith.constant 0 : i32
    return %arg0, %2, %c0_i32, %c0_i32_1 : i32, i32, i32, i32
  }
  func.func @transform_3(%arg0: i32, %arg1: i32) -> (i32, i32) {
    %c0_i32 = arith.constant 0 : i32
    %c0_i32_0 = arith.constant 0 : i32
    %c0_i32_1 = arith.constant 0 : i32
    return %c0_i32, %c0_i32_0 : i32, i32
  }
  func.func @transform_4(%arg0: i32, %arg1: i32) -> (i32, i32) {
    %c0_i32 = arith.constant 0 : i32
    %c0_i32_0 = arith.constant 0 : i32
    %c0_i32_1 = arith.constant 0 : i32
    return %c0_i32, %c0_i32_0 : i32, i32
  }
  func.func @transform_5(%arg0: i32, %arg1: i32) -> (i32, i32) {
    %c0_i32 = arith.constant 0 : i32
    %c0_i32_0 = arith.constant 0 : i32
    %c0_i32_1 = arith.constant 0 : i32
    return %c0_i32, %c0_i32_0 : i32, i32
  }
  func.func @transform_6(%arg0: i32, %arg1: i32) -> (i32, i32) {
    %c0_i32 = arith.constant 0 : i32
    %c0_i32_0 = arith.constant 0 : i32
    %c0_i32_1 = arith.constant 0 : i32
    return %c0_i32, %c0_i32_0 : i32, i32
  }
  func.func @transform_7(%arg0: i32, %arg1: i32) -> (i32, i32) {
    %c0_i32 = arith.constant 0 : i32
    %c0_i32_0 = arith.constant 0 : i32
    %c0_i32_1 = arith.constant 0 : i32
    return %c0_i32, %c0_i32_0 : i32, i32
  }
  func.func @transform_8(%arg0: i32, %arg1: i32) -> (i32, i32) {
    %c0_i32 = arith.constant 0 : i32
    %c0_i32_0 = arith.constant 0 : i32
    %c0_i32_1 = arith.constant 0 : i32
    return %c0_i32, %c0_i32_0 : i32, i32
  }
  func.func @transform_9(%arg0: i32, %arg1: i32) -> (i32, i32, i32, i32) {
    %c0_i32 = arith.constant 0 : i32
    %c0_i32_0 = arith.constant 0 : i32
    %c0_i32_1 = arith.constant 0 : i32
    return %arg0, %arg1, %c0_i32, %c0_i32_0 : i32, i32, i32, i32
  }
}

module attributes {stable_mosaic.version = 11 : i64} {
  func.func @bottleneck_kernel(%arg0: i32, %arg1: i32, %arg2: memref<1x1x16x128xbf16, #tpu.memory_space<vmem>>, %arg3: memref<1x16x16x128xbf16, #tpu.memory_space<vmem>>, %arg4: memref<1x1x16x128xbf16, #tpu.memory_space<vmem>>, %arg5: memref<128x32xbf16, #tpu.memory_space<vmem>>, %arg6: memref<1x32xf32, #tpu.memory_space<vmem>>, %arg7: memref<288x32xbf16, #tpu.memory_space<vmem>>, %arg8: memref<1x32xf32, #tpu.memory_space<vmem>>, %arg9: memref<32x128xbf16, #tpu.memory_space<vmem>>, %arg10: memref<1x128xf32, #tpu.memory_space<vmem>>, %arg11: memref<1x16x16x128xbf16, #tpu.memory_space<vmem>>) attributes {dimension_semantics = [#tpu.dimension_semantics<parallel>, #tpu.dimension_semantics<parallel>], iteration_bounds = array<i64: 2, 1>, scalar_prefetch = 0 : i64, scratch_operands = 0 : i64, tpu.core_type = #tpu.core_type<tc>, window_params = [{transform_indices = @transform_0, window_bounds = array<i64: 1, 1, 16, 128>}, {transform_indices = @transform_1, window_bounds = array<i64: 1, 16, 16, 128>}, {transform_indices = @transform_2, window_bounds = array<i64: 1, 1, 16, 128>}, {pipeline_mode = #tpu.pipeline_mode<synchronous>, transform_indices = @transform_3, window_bounds = array<i64: 128, 32>}, {pipeline_mode = #tpu.pipeline_mode<synchronous>, transform_indices = @transform_4, window_bounds = array<i64: 1, 32>}, {pipeline_mode = #tpu.pipeline_mode<synchronous>, transform_indices = @transform_5, window_bounds = array<i64: 288, 32>}, {pipeline_mode = #tpu.pipeline_mode<synchronous>, transform_indices = @transform_6, window_bounds = array<i64: 1, 32>}, {pipeline_mode = #tpu.pipeline_mode<synchronous>, transform_indices = @transform_7, window_bounds = array<i64: 32, 128>}, {pipeline_mode = #tpu.pipeline_mode<synchronous>, transform_indices = @transform_8, window_bounds = array<i64: 1, 128>}, {transform_indices = @transform_9, window_bounds = array<i64: 1, 16, 16, 128>}]} {
    %c0 = arith.constant 0 : index
    %c0_0 = arith.constant 0 : index
    %c0_1 = arith.constant 0 : index
    %c0_2 = arith.constant 0 : index
    %0 = vector.load %arg2[%c0, %c0_0, %c0_1, %c0_2] : memref<1x1x16x128xbf16, #tpu.memory_space<vmem>>, vector<1x1x16x128xbf16>
    %1 = vector.shape_cast %0 : vector<1x1x16x128xbf16> to vector<1x16x128xbf16>
    %c0_3 = arith.constant 0 : index
    %c0_4 = arith.constant 0 : index
    %c0_5 = arith.constant 0 : index
    %c0_6 = arith.constant 0 : index
    %2 = vector.load %arg3[%c0_3, %c0_4, %c0_5, %c0_6] : memref<1x16x16x128xbf16, #tpu.memory_space<vmem>>, vector<1x16x16x128xbf16>
    %3 = vector.shape_cast %2 : vector<1x16x16x128xbf16> to vector<16x16x128xbf16>
    %c0_7 = arith.constant 0 : index
    %c0_8 = arith.constant 0 : index
    %c0_9 = arith.constant 0 : index
    %c0_10 = arith.constant 0 : index
    %4 = vector.load %arg4[%c0_7, %c0_8, %c0_9, %c0_10] : memref<1x1x16x128xbf16, #tpu.memory_space<vmem>>, vector<1x1x16x128xbf16>
    %5 = vector.shape_cast %4 : vector<1x1x16x128xbf16> to vector<1x16x128xbf16>
    %6 = tpu.concatenate %1, %3, %5 in 0 : vector<1x16x128xbf16>, vector<16x16x128xbf16>, vector<1x16x128xbf16> -> vector<18x16x128xbf16>
    %7 = vector.shape_cast %6 : vector<18x16x128xbf16> to vector<288x128xbf16>
    %c0_11 = arith.constant 0 : index
    %c0_12 = arith.constant 0 : index
    %8 = vector.load %arg5[%c0_11, %c0_12] : memref<128x32xbf16, #tpu.memory_space<vmem>>, vector<128x32xbf16>
    %cst = arith.constant dense<0.000000e+00> : vector<288x32xf32>
    %9 = tpu.matmul %7, %8, %cst {dimension_numbers = #tpu.dot_dimension_numbers<[1], [0], [0], [1], [0, 0, 1, 1], [], []>} : vector<288x128xbf16>, vector<128x32xbf16>, vector<288x32xf32> -> vector<288x32xf32>
    %c0_13 = arith.constant 0 : index
    %c0_14 = arith.constant 0 : index
    %10 = vector.load %arg6[%c0_13, %c0_14] : memref<1x32xf32, #tpu.memory_space<vmem>>, vector<1x32xf32>
    %11 = vector.broadcast %10 : vector<1x32xf32> to vector<288x32xf32>
    %12 = arith.addf %9, %11 : vector<288x32xf32>
    %cst_15 = arith.constant 0.000000e+00 : f32
    %13 = vector.broadcast %cst_15 : f32 to vector<288x32xf32>
    %14 = arith.maximumf %12, %13 : vector<288x32xf32>
    %15 = vector.shape_cast %14 : vector<288x32xf32> to vector<18x16x32xf32>
    %c0_i32 = arith.constant 0 : i32
    %16 = arith.cmpi sgt, %arg1, %c0_i32 : i32
    %cst_16 = arith.constant 1.000000e+00 : f32
    %cst_17 = arith.constant 0.000000e+00 : f32
    %17 = arith.select %16, %cst_16, %cst_17 : f32
    %c0_i32_18 = arith.constant 0 : i32
    %18 = arith.cmpi slt, %arg1, %c0_i32_18 : i32
    %cst_19 = arith.constant 1.000000e+00 : f32
    %cst_20 = arith.constant 0.000000e+00 : f32
    %19 = arith.select %18, %cst_19, %cst_20 : f32
    %20 = tpu.iota {dimensions = array<i32: 0>} : vector<18x1x1xi32>
    %c0_i32_21 = arith.constant 0 : i32
    %21 = vector.broadcast %c0_i32_21 : i32 to vector<18x1x1xi32>
    %22 = arith.cmpi eq, %20, %21 : vector<18x1x1xi32>
    %c17_i32 = arith.constant 17 : i32
    %23 = vector.broadcast %c17_i32 : i32 to vector<18x1x1xi32>
    %24 = arith.cmpi eq, %20, %23 : vector<18x1x1xi32>
    %cst_22 = arith.constant 1.000000e+00 : f32
    %25 = vector.broadcast %19 : f32 to vector<18x1x1xf32>
    %26 = vector.broadcast %cst_22 : f32 to vector<18x1x1xf32>
    %27 = arith.select %24, %25, %26 : vector<18x1x1xi1>, vector<18x1x1xf32>
    %28 = vector.broadcast %17 : f32 to vector<18x1x1xf32>
    %29 = arith.select %22, %28, %27 : vector<18x1x1xi1>, vector<18x1x1xf32>
    %30 = vector.broadcast %29 : vector<18x1x1xf32> to vector<18x16x32xf32>
    %31 = arith.mulf %15, %30 : vector<18x16x32xf32>
    %32 = arith.truncf %31 : vector<18x16x32xf32> to vector<18x16x32xbf16>
    %cst_23 = arith.constant 0.000000e+00 : bf16
    %33 = vector.broadcast %cst_23 : bf16 to vector<18x1x32xbf16>
    %34 = vector.extract_strided_slice %32 {offsets = [0, 0, 0], sizes = [18, 15, 32], strides = [1, 1, 1]} : vector<18x16x32xbf16> to vector<18x15x32xbf16>
    %35 = tpu.concatenate %33, %34 in 1 : vector<18x1x32xbf16>, vector<18x15x32xbf16> -> vector<18x16x32xbf16>
    %36 = vector.extract_strided_slice %32 {offsets = [0, 1, 0], sizes = [18, 15, 32], strides = [1, 1, 1]} : vector<18x16x32xbf16> to vector<18x15x32xbf16>
    %37 = tpu.concatenate %36, %33 in 1 : vector<18x15x32xbf16>, vector<18x1x32xbf16> -> vector<18x16x32xbf16>
    %38 = tpu.concatenate %35, %32, %37 in 2 : vector<18x16x32xbf16>, vector<18x16x32xbf16>, vector<18x16x32xbf16> -> vector<18x16x96xbf16>
    %39 = vector.extract_strided_slice %38 {offsets = [0, 0, 0], sizes = [16, 16, 96], strides = [1, 1, 1]} : vector<18x16x96xbf16> to vector<16x16x96xbf16>
    %40 = vector.extract_strided_slice %38 {offsets = [1, 0, 0], sizes = [16, 16, 96], strides = [1, 1, 1]} : vector<18x16x96xbf16> to vector<16x16x96xbf16>
    %41 = vector.extract_strided_slice %38 {offsets = [2, 0, 0], sizes = [16, 16, 96], strides = [1, 1, 1]} : vector<18x16x96xbf16> to vector<16x16x96xbf16>
    %42 = tpu.concatenate %39, %40, %41 in 2 : vector<16x16x96xbf16>, vector<16x16x96xbf16>, vector<16x16x96xbf16> -> vector<16x16x288xbf16>
    %43 = vector.shape_cast %42 : vector<16x16x288xbf16> to vector<256x288xbf16>
    %c0_24 = arith.constant 0 : index
    %c0_25 = arith.constant 0 : index
    %44 = vector.load %arg7[%c0_24, %c0_25] : memref<288x32xbf16, #tpu.memory_space<vmem>>, vector<288x32xbf16>
    %cst_26 = arith.constant dense<0.000000e+00> : vector<256x32xf32>
    %45 = tpu.matmul %43, %44, %cst_26 {dimension_numbers = #tpu.dot_dimension_numbers<[1], [0], [0], [1], [0, 0, 1, 1], [], []>} : vector<256x288xbf16>, vector<288x32xbf16>, vector<256x32xf32> -> vector<256x32xf32>
    %c0_27 = arith.constant 0 : index
    %c0_28 = arith.constant 0 : index
    %46 = vector.load %arg8[%c0_27, %c0_28] : memref<1x32xf32, #tpu.memory_space<vmem>>, vector<1x32xf32>
    %47 = vector.broadcast %46 : vector<1x32xf32> to vector<256x32xf32>
    %48 = arith.addf %45, %47 : vector<256x32xf32>
    %cst_29 = arith.constant 0.000000e+00 : f32
    %49 = vector.broadcast %cst_29 : f32 to vector<256x32xf32>
    %50 = arith.maximumf %48, %49 : vector<256x32xf32>
    %51 = arith.truncf %50 : vector<256x32xf32> to vector<256x32xbf16>
    %c0_30 = arith.constant 0 : index
    %c0_31 = arith.constant 0 : index
    %52 = vector.load %arg9[%c0_30, %c0_31] : memref<32x128xbf16, #tpu.memory_space<vmem>>, vector<32x128xbf16>
    %cst_32 = arith.constant dense<0.000000e+00> : vector<256x128xf32>
    %53 = tpu.matmul %51, %52, %cst_32 {dimension_numbers = #tpu.dot_dimension_numbers<[1], [0], [0], [1], [0, 0, 1, 1], [], []>} : vector<256x32xbf16>, vector<32x128xbf16>, vector<256x128xf32> -> vector<256x128xf32>
    %c0_33 = arith.constant 0 : index
    %c0_34 = arith.constant 0 : index
    %54 = vector.load %arg10[%c0_33, %c0_34] : memref<1x128xf32, #tpu.memory_space<vmem>>, vector<1x128xf32>
    %55 = vector.broadcast %54 : vector<1x128xf32> to vector<256x128xf32>
    %56 = arith.addf %53, %55 : vector<256x128xf32>
    %c0_35 = arith.constant 0 : index
    %c0_36 = arith.constant 0 : index
    %c0_37 = arith.constant 0 : index
    %c0_38 = arith.constant 0 : index
    %57 = vector.load %arg3[%c0_35, %c0_36, %c0_37, %c0_38] : memref<1x16x16x128xbf16, #tpu.memory_space<vmem>>, vector<1x16x16x128xbf16>
    %58 = vector.shape_cast %57 : vector<1x16x16x128xbf16> to vector<16x16x128xbf16>
    %59 = vector.shape_cast %58 : vector<16x16x128xbf16> to vector<256x128xbf16>
    %60 = arith.extf %59 : vector<256x128xbf16> to vector<256x128xf32>
    %61 = arith.addf %56, %60 : vector<256x128xf32>
    %cst_39 = arith.constant 0.000000e+00 : f32
    %62 = vector.broadcast %cst_39 : f32 to vector<256x128xf32>
    %63 = arith.maximumf %61, %62 : vector<256x128xf32>
    %64 = vector.shape_cast %63 : vector<256x128xf32> to vector<1x16x16x128xf32>
    %65 = arith.truncf %64 : vector<1x16x16x128xf32> to vector<1x16x16x128xbf16>
    %c0_40 = arith.constant 0 : index
    %c0_41 = arith.constant 0 : index
    %c0_42 = arith.constant 0 : index
    %c0_43 = arith.constant 0 : index
    %66 = vector.load %arg11[%c0_40, %c0_41, %c0_42, %c0_43] : memref<1x16x16x128xbf16, #tpu.memory_space<vmem>>, vector<1x16x16x128xbf16>
    tpu.vector_store %arg11[%c0_40, %c0_41, %c0_42, %c0_43], %65 {strides = array<i32>} : memref<1x16x16x128xbf16, #tpu.memory_space<vmem>>, vector<1x16x16x128xbf16>,
    return
  }
  func.func @transform_0(%arg0: i32, %arg1: i32) -> (i32, i32, i32, i32) {
    %c16_i32 = arith.constant 16 : i32
    %0 = arith.muli %arg1, %c16_i32 : i32
    %c1_i32 = arith.constant 1 : i32
    %1 = arith.subi %0, %c1_i32 : i32
    %c0_i32 = arith.constant 0 : i32
    %2 = arith.maxsi %1, %c0_i32 : i32
    %c0_i32_0 = arith.constant 0 : i32
    %c0_i32_1 = arith.constant 0 : i32
    %c0_i32_2 = arith.constant 0 : i32
    return %arg0, %2, %c0_i32_0, %c0_i32_1 : i32, i32, i32, i32
  }
  func.func @transform_1(%arg0: i32, %arg1: i32) -> (i32, i32, i32, i32) {
    %c0_i32 = arith.constant 0 : i32
    %c0_i32_0 = arith.constant 0 : i32
    %c0_i32_1 = arith.constant 0 : i32
    return %arg0, %arg1, %c0_i32, %c0_i32_0 : i32, i32, i32, i32
  }
  func.func @transform_2(%arg0: i32, %arg1: i32) -> (i32, i32, i32, i32) {
    %c16_i32 = arith.constant 16 : i32
    %0 = arith.muli %arg1, %c16_i32 : i32
    %c16_i32_0 = arith.constant 16 : i32
    %1 = arith.addi %0, %c16_i32_0 : i32
    %c15_i32 = arith.constant 15 : i32
    %2 = arith.minsi %1, %c15_i32 : i32
    %c0_i32 = arith.constant 0 : i32
    %c0_i32_1 = arith.constant 0 : i32
    %c0_i32_2 = arith.constant 0 : i32
    return %arg0, %2, %c0_i32, %c0_i32_1 : i32, i32, i32, i32
  }
  func.func @transform_3(%arg0: i32, %arg1: i32) -> (i32, i32) {
    %c0_i32 = arith.constant 0 : i32
    %c0_i32_0 = arith.constant 0 : i32
    %c0_i32_1 = arith.constant 0 : i32
    return %c0_i32, %c0_i32_0 : i32, i32
  }
  func.func @transform_4(%arg0: i32, %arg1: i32) -> (i32, i32) {
    %c0_i32 = arith.constant 0 : i32
    %c0_i32_0 = arith.constant 0 : i32
    %c0_i32_1 = arith.constant 0 : i32
    return %c0_i32, %c0_i32_0 : i32, i32
  }
  func.func @transform_5(%arg0: i32, %arg1: i32) -> (i32, i32) {
    %c0_i32 = arith.constant 0 : i32
    %c0_i32_0 = arith.constant 0 : i32
    %c0_i32_1 = arith.constant 0 : i32
    return %c0_i32, %c0_i32_0 : i32, i32
  }
  func.func @transform_6(%arg0: i32, %arg1: i32) -> (i32, i32) {
    %c0_i32 = arith.constant 0 : i32
    %c0_i32_0 = arith.constant 0 : i32
    %c0_i32_1 = arith.constant 0 : i32
    return %c0_i32, %c0_i32_0 : i32, i32
  }
  func.func @transform_7(%arg0: i32, %arg1: i32) -> (i32, i32) {
    %c0_i32 = arith.constant 0 : i32
    %c0_i32_0 = arith.constant 0 : i32
    %c0_i32_1 = arith.constant 0 : i32
    return %c0_i32, %c0_i32_0 : i32, i32
  }
  func.func @transform_8(%arg0: i32, %arg1: i32) -> (i32, i32) {
    %c0_i32 = arith.constant 0 : i32
    %c0_i32_0 = arith.constant 0 : i32
    %c0_i32_1 = arith.constant 0 : i32
    return %c0_i32, %c0_i32_0 : i32, i32
  }
  func.func @transform_9(%arg0: i32, %arg1: i32) -> (i32, i32, i32, i32) {
    %c0_i32 = arith.constant 0 : i32
    %c0_i32_0 = arith.constant 0 : i32
    %c0_i32_1 = arith.constant 0 : i32
    return %arg0, %arg1, %c0_i32, %c0_i32_0 : i32, i32, i32, i32
  }
}

</mosaic_0001>

<llo_original>
// kernel: tpu_custom_call.1
$region0: #{tpu_custom_call.1}
  #allocation0 [shape = 'u32[]', space=smem, size = 0x4, offset = 0x4, fixed_abs, tag = 'smem constant byte address 0x4 - core index']
  #allocation1 [shape = 'u32[144,128]{1,0:T(1,128)}', space=vmem, size = 0x12000, scoped, tag = 'internal scratch']
  %s0 = inlined_call_operand.vmem [shape: bf16[2,16,16,128], index: 0, kind: input, shape index: {}]
  %s1 = inlined_call_operand.hbm [shape: bf16[2,16,16,128], index: 1, kind: input, shape index: {}]
  %s2 = inlined_call_operand.hbm [shape: bf16[2,16,16,128], index: 2, kind: input, shape index: {}]
  %s3 = inlined_call_operand.vmem [shape: bf16[128,32], index: 3, kind: input, shape index: {}]
  %s4 = inlined_call_operand.vmem [shape: f32[1,32], index: 4, kind: input, shape index: {}]
  %s5 = inlined_call_operand.vmem [shape: bf16[288,32], index: 5, kind: input, shape index: {}]
  %s6 = inlined_call_operand.vmem [shape: f32[1,32], index: 6, kind: input, shape index: {}]
  %s7 = inlined_call_operand.vmem [shape: bf16[32,128], index: 7, kind: input, shape index: {}]
  %s8 = inlined_call_operand.vmem [shape: f32[1,128], index: 8, kind: input, shape index: {}]
  %s9 = inlined_call_operand.hbm [shape: bf16[2,16,16,128], index: 9, kind: output, shape index: {}]
  %s10 = sld [smem:[#allocation0]]
  $region77: #{tpu_custom_call.1} parent=0
    _
  %s12 = ssub.s32 1, %s10
  %s13 = scalar_select 0, %s12, %s10
  $region1: #{tpu_custom_call.1} parent=0
    #allocation2 [shape = 'u8[131072]{0}', space=vmem, size = 0x20000, scoped, tag = 'input window, operand 1']
    #allocation3 [shape = 's32[2]{0}', space=sflag, size = 0x8, scoped, tag = 'scoped memory for tpu_custom_call.1']
    #allocation4 [shape = 's32[2]{0}', space=sflag, size = 0x8, scoped, tag = 'scoped memory for tpu_custom_call.1']
    #allocation5 [shape = 'u8[8192]{0}', space=vmem, size = 0x2000, scoped, tag = 'input window, operand 2']
    #allocation6 [shape = 's32[2]{0}', space=sflag, size = 0x8, scoped, tag = 'scoped memory for tpu_custom_call.1']
    #allocation7 [shape = 'u8[131072]{0}', space=vmem, size = 0x20000, scoped, tag = 'output window, operand 0']
    %14 = vsyncpa [#allocation3], 0
    %s15 = scalar_lea.sflag [#allocation3], 1
    %16 = vsyncpa %s15, 0
    %17 = vsyncpa [#allocation6], 0
    %s18 = scalar_lea.sflag [#allocation6], 1
    %19 = vsyncpa %s18, 0
    %20 = vsyncpa [#allocation4], 0
    %s21 = scalar_lea.sflag [#allocation4], 1
    %22 = vsyncpa %s21, 0
    loop: start=0, step=1, limit=4
    $region2: #{tpu_custom_call.1} parent=1 // loop_pre_header
      _
    $region3: #{tpu_custom_call.1} parent=1 // loop_header
      %s24 = sphi 0, %s28
      %p25 = scmp.ge.s32.totalorder %s24, 4
      %s31 = sphi 0, %s43
      %s32 = sphi 0, %s39
      %s33 = sphi 0, %s31
      %s34 = sphi 0, %s32
      %s35 = sphi 0, %s33
      %s36 = sphi 0, %s34
      %s56 = sphi 0, %s58
      %s59 = sphi 0, %s56
      %s60 = sphi 0, %s59
      %s76 = sphi 0, %s60
      %s84 = sphi 0, %s86
      %s87 = sphi 0, %s84
      %s88 = sphi 0, %s87
      %s104 = sphi 0, %s88
      %s120 = sphi 0, %s122
      %s123 = sphi 0, %s120
      %s124 = sphi 0, %s123
      %s140 = sphi 0, %s124
      %s144 = sphi 0, %s144
      %s146 = sphi 0, %s144
      %s147 = sphi 0, %s146
      %s161 = sphi 0, %s147
      %s165 = sphi 0, %s165
      %s167 = sphi 0, %s165
      %s168 = sphi 0, %s167
      %s182 = sphi 0, %s168
      %s186 = sphi 0, %s186
      %s188 = sphi 0, %s186
      %s189 = sphi 0, %s188
      %s203 = sphi 0, %s189
      %s207 = sphi 0, %s207
      %s209 = sphi 0, %s207
      %s210 = sphi 0, %s209
      %s224 = sphi 0, %s210
      %s228 = sphi 0, %s228
      %s230 = sphi 0, %s228
      %s231 = sphi 0, %s230
      %s245 = sphi 0, %s231
      %s249 = sphi 0, %s249
      %s251 = sphi 0, %s249
      %s252 = sphi 0, %s251
      %s266 = sphi 0, %s252
      %s274 = sphi 0, %s276
      %s277 = sphi 0, %s274
      %s278 = sphi 0, %s277
      %s294 = sphi 0, %s278
    $region4: #{tpu_custom_call.1} parent=1 // loop_header_branch
      %27 = sbr.rel (%p25) target = $region8
    $region5: #{tpu_custom_call.1} parent=1 // loop_body
      %s29 = ssub.s32 %s24, 1
      %s30 = ssub.s32 %s24, 2
      %s37 = sadd.s32 1, %s32
      %p38 = scmp.ge.s32.totalorder %s37, 1
      %s39 = scalar_select %p38, 0, %s37
      %s40 = sadd.s32 1, %s31
      %s41 = scalar_select %p38, %s40, %s31
      %p42 = scmp.ge.s32.totalorder %s41, 2
      %s43 = scalar_select %p42, 0, %s41
      %s44 = smul.u32 %s32, 16
      %s45 = ssub.s32 %s44, 1
      %p46 = scmp.gt.s32.totalorder %s45, 0
      %s47 = scalar_select %p46, %s45, 0
      %s48 = smul.u32 %s39, 16
      %s49 = ssub.s32 %s48, 1
      %p50 = scmp.gt.s32.totalorder %s49, 0
      %s51 = scalar_select %p50, %s49, 0
      %s52 = ssub.s32 %s31, %s43
      %s53 = ssub.s32 %s47, %s51
      %s54 = sor.u32 %s52, %s53
      %p55 = scmp.eq.s32.totalorder %s54, 0
      %s57 = sadd.s32 %s56, 1
      %s58 = scalar_select %p55, %s56, %s57
      %p61 = pneg %p55
      %p62 = scmp.eq.s32.totalorder %s24, 1
      %p63 = por %p61, %p62
      %p64 = scmp.ne.s32.totalorder %s56, %s59
      %p65 = scmp.eq.s32.totalorder %s24, 0
      %p66 = por %p64, %p65
      %p67 = scmp.ne.s32.totalorder %s56, %s59
      %p68 = scmp.eq.s32.totalorder %s29, 1
      %p69 = por %p67, %p68
      %p70 = scmp.ne.s32.totalorder %s59, %s60
      %p71 = scmp.eq.s32.totalorder %s29, 0
      %p72 = por %p70, %p71
      %p73 = scmp.ne.s32.totalorder %s59, %s60
      %p74 = scmp.eq.s32.totalorder %s30, 1
      %p75 = por %p73, %p74
      %p77 = scmp.ne.s32.totalorder %s60, %s76
      %p78 = scmp.eq.s32.totalorder %s30, 0
      %p79 = por %p77, %p78
      %s80 = ssub.s32 %s31, %s43
      %s81 = ssub.s32 %s32, %s39
      %s82 = sor.u32 %s80, %s81
      %p83 = scmp.eq.s32.totalorder %s82, 0
      %s85 = sadd.s32 %s84, 1
      %s86 = scalar_select %p83, %s84, %s85
      %p89 = pneg %p83
      %p90 = scmp.eq.s32.totalorder %s24, 1
      %p91 = por %p89, %p90
      %p92 = scmp.ne.s32.totalorder %s84, %s87
      %p93 = scmp.eq.s32.totalorder %s24, 0
      %p94 = por %p92, %p93
      %p95 = scmp.ne.s32.totalorder %s84, %s87
      %p96 = scmp.eq.s32.totalorder %s29, 1
      %p97 = por %p95, %p96
      %p98 = scmp.ne.s32.totalorder %s87, %s88
      %p99 = scmp.eq.s32.totalorder %s29, 0
      %p100 = por %p98, %p99
      %p101 = scmp.ne.s32.totalorder %s87, %s88
      %p102 = scmp.eq.s32.totalorder %s30, 1
      %p103 = por %p101, %p102
      %p105 = scmp.ne.s32.totalorder %s88, %s104
      %p106 = scmp.eq.s32.totalorder %s30, 0
      %p107 = por %p105, %p106
      %s108 = smul.u32 %s32, 16
      %s109 = sadd.s32 %s108, 16
      %p110 = scmp.lt.s32.totalorder %s109, 15
      %s111 = scalar_select %p110, %s109, 15
      %s112 = smul.u32 %s39, 16
      %s113 = sadd.s32 %s112, 16
      %p114 = scmp.lt.s32.totalorder %s113, 15
      %s115 = scalar_select %p114, %s113, 15
      %s116 = ssub.s32 %s31, %s43
      %s117 = ssub.s32 %s111, %s115
      %s118 = sor.u32 %s116, %s117
      %p119 = scmp.eq.s32.totalorder %s118, 0
      %s121 = sadd.s32 %s120, 1
      %s122 = scalar_select %p119, %s120, %s121
      %p125 = pneg %p119
      %p126 = scmp.eq.s32.totalorder %s24, 1
      %p127 = por %p125, %p126
      %p128 = scmp.ne.s32.totalorder %s120, %s123
      %p129 = scmp.eq.s32.totalorder %s24, 0
      %p130 = por %p128, %p129
      %p131 = scmp.ne.s32.totalorder %s120, %s123
      %p132 = scmp.eq.s32.totalorder %s29, 1
      %p133 = por %p131, %p132
      %p134 = scmp.ne.s32.totalorder %s123, %s124
      %p135 = scmp.eq.s32.totalorder %s29, 0
      %p136 = por %p134, %p135
      %p137 = scmp.ne.s32.totalorder %s123, %s124
      %p138 = scmp.eq.s32.totalorder %s30, 1
      %p139 = por %p137, %p138
      %p141 = scmp.ne.s32.totalorder %s124, %s140
      %p142 = scmp.eq.s32.totalorder %s30, 0
      %p143 = por %p141, %p142
      %s145 = sadd.s32 %s144, 1
      %p148 = scmp.eq.s32.totalorder %s24, 1
      %p149 = scmp.ne.s32.totalorder %s144, %s146
      %p150 = scmp.eq.s32.totalorder %s24, 0
      %p151 = por %p149, %p150
      %p152 = scmp.ne.s32.totalorder %s144, %s146
      %p153 = scmp.eq.s32.totalorder %s29, 1
      %p154 = por %p152, %p153
      %p155 = scmp.ne.s32.totalorder %s146, %s147
      %p156 = scmp.eq.s32.totalorder %s29, 0
      %p157 = por %p155, %p156
      %p158 = scmp.ne.s32.totalorder %s146, %s147
      %p159 = scmp.eq.s32.totalorder %s30, 1
      %p160 = por %p158, %p159
      %p162 = scmp.ne.s32.totalorder %s147, %s161
      %p163 = scmp.eq.s32.totalorder %s30, 0
      %p164 = por %p162, %p163
      %s166 = sadd.s32 %s165, 1
      %p169 = scmp.eq.s32.totalorder %s24, 1
      %p170 = scmp.ne.s32.totalorder %s165, %s167
      %p171 = scmp.eq.s32.totalorder %s24, 0
      %p172 = por %p170, %p171
      %p173 = scmp.ne.s32.totalorder %s165, %s167
      %p174 = scmp.eq.s32.totalorder %s29, 1
      %p175 = por %p173, %p174
      %p176 = scmp.ne.s32.totalorder %s167, %s168
      %p177 = scmp.eq.s32.totalorder %s29, 0
      %p178 = por %p176, %p177
      %p179 = scmp.ne.s32.totalorder %s167, %s168
      %p180 = scmp.eq.s32.totalorder %s30, 1
      %p181 = por %p179, %p180
      %p183 = scmp.ne.s32.totalorder %s168, %s182
      %p184 = scmp.eq.s32.totalorder %s30, 0
      %p185 = por %p183, %p184
      %s187 = sadd.s32 %s186, 1
      %p190 = scmp.eq.s32.totalorder %s24, 1
      %p191 = scmp.ne.s32.totalorder %s186, %s188
      %p192 = scmp.eq.s32.totalorder %s24, 0
      %p193 = por %p191, %p192
      %p194 = scmp.ne.s32.totalorder %s186, %s188
      %p195 = scmp.eq.s32.totalorder %s29, 1
      %p196 = por %p194, %p195
      %p197 = scmp.ne.s32.totalorder %s188, %s189
      %p198 = scmp.eq.s32.totalorder %s29, 0
      %p199 = por %p197, %p198
      %p200 = scmp.ne.s32.totalorder %s188, %s189
      %p201 = scmp.eq.s32.totalorder %s30, 1
      %p202 = por %p200, %p201
      %p204 = scmp.ne.s32.totalorder %s189, %s203
      %p205 = scmp.eq.s32.totalorder %s30, 0
      %p206 = por %p204, %p205
      %s208 = sadd.s32 %s207, 1
      %p211 = scmp.eq.s32.totalorder %s24, 1
      %p212 = scmp.ne.s32.totalorder %s207, %s209
      %p213 = scmp.eq.s32.totalorder %s24, 0
      %p214 = por %p212, %p213
      %p215 = scmp.ne.s32.totalorder %s207, %s209
      %p216 = scmp.eq.s32.totalorder %s29, 1
      %p217 = por %p215, %p216
      %p218 = scmp.ne.s32.totalorder %s209, %s210
      %p219 = scmp.eq.s32.totalorder %s29, 0
      %p220 = por %p218, %p219
      %p221 = scmp.ne.s32.totalorder %s209, %s210
      %p222 = scmp.eq.s32.totalorder %s30, 1
      %p223 = por %p221, %p222
      %p225 = scmp.ne.s32.totalorder %s210, %s224
      %p226 = scmp.eq.s32.totalorder %s30, 0
      %p227 = por %p225, %p226
      %s229 = sadd.s32 %s228, 1
      %p232 = scmp.eq.s32.totalorder %s24, 1
      %p233 = scmp.ne.s32.totalorder %s228, %s230
      %p234 = scmp.eq.s32.totalorder %s24, 0
      %p235 = por %p233, %p234
      %p236 = scmp.ne.s32.totalorder %s228, %s230
      %p237 = scmp.eq.s32.totalorder %s29, 1
      %p238 = por %p236, %p237
      %p239 = scmp.ne.s32.totalorder %s230, %s231
      %p240 = scmp.eq.s32.totalorder %s29, 0
      %p241 = por %p239, %p240
      %p242 = scmp.ne.s32.totalorder %s230, %s231
      %p243 = scmp.eq.s32.totalorder %s30, 1
      %p244 = por %p242, %p243
      %p246 = scmp.ne.s32.totalorder %s231, %s245
      %p247 = scmp.eq.s32.totalorder %s30, 0
      %p248 = por %p246, %p247
      %s250 = sadd.s32 %s249, 1
      %p253 = scmp.eq.s32.totalorder %s24, 1
      %p254 = scmp.ne.s32.totalorder %s249, %s251
      %p255 = scmp.eq.s32.totalorder %s24, 0
      %p256 = por %p254, %p255
      %p257 = scmp.ne.s32.totalorder %s249, %s251
      %p258 = scmp.eq.s32.totalorder %s29, 1
      %p259 = por %p257, %p258
      %p260 = scmp.ne.s32.totalorder %s251, %s252
      %p261 = scmp.eq.s32.totalorder %s29, 0
      %p262 = por %p260, %p261
      %p263 = scmp.ne.s32.totalorder %s251, %s252
      %p264 = scmp.eq.s32.totalorder %s30, 1
      %p265 = por %p263, %p264
      %p267 = scmp.ne.s32.totalorder %s252, %s266
      %p268 = scmp.eq.s32.totalorder %s30, 0
      %p269 = por %p267, %p268
      %s270 = ssub.s32 %s31, %s43
      %s271 = ssub.s32 %s32, %s39
      %s272 = sor.u32 %s270, %s271
      %p273 = scmp.eq.s32.totalorder %s272, 0
      %s275 = sadd.s32 %s274, 1
      %s276 = scalar_select %p273, %s274, %s275
      %p279 = pneg %p273
      %p280 = scmp.eq.s32.totalorder %s24, 1
      %p281 = por %p279, %p280
      %p282 = scmp.ne.s32.totalorder %s274, %s277
      %p283 = scmp.eq.s32.totalorder %s24, 0
      %p284 = por %p282, %p283
      %p285 = scmp.ne.s32.totalorder %s274, %s277
      %p286 = scmp.eq.s32.totalorder %s29, 1
      %p287 = por %p285, %p286
      %p288 = scmp.ne.s32.totalorder %s277, %s278
      %p289 = scmp.eq.s32.totalorder %s29, 0
      %p290 = por %p288, %p289
      %p291 = scmp.ne.s32.totalorder %s277, %s278
      %p292 = scmp.eq.s32.totalorder %s30, 1
      %p293 = por %p291, %p292
      %p295 = scmp.ne.s32.totalorder %s278, %s294
      %p296 = scmp.eq.s32.totalorder %s30, 0
      %p297 = por %p295, %p296
      %p298 = scmp.le.s32.totalorder 1, %s24
      %p299 = scmp.lt.s32.totalorder %s24, 3
      %p300 = pnand %p298, %p299
      %p301 = pneg %p300
      // Predicated region
      $region9: #{tpu_custom_call.1} parent=5 // pred_check
        _
      $region10: #{tpu_custom_call.1} parent=5 // pred_check_branch
        %303 = sbr.rel (%p300) target = $region12
      $region11: #{tpu_custom_call.1} parent=5 // pred_region
        %s304 = ssub.s32 %s24, 1
        // Predicated region
        $region13: #{tpu_custom_call.1} parent=11 // pred_check
          %p305 = pneg %p157
        $region14: #{tpu_custom_call.1} parent=11 // pred_check_branch
          %307 = sbr.rel (%p305) target = $region16
        $region15: #{tpu_custom_call.1} parent=11 // pred_region
          _
        $region16: #{tpu_custom_call.1} parent=11 // pred_fallthru
          _
        // Predicated region
        $region17: #{tpu_custom_call.1} parent=11 // pred_check
          %p308 = pneg %p178
        $region18: #{tpu_custom_call.1} parent=11 // pred_check_branch
          %310 = sbr.rel (%p308) target = $region20
        $region19: #{tpu_custom_call.1} parent=11 // pred_region
          _
        $region20: #{tpu_custom_call.1} parent=11 // pred_fallthru
          _
        // Predicated region
        $region21: #{tpu_custom_call.1} parent=11 // pred_check
          %p311 = pneg %p199
        $region22: #{tpu_custom_call.1} parent=11 // pred_check_branch
          %313 = sbr.rel (%p311) target = $region24
        $region23: #{tpu_custom_call.1} parent=11 // pred_region
          _
        $region24: #{tpu_custom_call.1} parent=11 // pred_fallthru
          _
        // Predicated region
        $region25: #{tpu_custom_call.1} parent=11 // pred_check
          %p314 = pneg %p220
        $region26: #{tpu_custom_call.1} parent=11 // pred_check_branch
          %316 = sbr.rel (%p314) target = $region28
        $region27: #{tpu_custom_call.1} parent=11 // pred_region
          _
        $region28: #{tpu_custom_call.1} parent=11 // pred_fallthru
          _
        // Predicated region
        $region29: #{tpu_custom_call.1} parent=11 // pred_check
          %p317 = pneg %p241
        $region30: #{tpu_custom_call.1} parent=11 // pred_check_branch
          %319 = sbr.rel (%p317) target = $region32
        $region31: #{tpu_custom_call.1} parent=11 // pred_region
          _
        $region32: #{tpu_custom_call.1} parent=11 // pred_fallthru
          _
        // Predicated region
        $region33: #{tpu_custom_call.1} parent=11 // pred_check
          %p320 = pneg %p262
        $region34: #{tpu_custom_call.1} parent=11 // pred_check_branch
          %322 = sbr.rel (%p320) target = $region36
        $region35: #{tpu_custom_call.1} parent=11 // pred_region
          _
        $region36: #{tpu_custom_call.1} parent=11 // pred_fallthru
          _
      $region12: #{tpu_custom_call.1} parent=5 // pred_fallthru
        _
      %p323 = scmp.lt.s32.totalorder %s24, 2
      // Predicated region
      $region37: #{tpu_custom_call.1} parent=5 // pred_check
        %p324 = pneg %p323
      $region38: #{tpu_custom_call.1} parent=5 // pred_check_branch
        %326 = sbr.rel (%p324) target = $region40
      $region39: #{tpu_custom_call.1} parent=5 // pred_region
        // Predicated region
        $region41: #{tpu_custom_call.1} parent=39 // pred_check
          %p327 = pneg %p66
        $region42: #{tpu_custom_call.1} parent=39 // pred_check_branch
          %329 = sbr.rel (%p327) target = $region44
        $region43: #{tpu_custom_call.1} parent=39 // pred_region
          %s330 = smul.u32 %s32, 16
          %s331 = ssub.s32 %s330, 1
          %p332 = scmp.gt.s32.totalorder %s331, 0
          %s333 = scalar_select %p332, %s331, 0
          %p334 = scmp.lt.s32.totalorder %s31, 1
          %s335 = scalar_select %p334, %s31, 1
          %p336 = scmp.lt.s32.totalorder %s333, 15
          %s337 = scalar_select %p336, %s333, 15
          %s338 = smul.addr %s337, 2
          %s339 = smul.addr %s335, 32
          %s340 = sadd.s32 %s338, %s339
          %s341 = smul.addr %s340, 4
          %s342 = scalar_lea.vmem %s0, %s341
          %s343 = smul.u32 %s32, 16
          %s344 = ssub.s32 %s343, 1
          %p345 = scmp.gt.s32.totalorder %s344, 0
          %s346 = scalar_select %p345, %s344, 0
        $region44: #{tpu_custom_call.1} parent=39 // pred_fallthru
          _
        // Predicated region
        $region45: #{tpu_custom_call.1} parent=39 // pred_check
          %p347 = pneg %p94
        $region46: #{tpu_custom_call.1} parent=39 // pred_check_branch
          %349 = sbr.rel (%p347) target = $region48
        $region47: #{tpu_custom_call.1} parent=39 // pred_region
          %s350 = sand.u32 %s84, 1
          %s351 = scalar_lea.sflag [#allocation3], %s350
          %s352 = sand.u32 %s84, 1
          %s353 = smul.addr %s352, 128
          %s354 = scalar_lea.vmem [#allocation2], %s353
          %s355 = smul.u32 16, %s32
          %s357 = ssub.s32 2048, 2048
          %358 = vsyncadd %s351, %s357
          %s359 = smul.addr %s355, 2
          %s360 = smul.addr %s31, 32
          %s361 = sadd.s32 %s359, %s360
          %s362 = smul.addr %s361, 64
          %s363 = scalar_lea.hbm %s1, %s362
          %s364 = sshll.u32 %s354, 4
          %s365 = int_to_ptr.vmem [resolvable:$true] %s364
          %370 = dma.hbm_to_vmem [thread:$0]  %s363, 2048, %s365, %s351, 64, 64, 4
        $region48: #{tpu_custom_call.1} parent=39 // pred_fallthru
          _
        // Predicated region
        $region49: #{tpu_custom_call.1} parent=39 // pred_check
          %p371 = pneg %p130
        $region50: #{tpu_custom_call.1} parent=39 // pred_check_branch
          %373 = sbr.rel (%p371) target = $region52
        $region51: #{tpu_custom_call.1} parent=39 // pred_region
          %s374 = sand.u32 %s120, 1
          %s375 = scalar_lea.sflag [#allocation6], %s374
          %s376 = sand.u32 %s120, 1
          %s377 = smul.addr %s376, 8
          %s378 = scalar_lea.vmem [#allocation5], %s377
          %s379 = smul.u32 %s32, 16
          %s380 = sadd.s32 %s379, 16
          %p381 = scmp.lt.s32.totalorder %s380, 15
          %s382 = scalar_select %p381, %s380, 15
          %s384 = ssub.s32 128, 128
          %385 = vsyncadd %s375, %s384
          %s386 = smul.addr %s382, 2
          %s387 = smul.addr %s31, 32
          %s388 = sadd.s32 %s386, %s387
          %s389 = smul.addr %s388, 64
          %s390 = scalar_lea.hbm %s2, %s389
          %s391 = sshll.u32 %s378, 4
          %s392 = int_to_ptr.vmem [resolvable:$true] %s391
          %397 = dma.hbm_to_vmem [thread:$0]  %s390, 128, %s392, %s375, 64, 64, 4
        $region52: #{tpu_custom_call.1} parent=39 // pred_fallthru
          _
      $region40: #{tpu_custom_call.1} parent=5 // pred_fallthru
        _
      %p398 = scmp.le.s32.totalorder 1, %s24
      %p399 = scmp.lt.s32.totalorder %s24, 3
      %p400 = pnand %p398, %p399
      %p401 = pneg %p400
      // Predicated region
      $region53: #{tpu_custom_call.1} parent=5 // pred_check
        _
      $region54: #{tpu_custom_call.1} parent=5 // pred_check_branch
        %403 = sbr.rel (%p400) target = $region56
      $region55: #{tpu_custom_call.1} parent=5 // pred_region
        %s404 = ssub.s32 %s24, 1
        %s405 = sand.u32 %s87, 1
        %s406 = scalar_lea.sflag [#allocation3], %s405
        %s407 = sand.u32 %s87, 1
        %s408 = smul.addr %s407, 128
        %s409 = scalar_lea.vmem [#allocation2], %s408
        // Predicated region
        $region57: #{tpu_custom_call.1} parent=55 // pred_check
          %p410 = pneg %p100
        $region58: #{tpu_custom_call.1} parent=55 // pred_check_branch
          %412 = sbr.rel (%p410) target = $region60
        $region59: #{tpu_custom_call.1} parent=55 // pred_region
          %413 = dma.done %s406, 2048
        $region60: #{tpu_custom_call.1} parent=55 // pred_fallthru
          _
        %s414 = sand.u32 %s123, 1
        %s415 = scalar_lea.sflag [#allocation6], %s414
        %s416 = sand.u32 %s123, 1
        %s417 = smul.addr %s416, 8
        %s418 = scalar_lea.vmem [#allocation5], %s417
        // Predicated region
        $region61: #{tpu_custom_call.1} parent=55 // pred_check
          %p419 = pneg %p136
        $region62: #{tpu_custom_call.1} parent=55 // pred_check_branch
          %421 = sbr.rel (%p419) target = $region64
        $region63: #{tpu_custom_call.1} parent=55 // pred_region
          %422 = dma.done %s415, 128
        $region64: #{tpu_custom_call.1} parent=55 // pred_fallthru
          _
        %s423 = smul.u32 %s34, 16
        %s424 = ssub.s32 %s423, 1
        %p425 = scmp.gt.s32.totalorder %s424, 0
        %s426 = scalar_select %p425, %s424, 0
        %p427 = scmp.lt.s32.totalorder %s33, 1
        %s428 = scalar_select %p427, %s33, 1
        %p429 = scmp.lt.s32.totalorder %s426, 15
        %s430 = scalar_select %p429, %s426, 15
        %s431 = smul.addr %s430, 2
        %s432 = smul.addr %s428, 32
        %s433 = sadd.s32 %s431, %s432
        %s434 = smul.addr %s433, 4
        %s435 = scalar_lea.vmem %s0, %s434
        %p436 = pneg %p72
        %p437 = pneg %p69
        %s438 = sand.u32 %s87, 1
        %s439 = scalar_lea.sflag [#allocation3], %s438
        %s440 = sand.u32 %s87, 1
        %s441 = smul.addr %s440, 128
        %s442 = scalar_lea.vmem [#allocation2], %s441
        %p443 = pneg %p100
        %p444 = pneg %p97
        %s445 = sand.u32 %s123, 1
        %s446 = scalar_lea.sflag [#allocation6], %s445
        %s447 = sand.u32 %s123, 1
        %s448 = smul.addr %s447, 8
        %s449 = scalar_lea.vmem [#allocation5], %s448
        %p450 = pneg %p136
        %p451 = pneg %p133
        %p452 = pneg %p157
        %p453 = pneg %p154
        %p454 = pneg %p178
        %p455 = pneg %p175
        %p456 = pneg %p199
        %p457 = pneg %p196
        %p458 = pneg %p220
        %p459 = pneg %p217
        %p460 = pneg %p241
        %p461 = pneg %p238
        %p462 = pneg %p262
        %p463 = pneg %p259
        %p464 = pneg %p290
        %p465 = pneg %p287
        %s466 = sand.u32 %s277, 1
        %s467 = scalar_lea.sflag [#allocation4], %s466
        %s468 = sand.u32 %s277, 1
        %s469 = smul.addr %s468, 128
        %s470 = scalar_lea.vmem [#allocation7], %s469
        %s471 = smul.u32 %s34, 16
        %s472 = ssub.s32 %s471, 1
        %p473 = scmp.gt.s32.totalorder %s472, 0
        %s474 = scalar_select %p473, %s472, 0
        %p475 = scmp.lt.s32.totalorder %s33, 1
        %s476 = scalar_select %p475, %s33, 1
        %p477 = scmp.lt.s32.totalorder %s474, 15
        %s478 = scalar_select %p477, %s474, 15
        %s479 = smul.addr %s478, 2
        %s480 = smul.addr %s476, 32
        %s481 = sadd.s32 %s479, %s480
        %s482 = smul.addr %s481, 4
        %s483 = scalar_lea.vmem %s0, %s482
        %s484 = smul.u32 %s34, 16
        %s485 = ssub.s32 %s484, 1
        %p486 = scmp.gt.s32.totalorder %s485, 0
        %s487 = scalar_select %p486, %s485, 0
        %s488 = smul.u32 16, %s34
        %s489 = smul.u32 %s34, 16
        %s490 = sadd.s32 %s489, 16
        %p491 = scmp.lt.s32.totalorder %s490, 15
        %s492 = scalar_select %p491, %s490, 15
        %s493 = smul.u32 16, %s34
        %v495 = vld [vmem:[%s483] sm:$0xf]
        %v496 = vld [vmem:[%s483 + $0x4] sm:$0xf]
        %v497 = vld [vmem:[%s409] sm:$0xf]
        %v498 = vld [vmem:[%s409 + $0x4] sm:$0xf]
        %v499 = vld [vmem:[%s409 + $0x8] sm:$0xf]
        %v500 = vld [vmem:[%s409 + $0xc] sm:$0xf]
        %v501 = vld [vmem:[%s409 + $0x10] sm:$0xf]
        %v502 = vld [vmem:[%s409 + $0x14] sm:$0xf]
        %v503 = vld [vmem:[%s409 + $0x18] sm:$0xf]
        %v504 = vld [vmem:[%s409 + $0x1c] sm:$0xf]
        %v505 = vld [vmem:[%s409 + $0x20] sm:$0xf]
        %v506 = vld [vmem:[%s409 + $0x24] sm:$0xf]
        %v507 = vld [vmem:[%s409 + $0x28] sm:$0xf]
        %v508 = vld [vmem:[%s409 + $0x2c] sm:$0xf]
        %v509 = vld [vmem:[%s409 + $0x30] sm:$0xf]
        %v510 = vld [vmem:[%s409 + $0x34] sm:$0xf]
        %v511 = vld [vmem:[%s409 + $0x38] sm:$0xf]
        %v512 = vld [vmem:[%s409 + $0x3c] sm:$0xf]
        %v513 = vld [vmem:[%s409 + $0x40] sm:$0xf]
        %v514 = vld [vmem:[%s409 + $0x44] sm:$0xf]
        %v515 = vld [vmem:[%s409 + $0x48] sm:$0xf]
        %v516 = vld [vmem:[%s409 + $0x4c] sm:$0xf]
        %v517 = vld [vmem:[%s409 + $0x50] sm:$0xf]
        %v518 = vld [vmem:[%s409 + $0x54] sm:$0xf]
        %v519 = vld [vmem:[%s409 + $0x58] sm:$0xf]
        %v520 = vld [vmem:[%s409 + $0x5c] sm:$0xf]
        %v521 = vld [vmem:[%s409 + $0x60] sm:$0xf]
        %v522 = vld [vmem:[%s409 + $0x64] sm:$0xf]
        %v523 = vld [vmem:[%s409 + $0x68] sm:$0xf]
        %v524 = vld [vmem:[%s409 + $0x6c] sm:$0xf]
        %v525 = vld [vmem:[%s409 + $0x70] sm:$0xf]
        %v526 = vld [vmem:[%s409 + $0x74] sm:$0xf]
        %v527 = vld [vmem:[%s409 + $0x78] sm:$0xf]
        %v528 = vld [vmem:[%s409 + $0x7c] sm:$0xf]
        %v529 = vld [vmem:[%s418] sm:$0xf]
        %v530 = vld [vmem:[%s418 + $0x4] sm:$0xf]
        %v531 = vld [vmem:[%s3] sm:$0xf]
        %v532 = vld [vmem:[%s3 + $0x4] sm:$0xf]
        %v533 = vld [vmem:[%s3 + $0x8] sm:$0xf]
        %v534 = vld [vmem:[%s3 + $0xc] sm:$0xf]
        %v535 = vld [vmem:[%s3 + $0x10] sm:$0xf]
        %v536 = vld [vmem:[%s3 + $0x14] sm:$0xf]
        %v537 = vld [vmem:[%s3 + $0x18] sm:$0xf]
        %v538 = vld [vmem:[%s3 + $0x1c] sm:$0xf]
        %v539 = vld [vmem:[%s3 + $0x20] sm:$0xf]
        %v540 = vld [vmem:[%s3 + $0x24] sm:$0xf]
        %v541 = vld [vmem:[%s3 + $0x28] sm:$0xf]
        %v542 = vld [vmem:[%s3 + $0x2c] sm:$0xf]
        %v543 = vld [vmem:[%s3 + $0x30] sm:$0xf]
        %v544 = vld [vmem:[%s3 + $0x34] sm:$0xf]
        %v545 = vld [vmem:[%s3 + $0x38] sm:$0xf]
        %v546 = vld [vmem:[%s3 + $0x3c] sm:$0xf]
        %v547 = vld [vmem:[%s4] sm:$0x1]
        %v549 = vlaneseq
        %v550 = vshrl.u32 %v549, 7
        %v551 = vsub.s32 0, %v550
        %v552 = vrot.slane %v547, %v551
        %v590 = vunpack.c.l.b16 %v495
        %v591 = vunpack.c.l.b16 %v496
        %v592 = vunpack.c.l.b16 %v497
        %v593 = vunpack.c.l.b16 %v498
        %v594 = vunpack.c.l.b16 %v499
        %v595 = vunpack.c.l.b16 %v500
        %v596 = vunpack.c.l.b16 %v501
        %v597 = vunpack.c.l.b16 %v502
        %v598 = vunpack.c.l.b16 %v503
        %v599 = vunpack.c.l.b16 %v504
        %v600 = vunpack.c.l.b16 %v505
        %v601 = vunpack.c.l.b16 %v506
        %v602 = vunpack.c.l.b16 %v507
        %v603 = vunpack.c.l.b16 %v508
        %v604 = vunpack.c.l.b16 %v509
        %v605 = vunpack.c.l.b16 %v510
        %v606 = vunpack.c.l.b16 %v511
        %v607 = vunpack.c.l.b16 %v512
        %v608 = vunpack.c.l.b16 %v513
        %v609 = vunpack.c.l.b16 %v514
        %v610 = vunpack.c.l.b16 %v515
        %v611 = vunpack.c.l.b16 %v516
        %v612 = vunpack.c.l.b16 %v517
        %v613 = vunpack.c.l.b16 %v518
        %v614 = vunpack.c.l.b16 %v519
        %v615 = vunpack.c.l.b16 %v520
        %v616 = vunpack.c.l.b16 %v521
        %v617 = vunpack.c.l.b16 %v522
        %v618 = vunpack.c.l.b16 %v523
        %v619 = vunpack.c.l.b16 %v524
        %v620 = vunpack.c.l.b16 %v525
        %v621 = vunpack.c.l.b16 %v526
        %v622 = vunpack.c.l.b16 %v527
        %v623 = vunpack.c.l.b16 %v528
        %v624 = vunpack.c.l.b16 %v529
        %v625 = vunpack.c.l.b16 %v530
        %v626 = vpack.c.b16 %v591, %v590
        %v627 = vpack.c.b16 %v593, %v592
        %v628 = vpack.c.b16 %v595, %v594
        %v629 = vpack.c.b16 %v597, %v596
        %v630 = vpack.c.b16 %v599, %v598
        %v631 = vpack.c.b16 %v601, %v600
        %v632 = vpack.c.b16 %v603, %v602
        %v633 = vpack.c.b16 %v605, %v604
        %v634 = vpack.c.b16 %v607, %v606
        %v635 = vpack.c.b16 %v609, %v608
        %v636 = vpack.c.b16 %v611, %v610
        %v637 = vpack.c.b16 %v613, %v612
        %v638 = vpack.c.b16 %v615, %v614
        %v639 = vpack.c.b16 %v617, %v616
        %v640 = vpack.c.b16 %v619, %v618
        %v641 = vpack.c.b16 %v621, %v620
        %v642 = vpack.c.b16 %v623, %v622
        %v643 = vpack.c.b16 %v625, %v624
        %v678 = vunpack.c.l.b16 %v531
        %v679 = vunpack.c.l.b16 %v532
        %v680 = vunpack.c.l.b16 %v533
        %v681 = vunpack.c.l.b16 %v534
        %v682 = vunpack.c.l.b16 %v535
        %v683 = vunpack.c.l.b16 %v536
        %v684 = vunpack.c.l.b16 %v537
        %v685 = vunpack.c.l.b16 %v538
        %v686 = vunpack.c.l.b16 %v539
        %v687 = vunpack.c.l.b16 %v540
        %v688 = vunpack.c.l.b16 %v541
        %v689 = vunpack.c.l.b16 %v542
        %v690 = vunpack.c.l.b16 %v543
        %v691 = vunpack.c.l.b16 %v544
        %v692 = vunpack.c.l.b16 %v545
        %v693 = vunpack.c.l.b16 %v546
        %v694 = vpack.c.b16 %v679, %v678
        %v695 = vpack.c.b16 %v681, %v680
        %v696 = vpack.c.b16 %v683, %v682
        %v697 = vpack.c.b16 %v685, %v684
        %v698 = vpack.c.b16 %v687, %v686
        %v699 = vpack.c.b16 %v689, %v688
        %v700 = vpack.c.b16 %v691, %v690
        %v701 = vpack.c.b16 %v693, %v692
        %710 = vmatprep.subr.bf16.mxu0 0
        %711 = vmatpush1.bf16.msra.mxu0 %v694
        %712 = vmatprep.subr.bf16.mxu0 0
        %713 = vmatpush1.bf16.msra.mxu0 %v695
        %714 = vmatprep.subr.bf16.mxu0 0
        %715 = vmatpush1.bf16.msra.mxu0 %v696
        %716 = vmatprep.subr.bf16.mxu0 0
        %717 = vmatpush1.bf16.msra.mxu0 %v697
        %718 = vmatprep.subr.bf16.mxu0 0
        %719 = vmatpush1.bf16.msra.mxu0 %v698
        %720 = vmatprep.subr.bf16.mxu0 0
        %721 = vmatpush1.bf16.msra.mxu0 %v699
        %722 = vmatprep.subr.bf16.mxu0 0
        %723 = vmatpush1.bf16.msra.mxu0 %v700
        %724 = vmatprep.subr.bf16.mxu0 0
        %725 = vmatpush1.bf16.msra.mxu0 %v701
        %726 = vmatprep.subr.bf16.mxu0 0
        %727 = vmatpush1.bf16.msra.mxu0 0
        %728 = vmatprep.subr.bf16.mxu0 0
        %729 = vmatpush1.bf16.msra.mxu0 0
        %730 = vmatprep.subr.bf16.mxu0 0
        %731 = vmatpush1.bf16.msra.mxu0 0
        %732 = vmatprep.subr.bf16.mxu0 0
        %733 = vmatpush1.bf16.msra.mxu0 0
        %734 = vmatprep.subr.bf16.mxu0 0
        %735 = vmatpush1.bf16.msra.mxu0 0
        %736 = vmatprep.subr.bf16.mxu0 0
        %737 = vmatpush1.bf16.msra.mxu0 0
        %738 = vmatprep.subr.bf16.mxu0 0
        %739 = vmatpush1.bf16.msra.mxu0 0
        %740 = vmatprep.subr.bf16.mxu0 0
        %741 = vmatpush1.bf16.msra.mxu0 0
        %742 = vmatprep.mubr.bf16.mxu0 0
        %743 = vmatmul.mubr.bf16.gmra.mrb[0].mxu0 %v626
        %v744 = vpop.f32.mrb[0].mxu0
        %v745 = vadd.f32 %v552, %v744
        %v746 = vpop.f32.mrb[0].mxu0
        %v747 = vpop.f32.mrb[0].mxu0
        %v748 = vadd.f32 %v552, %v747
        %v749 = vpop.f32.mrb[0].mxu0
        %750 = vmatprep.mubr.bf16.mxu0 0
        %751 = vmatmul.mubr.bf16.gmra.mrb[0].mxu0 %v627
        %v752 = vpop.f32.mrb[0].mxu0
        %v753 = vadd.f32 %v552, %v752
        %v754 = vpop.f32.mrb[0].mxu0
        %v755 = vpop.f32.mrb[0].mxu0
        %v756 = vadd.f32 %v552, %v755
        %v757 = vpop.f32.mrb[0].mxu0
        %758 = vmatprep.mubr.bf16.mxu0 0
        %759 = vmatmul.mubr.bf16.gmra.mrb[0].mxu0 %v628
        %v760 = vpop.f32.mrb[0].mxu0
        %v761 = vadd.f32 %v552, %v760
        %v762 = vpop.f32.mrb[0].mxu0
        %v763 = vpop.f32.mrb[0].mxu0
        %v764 = vadd.f32 %v552, %v763
        %v765 = vpop.f32.mrb[0].mxu0
        %766 = vmatprep.mubr.bf16.mxu0 0
        %767 = vmatmul.mubr.bf16.gmra.mrb[0].mxu0 %v629
        %v768 = vpop.f32.mrb[0].mxu0
        %v769 = vadd.f32 %v552, %v768
        %v770 = vpop.f32.mrb[0].mxu0
        %v771 = vpop.f32.mrb[0].mxu0
        %v772 = vadd.f32 %v552, %v771
        %v773 = vpop.f32.mrb[0].mxu0
        %774 = vmatprep.mubr.bf16.mxu0 0
        %775 = vmatmul.mubr.bf16.gmra.mrb[0].mxu0 %v630
        %v776 = vpop.f32.mrb[0].mxu0
        %v777 = vadd.f32 %v552, %v776
        %v778 = vpop.f32.mrb[0].mxu0
        %v779 = vpop.f32.mrb[0].mxu0
        %v780 = vadd.f32 %v552, %v779
        %v781 = vpop.f32.mrb[0].mxu0
        %782 = vmatprep.mubr.bf16.mxu0 0
        %783 = vmatmul.mubr.bf16.gmra.mrb[0].mxu0 %v631
        %v784 = vpop.f32.mrb[0].mxu0
        %v785 = vadd.f32 %v552, %v784
        %v786 = vpop.f32.mrb[0].mxu0
        %v787 = vpop.f32.mrb[0].mxu0
        %v788 = vadd.f32 %v552, %v787
        %v789 = vpop.f32.mrb[0].mxu0
        %790 = vmatprep.mubr.bf16.mxu0 0
        %791 = vmatmul.mubr.bf16.gmra.mrb[0].mxu0 %v632
        %v792 = vpop.f32.mrb[0].mxu0
        %v793 = vadd.f32 %v552, %v792
        %v794 = vpop.f32.mrb[0].mxu0
        %v795 = vpop.f32.mrb[0].mxu0
        %v796 = vadd.f32 %v552, %v795
        %v797 = vpop.f32.mrb[0].mxu0
        %798 = vmatprep.mubr.bf16.mxu0 0
        %799 = vmatmul.mubr.bf16.gmra.mrb[0].mxu0 %v633
        %v800 = vpop.f32.mrb[0].mxu0
        %v801 = vadd.f32 %v552, %v800
        %v802 = vpop.f32.mrb[0].mxu0
        %v803 = vpop.f32.mrb[0].mxu0
        %v804 = vadd.f32 %v552, %v803
        %v805 = vpop.f32.mrb[0].mxu0
        %806 = vmatprep.mubr.bf16.mxu0 0
        %807 = vmatmul.mubr.bf16.gmra.mrb[0].mxu0 %v634
        %v808 = vpop.f32.mrb[0].mxu0
        %v809 = vadd.f32 %v552, %v808
        %v810 = vpop.f32.mrb[0].mxu0
        %v811 = vpop.f32.mrb[0].mxu0
        %v812 = vadd.f32 %v552, %v811
        %v813 = vpop.f32.mrb[0].mxu0
        %814 = vmatprep.mubr.bf16.mxu0 0
        %815 = vmatmul.mubr.bf16.gmra.mrb[0].mxu0 %v635
        %v816 = vpop.f32.mrb[0].mxu0
        %v817 = vadd.f32 %v552, %v816
        %v818 = vpop.f32.mrb[0].mxu0
        %v819 = vpop.f32.mrb[0].mxu0
        %v820 = vadd.f32 %v552, %v819
        %v821 = vpop.f32.mrb[0].mxu0
        %822 = vmatprep.mubr.bf16.mxu0 0
        %823 = vmatmul.mubr.bf16.gmra.mrb[0].mxu0 %v636
        %v824 = vpop.f32.mrb[0].mxu0
        %v825 = vadd.f32 %v552, %v824
        %v826 = vpop.f32.mrb[0].mxu0
        %v827 = vpop.f32.mrb[0].mxu0
        %v828 = vadd.f32 %v552, %v827
        %v829 = vpop.f32.mrb[0].mxu0
        %830 = vmatprep.mubr.bf16.mxu0 0
        %831 = vmatmul.mubr.bf16.gmra.mrb[0].mxu0 %v637
        %v832 = vpop.f32.mrb[0].mxu0
        %v833 = vadd.f32 %v552, %v832
        %v834 = vpop.f32.mrb[0].mxu0
        %v835 = vpop.f32.mrb[0].mxu0
        %v836 = vadd.f32 %v552, %v835
        %v837 = vpop.f32.mrb[0].mxu0
        %838 = vmatprep.mubr.bf16.mxu0 0
        %839 = vmatmul.mubr.bf16.gmra.mrb[0].mxu0 %v638
        %v840 = vpop.f32.mrb[0].mxu0
        %v841 = vadd.f32 %v552, %v840
        %v842 = vpop.f32.mrb[0].mxu0
        %v843 = vpop.f32.mrb[0].mxu0
        %v844 = vadd.f32 %v552, %v843
        %v845 = vpop.f32.mrb[0].mxu0
        %846 = vmatprep.mubr.bf16.mxu0 0
        %847 = vmatmul.mubr.bf16.gmra.mrb[0].mxu0 %v639
        %v848 = vpop.f32.mrb[0].mxu0
        %v849 = vadd.f32 %v552, %v848
        %v850 = vpop.f32.mrb[0].mxu0
        %v851 = vpop.f32.mrb[0].mxu0
        %v852 = vadd.f32 %v552, %v851
        %v853 = vpop.f32.mrb[0].mxu0
        %854 = vmatprep.mubr.bf16.mxu0 0
        %855 = vmatmul.mubr.bf16.gmra.mrb[0].mxu0 %v640
        %v856 = vpop.f32.mrb[0].mxu0
        %v857 = vadd.f32 %v552, %v856
        %v858 = vpop.f32.mrb[0].mxu0
        %v859 = vpop.f32.mrb[0].mxu0
        %v860 = vadd.f32 %v552, %v859
        %v861 = vpop.f32.mrb[0].mxu0
        %862 = vmatprep.mubr.bf16.mxu0 0
        %863 = vmatmul.mubr.bf16.gmra.mrb[0].mxu0 %v641
        %v864 = vpop.f32.mrb[0].mxu0
        %v865 = vadd.f32 %v552, %v864
        %v866 = vpop.f32.mrb[0].mxu0
        %v867 = vpop.f32.mrb[0].mxu0
        %v868 = vadd.f32 %v552, %v867
        %v869 = vpop.f32.mrb[0].mxu0
        %870 = vmatprep.mubr.bf16.mxu0 0
        %871 = vmatmul.mubr.bf16.gmra.mrb[0].mxu0 %v642
        %v872 = vpop.f32.mrb[0].mxu0
        %v873 = vadd.f32 %v552, %v872
        %v874 = vpop.f32.mrb[0].mxu0
        %v875 = vpop.f32.mrb[0].mxu0
        %v876 = vadd.f32 %v552, %v875
        %v877 = vpop.f32.mrb[0].mxu0
        %878 = vmatprep.mubr.bf16.mxu0 0
        %879 = vmatmul.mubr.bf16.gmra.mrb[0].mxu0 %v643
        %v880 = vpop.f32.mrb[0].mxu0
        %v881 = vadd.f32 %v552, %v880
        %v882 = vpop.f32.mrb[0].mxu0
        %v883 = vpop.f32.mrb[0].mxu0
        %v884 = vadd.f32 %v552, %v883
        %v885 = vpop.f32.mrb[0].mxu0
        %886 = vdwg.mxu0
        %v887 = vmax.f32 %v745, 0.0
        %v888 = vmax.f32 %v748, 0.0
        %v889 = vmax.f32 %v753, 0.0
        %v890 = vmax.f32 %v756, 0.0
        %v891 = vmax.f32 %v761, 0.0
        %v892 = vmax.f32 %v764, 0.0
        %v893 = vmax.f32 %v769, 0.0
        %v894 = vmax.f32 %v772, 0.0
        %v895 = vmax.f32 %v777, 0.0
        %v896 = vmax.f32 %v780, 0.0
        %v897 = vmax.f32 %v785, 0.0
        %v898 = vmax.f32 %v788, 0.0
        %v899 = vmax.f32 %v793, 0.0
        %v900 = vmax.f32 %v796, 0.0
        %v901 = vmax.f32 %v801, 0.0
        %v902 = vmax.f32 %v804, 0.0
        %v903 = vmax.f32 %v809, 0.0
        %v904 = vmax.f32 %v812, 0.0
        %v905 = vmax.f32 %v817, 0.0
        %v906 = vmax.f32 %v820, 0.0
        %v907 = vmax.f32 %v825, 0.0
        %v908 = vmax.f32 %v828, 0.0
        %v909 = vmax.f32 %v833, 0.0
        %v910 = vmax.f32 %v836, 0.0
        %v911 = vmax.f32 %v841, 0.0
        %v912 = vmax.f32 %v844, 0.0
        %v913 = vmax.f32 %v849, 0.0
        %v914 = vmax.f32 %v852, 0.0
        %v915 = vmax.f32 %v857, 0.0
        %v916 = vmax.f32 %v860, 0.0
        %v917 = vmax.f32 %v865, 0.0
        %v918 = vmax.f32 %v868, 0.0
        %v919 = vmax.f32 %v873, 0.0
        %v920 = vmax.f32 %v876, 0.0
        %v921 = vmax.f32 %v881, 0.0
        %v922 = vmax.f32 %v884, 0.0
        %p923 = scmp.gt.s32.totalorder %s34, 0
        %s924 = scalar_select %p923, 1.0, 0.0
        %p925 = scmp.lt.s32.totalorder %s34, 0
        %s926 = scalar_select %p925, 1.0, 0.0
        %v927 = vstv %s926
        %v928 = vstv %s924
        %v929 = vmul.f32 %v887, %v928
        %v930 = vmul.f32 %v888, %v928
        %v931 = vmul.f32 %v921, %v927
        %v932 = vmul.f32 %v922, %v927
        %v933 = vpack.c.bf16 %v930, %v929
        %v934 = vpack.c.bf16 %v890, %v889
        %v935 = vpack.c.bf16 %v892, %v891
        %v936 = vpack.c.bf16 %v894, %v893
        %v937 = vpack.c.bf16 %v896, %v895
        %v938 = vpack.c.bf16 %v898, %v897
        %v939 = vpack.c.bf16 %v900, %v899
        %v940 = vpack.c.bf16 %v902, %v901
        %v941 = vpack.c.bf16 %v904, %v903
        %v942 = vpack.c.bf16 %v906, %v905
        %v943 = vpack.c.bf16 %v908, %v907
        %v944 = vpack.c.bf16 %v910, %v909
        %v945 = vpack.c.bf16 %v912, %v911
        %v946 = vpack.c.bf16 %v914, %v913
        %v947 = vpack.c.bf16 %v916, %v915
        %v948 = vpack.c.bf16 %v918, %v917
        %v949 = vpack.c.bf16 %v920, %v919
        %v950 = vpack.c.bf16 %v932, %v931
        %v952 = vshrl.u32 %v933, 16
        %v954 = vrot.slane %v952, 7
        %v955 = vshll.u32 %v933, 16
        %v957 = vor.u32 %v954, %v955
        %v959 = vshrl.u32 %v934, 16
        %v961 = vrot.slane %v959, 7
        %v962 = vshll.u32 %v934, 16
        %v964 = vor.u32 %v961, %v962
        %v966 = vshrl.u32 %v935, 16
        %v968 = vrot.slane %v966, 7
        %v969 = vshll.u32 %v935, 16
        %v971 = vor.u32 %v968, %v969
        %v973 = vshrl.u32 %v936, 16
        %v975 = vrot.slane %v973, 7
        %v976 = vshll.u32 %v936, 16
        %v978 = vor.u32 %v975, %v976
        %v980 = vshrl.u32 %v937, 16
        %v982 = vrot.slane %v980, 7
        %v983 = vshll.u32 %v937, 16
        %v985 = vor.u32 %v982, %v983
        %v987 = vshrl.u32 %v938, 16
        %v989 = vrot.slane %v987, 7
        %v990 = vshll.u32 %v938, 16
        %v992 = vor.u32 %v989, %v990
        %v994 = vshrl.u32 %v939, 16
        %v996 = vrot.slane %v994, 7
        %v997 = vshll.u32 %v939, 16
        %v999 = vor.u32 %v996, %v997
        %v1001 = vshrl.u32 %v940, 16
        %v1003 = vrot.slane %v1001, 7
        %v1004 = vshll.u32 %v940, 16
        %v1006 = vor.u32 %v1003, %v1004
        %v1008 = vshrl.u32 %v941, 16
        %v1010 = vrot.slane %v1008, 7
        %v1011 = vshll.u32 %v941, 16
        %v1013 = vor.u32 %v1010, %v1011
        %v1015 = vshrl.u32 %v942, 16
        %v1017 = vrot.slane %v1015, 7
        %v1018 = vshll.u32 %v942, 16
        %v1020 = vor.u32 %v1017, %v1018
        %v1022 = vshrl.u32 %v943, 16
        %v1024 = vrot.slane %v1022, 7
        %v1025 = vshll.u32 %v943, 16
        %v1027 = vor.u32 %v1024, %v1025
        %v1029 = vshrl.u32 %v944, 16
        %v1031 = vrot.slane %v1029, 7
        %v1032 = vshll.u32 %v944, 16
        %v1034 = vor.u32 %v1031, %v1032
        %v1036 = vshrl.u32 %v945, 16
        %v1038 = vrot.slane %v1036, 7
        %v1039 = vshll.u32 %v945, 16
        %v1041 = vor.u32 %v1038, %v1039
        %v1043 = vshrl.u32 %v946, 16
        %v1045 = vrot.slane %v1043, 7
        %v1046 = vshll.u32 %v946, 16
        %v1048 = vor.u32 %v1045, %v1046
        %v1050 = vshrl.u32 %v947, 16
        %v1052 = vrot.slane %v1050, 7
        %v1053 = vshll.u32 %v947, 16
        %v1055 = vor.u32 %v1052, %v1053
        %v1057 = vshrl.u32 %v948, 16
        %v1059 = vrot.slane %v1057, 7
        %v1060 = vshll.u32 %v948, 16
        %v1062 = vor.u32 %v1059, %v1060
        %v1064 = vshrl.u32 %v949, 16
        %v1066 = vrot.slane %v1064, 7
        %v1067 = vshll.u32 %v949, 16
        %v1069 = vor.u32 %v1066, %v1067
        %v1071 = vshrl.u32 %v950, 16
        %v1073 = vrot.slane %v1071, 7
        %v1074 = vshll.u32 %v950, 16
        %v1076 = vor.u32 %v1073, %v1074
        %vm1095 = vcmask 1040384
        %vm1096 = vsmask.f32 256
        %vm1097 = vmand %vm1095, %vm1096
        %v1098 = vsel %vm1097, 0, %v957
        %v1099 = vsel %vm1097, 0, %v964
        %v1100 = vsel %vm1097, 0, %v971
        %v1101 = vsel %vm1097, 0, %v978
        %v1102 = vsel %vm1097, 0, %v985
        %v1103 = vsel %vm1097, 0, %v992
        %v1104 = vsel %vm1097, 0, %v999
        %v1105 = vsel %vm1097, 0, %v1006
        %v1106 = vsel %vm1097, 0, %v1013
        %v1107 = vsel %vm1097, 0, %v1020
        %v1108 = vsel %vm1097, 0, %v1027
        %v1109 = vsel %vm1097, 0, %v1034
        %v1110 = vsel %vm1097, 0, %v1041
        %v1111 = vsel %vm1097, 0, %v1048
        %v1112 = vsel %vm1097, 0, %v1055
        %v1113 = vsel %vm1097, 0, %v1062
        %v1114 = vsel %vm1097, 0, %v1069
        %v1115 = vsel %vm1097, 0, %v1076
        %v1116 = vrot.slane %v955, 1
        %v1117 = vor.u32 %v952, %v1116
        %v1118 = vrot.slane %v962, 1
        %v1119 = vor.u32 %v959, %v1118
        %v1120 = vrot.slane %v969, 1
        %v1121 = vor.u32 %v966, %v1120
        %v1122 = vrot.slane %v976, 1
        %v1123 = vor.u32 %v973, %v1122
        %v1124 = vrot.slane %v983, 1
        %v1125 = vor.u32 %v980, %v1124
        %v1126 = vrot.slane %v990, 1
        %v1127 = vor.u32 %v987, %v1126
        %v1128 = vrot.slane %v997, 1
        %v1129 = vor.u32 %v994, %v1128
        %v1130 = vrot.slane %v1004, 1
        %v1131 = vor.u32 %v1001, %v1130
        %v1132 = vrot.slane %v1011, 1
        %v1133 = vor.u32 %v1008, %v1132
        %v1134 = vrot.slane %v1018, 1
        %v1135 = vor.u32 %v1015, %v1134
        %v1136 = vrot.slane %v1025, 1
        %v1137 = vor.u32 %v1022, %v1136
        %v1138 = vrot.slane %v1032, 1
        %v1139 = vor.u32 %v1029, %v1138
        %v1140 = vrot.slane %v1039, 1
        %v1141 = vor.u32 %v1036, %v1140
        %v1142 = vrot.slane %v1046, 1
        %v1143 = vor.u32 %v1043, %v1142
        %v1144 = vrot.slane %v1053, 1
        %v1145 = vor.u32 %v1050, %v1144
        %v1146 = vrot.slane %v1060, 1
        %v1147 = vor.u32 %v1057, %v1146
        %v1148 = vrot.slane %v1067, 1
        %v1149 = vor.u32 %v1064, %v1148
        %v1150 = vrot.slane %v1074, 1
        %v1151 = vor.u32 %v1071, %v1150
        %vm1170 = vcmask 1047552
        %vm1171 = vsmask.f32 7424
        %vm1172 = vmand %vm1170, %vm1171
        %v1173 = vsel %vm1172, %v1117, 0
        %v1174 = vsel %vm1172, %v1119, 0
        %v1175 = vsel %vm1172, %v1121, 0
        %v1176 = vsel %vm1172, %v1123, 0
        %v1177 = vsel %vm1172, %v1125, 0
        %v1178 = vsel %vm1172, %v1127, 0
        %v1179 = vsel %vm1172, %v1129, 0
        %v1180 = vsel %vm1172, %v1131, 0
        %v1181 = vsel %vm1172, %v1133, 0
        %v1182 = vsel %vm1172, %v1135, 0
        %v1183 = vsel %vm1172, %v1137, 0
        %v1184 = vsel %vm1172, %v1139, 0
        %v1185 = vsel %vm1172, %v1141, 0
        %v1186 = vsel %vm1172, %v1143, 0
        %v1187 = vsel %vm1172, %v1145, 0
        %v1188 = vsel %vm1172, %v1147, 0
        %v1189 = vsel %vm1172, %v1149, 0
        %v1190 = vsel %vm1172, %v1151, 0
        %1209 = vrot.lane.b32.xlu0 %v933, 32
        %v1210 = vpop.permute.xlu0 %1209
        %1211 = vrot.lane.b32.xlu0 %v934, 32
        %v1212 = vpop.permute.xlu0 %1211
        %1213 = vrot.lane.b32.xlu0 %v935, 32
        %v1214 = vpop.permute.xlu0 %1213
        %1215 = vrot.lane.b32.xlu0 %v936, 32
        %v1216 = vpop.permute.xlu0 %1215
        %1217 = vrot.lane.b32.xlu0 %v937, 32
        %v1218 = vpop.permute.xlu0 %1217
        %1219 = vrot.lane.b32.xlu0 %v938, 32
        %v1220 = vpop.permute.xlu0 %1219
        %1221 = vrot.lane.b32.xlu0 %v939, 32
        %v1222 = vpop.permute.xlu0 %1221
        %1223 = vrot.lane.b32.xlu0 %v940, 32
        %v1224 = vpop.permute.xlu0 %1223
        %1225 = vrot.lane.b32.xlu0 %v941, 32
        %v1226 = vpop.permute.xlu0 %1225
        %1227 = vrot.lane.b32.xlu0 %v942, 32
        %v1228 = vpop.permute.xlu0 %1227
        %1229 = vrot.lane.b32.xlu0 %v943, 32
        %v1230 = vpop.permute.xlu0 %1229
        %1231 = vrot.lane.b32.xlu0 %v944, 32
        %v1232 = vpop.permute.xlu0 %1231
        %1233 = vrot.lane.b32.xlu0 %v945, 32
        %v1234 = vpop.permute.xlu0 %1233
        %1235 = vrot.lane.b32.xlu0 %v946, 32
        %v1236 = vpop.permute.xlu0 %1235
        %1237 = vrot.lane.b32.xlu0 %v947, 32
        %v1238 = vpop.permute.xlu0 %1237
        %1239 = vrot.lane.b32.xlu0 %v948, 32
        %v1240 = vpop.permute.xlu0 %1239
        %1241 = vrot.lane.b32.xlu0 %v949, 32
        %v1242 = vpop.permute.xlu0 %1241
        %1243 = vrot.lane.b32.xlu0 %v950, 32
        %v1244 = vpop.permute.xlu0 %1243
        %1263 = vrot.lane.b32.xlu0 %v1173, 64
        %v1264 = vpop.permute.xlu0 %1263
        %1265 = vrot.lane.b32.xlu0 %v1174, 64
        %v1266 = vpop.permute.xlu0 %1265
        %1267 = vrot.lane.b32.xlu0 %v1175, 64
        %v1268 = vpop.permute.xlu0 %1267
        %1269 = vrot.lane.b32.xlu0 %v1176, 64
        %v1270 = vpop.permute.xlu0 %1269
        %1271 = vrot.lane.b32.xlu0 %v1177, 64
        %v1272 = vpop.permute.xlu0 %1271
        %1273 = vrot.lane.b32.xlu0 %v1178, 64
        %v1274 = vpop.permute.xlu0 %1273
        %1275 = vrot.lane.b32.xlu0 %v1179, 64
        %v1276 = vpop.permute.xlu0 %1275
        %1277 = vrot.lane.b32.xlu0 %v1180, 64
        %v1278 = vpop.permute.xlu0 %1277
        %1279 = vrot.lane.b32.xlu0 %v1181, 64
        %v1280 = vpop.permute.xlu0 %1279
        %1281 = vrot.lane.b32.xlu0 %v1182, 64
        %v1282 = vpop.permute.xlu0 %1281
        %1283 = vrot.lane.b32.xlu0 %v1183, 64
        %v1284 = vpop.permute.xlu0 %1283
        %1285 = vrot.lane.b32.xlu0 %v1184, 64
        %v1286 = vpop.permute.xlu0 %1285
        %1287 = vrot.lane.b32.xlu0 %v1185, 64
        %v1288 = vpop.permute.xlu0 %1287
        %1289 = vrot.lane.b32.xlu0 %v1186, 64
        %v1290 = vpop.permute.xlu0 %1289
        %1291 = vrot.lane.b32.xlu0 %v1187, 64
        %v1292 = vpop.permute.xlu0 %1291
        %1293 = vrot.lane.b32.xlu0 %v1188, 64
        %v1294 = vpop.permute.xlu0 %1293
        %1295 = vrot.lane.b32.xlu0 %v1189, 64
        %v1296 = vpop.permute.xlu0 %1295
        %1297 = vrot.lane.b32.xlu0 %v1190, 64
        %v1298 = vpop.permute.xlu0 %1297
        %vm1299 = vcmask 261120
        %v1302 = vsel %vm1299, %v1098, %v1210
        %v1305 = vsel %vm1299, %v1099, %v1212
        %v1308 = vsel %vm1299, %v1100, %v1214
        %v1311 = vsel %vm1299, %v1101, %v1216
        %v1314 = vsel %vm1299, %v1102, %v1218
        %v1317 = vsel %vm1299, %v1103, %v1220
        %v1320 = vsel %vm1299, %v1104, %v1222
        %v1323 = vsel %vm1299, %v1105, %v1224
        %v1326 = vsel %vm1299, %v1106, %v1226
        %v1329 = vsel %vm1299, %v1107, %v1228
        %v1332 = vsel %vm1299, %v1108, %v1230
        %v1335 = vsel %vm1299, %v1109, %v1232
        %v1338 = vsel %vm1299, %v1110, %v1234
        %v1341 = vsel %vm1299, %v1111, %v1236
        %v1344 = vsel %vm1299, %v1112, %v1238
        %v1347 = vsel %vm1299, %v1113, %v1240
        %v1350 = vsel %vm1299, %v1114, %v1242
        %v1353 = vsel %vm1299, %v1115, %v1244
        %vm1354 = vcmask 523264
        %v1356 = vsel %vm1354, %v1302, %v1264
        %v1358 = vsel %vm1354, %v1305, %v1266
        %v1360 = vsel %vm1354, %v1308, %v1268
        %v1362 = vsel %vm1354, %v1311, %v1270
        %v1364 = vsel %vm1354, %v1314, %v1272
        %v1366 = vsel %vm1354, %v1317, %v1274
        %v1368 = vsel %vm1354, %v1320, %v1276
        %v1370 = vsel %vm1354, %v1323, %v1278
        %v1372 = vsel %vm1354, %v1326, %v1280
        %v1374 = vsel %vm1354, %v1329, %v1282
        %v1376 = vsel %vm1354, %v1332, %v1284
        %v1378 = vsel %vm1354, %v1335, %v1286
        %v1380 = vsel %vm1354, %v1338, %v1288
        %v1382 = vsel %vm1354, %v1341, %v1290
        %v1384 = vsel %vm1354, %v1344, %v1292
        %v1386 = vsel %vm1354, %v1347, %v1294
        %v1388 = vsel %vm1354, %v1350, %v1296
        %v1390 = vsel %vm1354, %v1353, %v1298
        %1407 = vrot.lane.b32.xlu0 %v1358, 96
        %v1408 = vpop.permute.xlu0 %1407
        %1409 = vrot.lane.b32.xlu0 %v1360, 96
        %v1410 = vpop.permute.xlu0 %1409
        %1411 = vrot.lane.b32.xlu0 %v1362, 96
        %v1412 = vpop.permute.xlu0 %1411
        %1413 = vrot.lane.b32.xlu0 %v1364, 96
        %v1414 = vpop.permute.xlu0 %1413
        %1415 = vrot.lane.b32.xlu0 %v1366, 96
        %v1416 = vpop.permute.xlu0 %1415
        %1417 = vrot.lane.b32.xlu0 %v1368, 96
        %v1418 = vpop.permute.xlu0 %1417
        %1419 = vrot.lane.b32.xlu0 %v1370, 96
        %v1420 = vpop.permute.xlu0 %1419
        %1421 = vrot.lane.b32.xlu0 %v1372, 96
        %v1422 = vpop.permute.xlu0 %1421
        %1423 = vrot.lane.b32.xlu0 %v1374, 96
        %v1424 = vpop.permute.xlu0 %1423
        %1425 = vrot.lane.b32.xlu0 %v1376, 96
        %v1426 = vpop.permute.xlu0 %1425
        %1427 = vrot.lane.b32.xlu0 %v1378, 96
        %v1428 = vpop.permute.xlu0 %1427
        %1429 = vrot.lane.b32.xlu0 %v1380, 96
        %v1430 = vpop.permute.xlu0 %1429
        %1431 = vrot.lane.b32.xlu0 %v1382, 96
        %v1432 = vpop.permute.xlu0 %1431
        %1433 = vrot.lane.b32.xlu0 %v1384, 96
        %v1434 = vpop.permute.xlu0 %1433
        %1435 = vrot.lane.b32.xlu0 %v1386, 96
        %v1436 = vpop.permute.xlu0 %1435
        %1437 = vrot.lane.b32.xlu0 %v1388, 96
        %v1438 = vpop.permute.xlu0 %1437
        %1440 = vrot.lane.b32.xlu0 %v1360, 64
        %v1441 = vpop.permute.xlu0 %1440
        %1442 = vrot.lane.b32.xlu0 %v1362, 64
        %v1443 = vpop.permute.xlu0 %1442
        %1444 = vrot.lane.b32.xlu0 %v1364, 64
        %v1445 = vpop.permute.xlu0 %1444
        %1446 = vrot.lane.b32.xlu0 %v1366, 64
        %v1447 = vpop.permute.xlu0 %1446
        %1448 = vrot.lane.b32.xlu0 %v1368, 64
        %v1449 = vpop.permute.xlu0 %1448
        %1450 = vrot.lane.b32.xlu0 %v1370, 64
        %v1451 = vpop.permute.xlu0 %1450
        %1452 = vrot.lane.b32.xlu0 %v1372, 64
        %v1453 = vpop.permute.xlu0 %1452
        %1454 = vrot.lane.b32.xlu0 %v1374, 64
        %v1455 = vpop.permute.xlu0 %1454
        %1456 = vrot.lane.b32.xlu0 %v1376, 64
        %v1457 = vpop.permute.xlu0 %1456
        %1458 = vrot.lane.b32.xlu0 %v1378, 64
        %v1459 = vpop.permute.xlu0 %1458
        %1460 = vrot.lane.b32.xlu0 %v1380, 64
        %v1461 = vpop.permute.xlu0 %1460
        %1462 = vrot.lane.b32.xlu0 %v1382, 64
        %v1463 = vpop.permute.xlu0 %1462
        %1464 = vrot.lane.b32.xlu0 %v1384, 64
        %v1465 = vpop.permute.xlu0 %1464
        %1466 = vrot.lane.b32.xlu0 %v1386, 64
        %v1467 = vpop.permute.xlu0 %1466
        %1468 = vrot.lane.b32.xlu0 %v1388, 64
        %v1469 = vpop.permute.xlu0 %1468
        %1470 = vrot.lane.b32.xlu0 %v1390, 64
        %v1471 = vpop.permute.xlu0 %1470
        %vm1472 = vcmask 785408
        %v1474 = vsel %vm1472, %v1356, %v1408
        %v1477 = vsel %vm1472, %v1358, %v1410
        %v1480 = vsel %vm1472, %v1360, %v1412
        %v1483 = vsel %vm1472, %v1362, %v1414
        %v1486 = vsel %vm1472, %v1364, %v1416
        %v1489 = vsel %vm1472, %v1366, %v1418
        %v1492 = vsel %vm1472, %v1368, %v1420
        %v1495 = vsel %vm1472, %v1370, %v1422
        %v1498 = vsel %vm1472, %v1372, %v1424
        %v1501 = vsel %vm1472, %v1374, %v1426
        %v1504 = vsel %vm1472, %v1376, %v1428
        %v1507 = vsel %vm1472, %v1378, %v1430
        %v1510 = vsel %vm1472, %v1380, %v1432
        %v1513 = vsel %vm1472, %v1382, %v1434
        %v1516 = vsel %vm1472, %v1384, %v1436
        %v1519 = vsel %vm1472, %v1386, %v1438
        %v1522 = vsel %vm1354, %v1408, %v1441
        %v1525 = vsel %vm1354, %v1410, %v1443
        %v1528 = vsel %vm1354, %v1412, %v1445
        %v1531 = vsel %vm1354, %v1414, %v1447
        %v1534 = vsel %vm1354, %v1416, %v1449
        %v1537 = vsel %vm1354, %v1418, %v1451
        %v1540 = vsel %vm1354, %v1420, %v1453
        %v1543 = vsel %vm1354, %v1422, %v1455
        %v1546 = vsel %vm1354, %v1424, %v1457
        %v1549 = vsel %vm1354, %v1426, %v1459
        %v1552 = vsel %vm1354, %v1428, %v1461
        %v1555 = vsel %vm1354, %v1430, %v1463
        %v1558 = vsel %vm1354, %v1432, %v1465
        %v1561 = vsel %vm1354, %v1434, %v1467
        %v1564 = vsel %vm1354, %v1436, %v1469
        %v1567 = vsel %vm1354, %v1438, %v1471
        %v1569 = vld [vmem:[%s5] sm:$0xf]
        %v1570 = vld [vmem:[%s5 + $0x4] sm:$0xf]
        %v1571 = vld [vmem:[%s5 + $0x8] sm:$0xf]
        %v1572 = vld [vmem:[%s5 + $0xc] sm:$0xf]
        %v1573 = vld [vmem:[%s5 + $0x10] sm:$0xf]
        %v1574 = vld [vmem:[%s5 + $0x14] sm:$0xf]
        %v1575 = vld [vmem:[%s5 + $0x18] sm:$0xf]
        %v1576 = vld [vmem:[%s5 + $0x1c] sm:$0xf]
        %v1577 = vld [vmem:[%s5 + $0x20] sm:$0xf]
        %v1578 = vld [vmem:[%s5 + $0x24] sm:$0xf]
        %v1579 = vld [vmem:[%s5 + $0x28] sm:$0xf]
        %v1580 = vld [vmem:[%s5 + $0x2c] sm:$0xf]
        %v1581 = vld [vmem:[%s5 + $0x30] sm:$0xf]
        %v1582 = vld [vmem:[%s5 + $0x34] sm:$0xf]
        %v1583 = vld [vmem:[%s5 + $0x38] sm:$0xf]
        %v1584 = vld [vmem:[%s5 + $0x3c] sm:$0xf]
        %v1585 = vld [vmem:[%s5 + $0x40] sm:$0xf]
        %v1586 = vld [vmem:[%s5 + $0x44] sm:$0xf]
        %v1587 = vld [vmem:[%s5 + $0x48] sm:$0xf]
        %v1588 = vld [vmem:[%s5 + $0x4c] sm:$0xf]
        %v1589 = vld [vmem:[%s5 + $0x50] sm:$0xf]
        %v1590 = vld [vmem:[%s5 + $0x54] sm:$0xf]
        %v1591 = vld [vmem:[%s5 + $0x58] sm:$0xf]
        %v1592 = vld [vmem:[%s5 + $0x5c] sm:$0xf]
        %v1593 = vld [vmem:[%s5 + $0x60] sm:$0xf]
        %v1594 = vld [vmem:[%s5 + $0x64] sm:$0xf]
        %v1595 = vld [vmem:[%s5 + $0x68] sm:$0xf]
        %v1596 = vld [vmem:[%s5 + $0x6c] sm:$0xf]
        %v1597 = vld [vmem:[%s5 + $0x70] sm:$0xf]
        %v1598 = vld [vmem:[%s5 + $0x74] sm:$0xf]
        %v1599 = vld [vmem:[%s5 + $0x78] sm:$0xf]
        %v1600 = vld [vmem:[%s5 + $0x7c] sm:$0xf]
        %v1601 = vld [vmem:[%s5 + $0x80] sm:$0xf]
        %v1602 = vld [vmem:[%s5 + $0x84] sm:$0xf]
        %v1603 = vld [vmem:[%s5 + $0x88] sm:$0xf]
        %v1604 = vld [vmem:[%s5 + $0x8c] sm:$0xf]
        %v1605 = vld [vmem:[%s6] sm:$0x1]
        %v1607 = vlaneseq
        %v1608 = vshrl.u32 %v1607, 7
        %v1609 = vsub.s32 0, %v1608
        %v1610 = vrot.slane %v1605, %v1609
        %v1648 = vunpack.c.l.b16 %v1569
        %v1649 = vunpack.c.l.b16 %v1570
        %v1650 = vunpack.c.l.b16 %v1571
        %v1651 = vunpack.c.l.b16 %v1572
        %v1652 = vunpack.c.l.b16 %v1573
        %v1653 = vunpack.c.l.b16 %v1574
        %v1654 = vunpack.c.l.b16 %v1575
        %v1655 = vunpack.c.l.b16 %v1576
        %v1656 = vunpack.c.l.b16 %v1577
        %v1657 = vunpack.c.l.b16 %v1578
        %v1658 = vunpack.c.l.b16 %v1579
        %v1659 = vunpack.c.l.b16 %v1580
        %v1660 = vunpack.c.l.b16 %v1581
        %v1661 = vunpack.c.l.b16 %v1582
        %v1662 = vunpack.c.l.b16 %v1583
        %v1663 = vunpack.c.l.b16 %v1584
        %v1664 = vunpack.c.l.b16 %v1585
        %v1665 = vunpack.c.l.b16 %v1586
        %v1666 = vunpack.c.l.b16 %v1587
        %v1667 = vunpack.c.l.b16 %v1588
        %v1668 = vunpack.c.l.b16 %v1589
        %v1669 = vunpack.c.l.b16 %v1590
        %v1670 = vunpack.c.l.b16 %v1591
        %v1671 = vunpack.c.l.b16 %v1592
        %v1672 = vunpack.c.l.b16 %v1593
        %v1673 = vunpack.c.l.b16 %v1594
        %v1674 = vunpack.c.l.b16 %v1595
        %v1675 = vunpack.c.l.b16 %v1596
        %v1676 = vunpack.c.l.b16 %v1597
        %v1677 = vunpack.c.l.b16 %v1598
        %v1678 = vunpack.c.l.b16 %v1599
        %v1679 = vunpack.c.l.b16 %v1600
        %v1680 = vunpack.c.l.b16 %v1601
        %v1681 = vunpack.c.l.b16 %v1602
        %v1682 = vunpack.c.l.b16 %v1603
        %v1683 = vunpack.c.l.b16 %v1604
        %v1684 = vpack.c.b16 %v1649, %v1648
        %v1685 = vpack.c.b16 %v1651, %v1650
        %v1686 = vpack.c.b16 %v1653, %v1652
        %v1687 = vpack.c.b16 %v1655, %v1654
        %v1688 = vpack.c.b16 %v1657, %v1656
        %v1689 = vpack.c.b16 %v1659, %v1658
        %v1690 = vpack.c.b16 %v1661, %v1660
        %v1691 = vpack.c.b16 %v1663, %v1662
        %v1692 = vpack.c.b16 %v1665, %v1664
        %v1693 = vpack.c.b16 %v1667, %v1666
        %v1694 = vpack.c.b16 %v1669, %v1668
        %v1695 = vpack.c.b16 %v1671, %v1670
        %v1696 = vpack.c.b16 %v1673, %v1672
        %v1697 = vpack.c.b16 %v1675, %v1674
        %v1698 = vpack.c.b16 %v1677, %v1676
        %v1699 = vpack.c.b16 %v1679, %v1678
        %v1700 = vpack.c.b16 %v1681, %v1680
        %v1701 = vpack.c.b16 %v1683, %v1682
        %v1720 = vsel %vm1299, %v1441, 0
        %v1722 = vsel %vm1299, %v1443, 0
        %v1724 = vsel %vm1299, %v1445, 0
        %v1726 = vsel %vm1299, %v1447, 0
        %v1728 = vsel %vm1299, %v1449, 0
        %v1730 = vsel %vm1299, %v1451, 0
        %v1732 = vsel %vm1299, %v1453, 0
        %v1734 = vsel %vm1299, %v1455, 0
        %v1736 = vsel %vm1299, %v1457, 0
        %v1738 = vsel %vm1299, %v1459, 0
        %v1740 = vsel %vm1299, %v1461, 0
        %v1742 = vsel %vm1299, %v1463, 0
        %v1744 = vsel %vm1299, %v1465, 0
        %v1746 = vsel %vm1299, %v1467, 0
        %v1748 = vsel %vm1299, %v1469, 0
        %v1750 = vsel %vm1299, %v1471, 0
        %1752 = vmatprep.subr.bf16.mxu0 0
        %1753 = vmatpush1.bf16.msra.mxu0 %v1684
        %1754 = vmatprep.subr.bf16.mxu0 0
        %1755 = vmatpush1.bf16.msra.mxu0 %v1685
        %1756 = vmatprep.subr.bf16.mxu0 0
        %1757 = vmatpush1.bf16.msra.mxu0 %v1686
        %1758 = vmatprep.subr.bf16.mxu0 0
        %1759 = vmatpush1.bf16.msra.mxu0 %v1687
        %1760 = vmatprep.subr.bf16.mxu0 0
        %1761 = vmatpush1.bf16.msra.mxu0 %v1688
        %1762 = vmatprep.subr.bf16.mxu0 0
        %1763 = vmatpush1.bf16.msra.mxu0 %v1689
        %1764 = vmatprep.subr.bf16.mxu0 0
        %1765 = vmatpush1.bf16.msra.mxu0 %v1690
        %1766 = vmatprep.subr.bf16.mxu0 0
        %1767 = vmatpush1.bf16.msra.mxu0 %v1691
        %1768 = vmatprep.subr.bf16.mxu0 0
        %1769 = vmatpush1.bf16.msra.mxu0 %v1692
        %1770 = vmatprep.subr.bf16.mxu0 0
        %1771 = vmatpush1.bf16.msra.mxu0 %v1693
        %1772 = vmatprep.subr.bf16.mxu0 0
        %1773 = vmatpush1.bf16.msra.mxu0 %v1694
        %1774 = vmatprep.subr.bf16.mxu0 0
        %1775 = vmatpush1.bf16.msra.mxu0 %v1695
        %1776 = vmatprep.subr.bf16.mxu0 0
        %1777 = vmatpush1.bf16.msra.mxu0 %v1696
        %1778 = vmatprep.subr.bf16.mxu0 0
        %1779 = vmatpush1.bf16.msra.mxu0 %v1697
        %1780 = vmatprep.subr.bf16.mxu0 0
        %1781 = vmatpush1.bf16.msra.mxu0 %v1698
        %1782 = vmatprep.subr.bf16.mxu0 0
        %1783 = vmatpush1.bf16.msra.mxu0 %v1699
        %1784 = vmatprep.mubr.bf16.mxu0 %v1522
        %1785 = vmatmul.mubr.bf16.gmra.mrb[0].mxu0 %v1474
        %v1786 = vpop.f32.mrb[0].mxu0
        %v1787 = vadd.f32 %v1610, %v1786
        %v1788 = vpop.f32.mrb[0].mxu0
        %v1789 = vpop.f32.mrb[0].mxu0
        %v1790 = vadd.f32 %v1610, %v1789
        %v1791 = vpop.f32.mrb[0].mxu0
        %1792 = vmatprep.mubr.bf16.mxu0 %v1525
        %1793 = vmatmul.mubr.bf16.gmra.mrb[0].mxu0 %v1477
        %v1794 = vpop.f32.mrb[0].mxu0
        %v1795 = vadd.f32 %v1610, %v1794
        %v1796 = vpop.f32.mrb[0].mxu0
        %v1797 = vpop.f32.mrb[0].mxu0
        %v1798 = vadd.f32 %v1610, %v1797
        %v1799 = vpop.f32.mrb[0].mxu0
        %1800 = vmatprep.mubr.bf16.mxu0 %v1528
        %1801 = vmatmul.mubr.bf16.gmra.mrb[0].mxu0 %v1480
        %v1802 = vpop.f32.mrb[0].mxu0
        %v1803 = vadd.f32 %v1610, %v1802
        %v1804 = vpop.f32.mrb[0].mxu0
        %v1805 = vpop.f32.mrb[0].mxu0
        %v1806 = vadd.f32 %v1610, %v1805
        %v1807 = vpop.f32.mrb[0].mxu0
        %1808 = vmatprep.mubr.bf16.mxu0 %v1531
        %1809 = vmatmul.mubr.bf16.gmra.mrb[0].mxu0 %v1483
        %v1810 = vpop.f32.mrb[0].mxu0
        %v1811 = vadd.f32 %v1610, %v1810
        %v1812 = vpop.f32.mrb[0].mxu0
        %v1813 = vpop.f32.mrb[0].mxu0
        %v1814 = vadd.f32 %v1610, %v1813
        %v1815 = vpop.f32.mrb[0].mxu0
        %1816 = vmatprep.mubr.bf16.mxu0 %v1534
        %1817 = vmatmul.mubr.bf16.gmra.mrb[0].mxu0 %v1486
        %v1818 = vpop.f32.mrb[0].mxu0
        %v1819 = vadd.f32 %v1610, %v1818
        %v1820 = vpop.f32.mrb[0].mxu0
        %v1821 = vpop.f32.mrb[0].mxu0
        %v1822 = vadd.f32 %v1610, %v1821
        %v1823 = vpop.f32.mrb[0].mxu0
        %1824 = vmatprep.mubr.bf16.mxu0 %v1537
        %1825 = vmatmul.mubr.bf16.gmra.mrb[0].mxu0 %v1489
        %v1826 = vpop.f32.mrb[0].mxu0
        %v1827 = vadd.f32 %v1610, %v1826
        %v1828 = vpop.f32.mrb[0].mxu0
        %v1829 = vpop.f32.mrb[0].mxu0
        %v1830 = vadd.f32 %v1610, %v1829
        %v1831 = vpop.f32.mrb[0].mxu0
        %1832 = vmatprep.mubr.bf16.mxu0 %v1540
        %1833 = vmatmul.mubr.bf16.gmra.mrb[0].mxu0 %v1492
        %v1834 = vpop.f32.mrb[0].mxu0
        %v1835 = vadd.f32 %v1610, %v1834
        %v1836 = vpop.f32.mrb[0].mxu0
        %v1837 = vpop.f32.mrb[0].mxu0
        %v1838 = vadd.f32 %v1610, %v1837
        %v1839 = vpop.f32.mrb[0].mxu0
        %1840 = vmatprep.mubr.bf16.mxu0 %v1543
        %1841 = vmatmul.mubr.bf16.gmra.mrb[0].mxu0 %v1495
        %v1842 = vpop.f32.mrb[0].mxu0
        %v1843 = vadd.f32 %v1610, %v1842
        %v1844 = vpop.f32.mrb[0].mxu0
        %v1845 = vpop.f32.mrb[0].mxu0
        %v1846 = vadd.f32 %v1610, %v1845
        %v1847 = vpop.f32.mrb[0].mxu0
        %1848 = vmatprep.mubr.bf16.mxu0 %v1546
        %1849 = vmatmul.mubr.bf16.gmra.mrb[0].mxu0 %v1498
        %v1850 = vpop.f32.mrb[0].mxu0
        %v1851 = vadd.f32 %v1610, %v1850
        %v1852 = vpop.f32.mrb[0].mxu0
        %v1853 = vpop.f32.mrb[0].mxu0
        %v1854 = vadd.f32 %v1610, %v1853
        %v1855 = vpop.f32.mrb[0].mxu0
        %1856 = vmatprep.mubr.bf16.mxu0 %v1549
        %1857 = vmatmul.mubr.bf16.gmra.mrb[0].mxu0 %v1501
        %v1858 = vpop.f32.mrb[0].mxu0
        %v1859 = vadd.f32 %v1610, %v1858
        %v1860 = vpop.f32.mrb[0].mxu0
        %v1861 = vpop.f32.mrb[0].mxu0
        %v1862 = vadd.f32 %v1610, %v1861
        %v1863 = vpop.f32.mrb[0].mxu0
        %1864 = vmatprep.mubr.bf16.mxu0 %v1552
        %1865 = vmatmul.mubr.bf16.gmra.mrb[0].mxu0 %v1504
        %v1866 = vpop.f32.mrb[0].mxu0
        %v1867 = vadd.f32 %v1610, %v1866
        %v1868 = vpop.f32.mrb[0].mxu0
        %v1869 = vpop.f32.mrb[0].mxu0
        %v1870 = vadd.f32 %v1610, %v1869
        %v1871 = vpop.f32.mrb[0].mxu0
        %1872 = vmatprep.mubr.bf16.mxu0 %v1555
        %1873 = vmatmul.mubr.bf16.gmra.mrb[0].mxu0 %v1507
        %v1874 = vpop.f32.mrb[0].mxu0
        %v1875 = vadd.f32 %v1610, %v1874
        %v1876 = vpop.f32.mrb[0].mxu0
        %v1877 = vpop.f32.mrb[0].mxu0
        %v1878 = vadd.f32 %v1610, %v1877
        %v1879 = vpop.f32.mrb[0].mxu0
        %1880 = vmatprep.mubr.bf16.mxu0 %v1558
        %1881 = vmatmul.mubr.bf16.gmra.mrb[0].mxu0 %v1510
        %v1882 = vpop.f32.mrb[0].mxu0
        %v1883 = vadd.f32 %v1610, %v1882
        %v1884 = vpop.f32.mrb[0].mxu0
        %v1885 = vpop.f32.mrb[0].mxu0
        %v1886 = vadd.f32 %v1610, %v1885
        %v1887 = vpop.f32.mrb[0].mxu0
        %1888 = vmatprep.mubr.bf16.mxu0 %v1561
        %1889 = vmatmul.mubr.bf16.gmra.mrb[0].mxu0 %v1513
        %v1890 = vpop.f32.mrb[0].mxu0
        %v1891 = vadd.f32 %v1610, %v1890
        %v1892 = vpop.f32.mrb[0].mxu0
        %v1893 = vpop.f32.mrb[0].mxu0
        %v1894 = vadd.f32 %v1610, %v1893
        %v1895 = vpop.f32.mrb[0].mxu0
        %1896 = vmatprep.mubr.bf16.mxu0 %v1564
        %1897 = vmatmul.mubr.bf16.gmra.mrb[0].mxu0 %v1516
        %v1898 = vpop.f32.mrb[0].mxu0
        %v1899 = vadd.f32 %v1610, %v1898
        %v1900 = vpop.f32.mrb[0].mxu0
        %v1901 = vpop.f32.mrb[0].mxu0
        %v1902 = vadd.f32 %v1610, %v1901
        %v1903 = vpop.f32.mrb[0].mxu0
        %1904 = vmatprep.mubr.bf16.mxu0 %v1567
        %1905 = vmatmul.mubr.bf16.gmra.mrb[0].mxu0 %v1519
        %v1906 = vpop.f32.mrb[0].mxu0
        %v1907 = vadd.f32 %v1610, %v1906
        %v1908 = vpop.f32.mrb[0].mxu0
        %v1909 = vpop.f32.mrb[0].mxu0
        %v1910 = vadd.f32 %v1610, %v1909
        %v1911 = vpop.f32.mrb[0].mxu0
        %1912 = vdwg.mxu0
        %1913 = vmatprep.subr.bf16.mxu0 0
        %1914 = vmatpush1.bf16.msra.mxu0 %v1700
        %1915 = vmatprep.subr.bf16.mxu0 0
        %1916 = vmatpush1.bf16.msra.mxu0 %v1701
        %1917 = vmatprep.subr.bf16.mxu0 0
        %1918 = vmatpush1.bf16.msra.mxu0 0
        %1919 = vmatprep.subr.bf16.mxu0 0
        %1920 = vmatpush1.bf16.msra.mxu0 0
        %1921 = vmatprep.subr.bf16.mxu0 0
        %1922 = vmatpush1.bf16.msra.mxu0 0
        %1923 = vmatprep.subr.bf16.mxu0 0
        %1924 = vmatpush1.bf16.msra.mxu0 0
        %1925 = vmatprep.subr.bf16.mxu0 0
        %1926 = vmatpush1.bf16.msra.mxu0 0
        %1927 = vmatprep.subr.bf16.mxu0 0
        %1928 = vmatpush1.bf16.msra.mxu0 0
        %1929 = vmatprep.subr.bf16.mxu0 0
        %1930 = vmatpush1.bf16.msra.mxu0 0
        %1931 = vmatprep.subr.bf16.mxu0 0
        %1932 = vmatpush1.bf16.msra.mxu0 0
        %1933 = vmatprep.subr.bf16.mxu0 0
        %1934 = vmatpush1.bf16.msra.mxu0 0
        %1935 = vmatprep.subr.bf16.mxu0 0
        %1936 = vmatpush1.bf16.msra.mxu0 0
        %1937 = vmatprep.subr.bf16.mxu0 0
        %1938 = vmatpush1.bf16.msra.mxu0 0
        %1939 = vmatprep.subr.bf16.mxu0 0
        %1940 = vmatpush1.bf16.msra.mxu0 0
        %1941 = vmatprep.subr.bf16.mxu0 0
        %1942 = vmatpush1.bf16.msra.mxu0 0
        %1943 = vmatprep.subr.bf16.mxu0 0
        %1944 = vmatpush1.bf16.msra.mxu0 0
        %1945 = vmatprep.mubr.bf16.mxu0 0
        %1946 = vmatmul.mubr.bf16.gmra.mrb[0].mxu0 %v1720
        %v1947 = vpop.f32.mrb[0].mxu0
        %v1948 = vadd.f32 %v1787, %v1947
        %v1949 = vpop.f32.mrb[0].mxu0
        %v1950 = vpop.f32.mrb[0].mxu0
        %v1951 = vadd.f32 %v1790, %v1950
        %v1952 = vpop.f32.mrb[0].mxu0
        %1953 = vmatprep.mubr.bf16.mxu0 0
        %1954 = vmatmul.mubr.bf16.gmra.mrb[0].mxu0 %v1722
        %v1955 = vpop.f32.mrb[0].mxu0
        %v1956 = vadd.f32 %v1795, %v1955
        %v1957 = vpop.f32.mrb[0].mxu0
        %v1958 = vpop.f32.mrb[0].mxu0
        %v1959 = vadd.f32 %v1798, %v1958
        %v1960 = vpop.f32.mrb[0].mxu0
        %1961 = vmatprep.mubr.bf16.mxu0 0
        %1962 = vmatmul.mubr.bf16.gmra.mrb[0].mxu0 %v1724
        %v1963 = vpop.f32.mrb[0].mxu0
        %v1964 = vadd.f32 %v1803, %v1963
        %v1965 = vpop.f32.mrb[0].mxu0
        %v1966 = vpop.f32.mrb[0].mxu0
        %v1967 = vadd.f32 %v1806, %v1966
        %v1968 = vpop.f32.mrb[0].mxu0
        %1969 = vmatprep.mubr.bf16.mxu0 0
        %1970 = vmatmul.mubr.bf16.gmra.mrb[0].mxu0 %v1726
        %v1971 = vpop.f32.mrb[0].mxu0
        %v1972 = vadd.f32 %v1811, %v1971
        %v1973 = vpop.f32.mrb[0].mxu0
        %v1974 = vpop.f32.mrb[0].mxu0
        %v1975 = vadd.f32 %v1814, %v1974
        %v1976 = vpop.f32.mrb[0].mxu0
        %1977 = vmatprep.mubr.bf16.mxu0 0
        %1978 = vmatmul.mubr.bf16.gmra.mrb[0].mxu0 %v1728
        %v1979 = vpop.f32.mrb[0].mxu0
        %v1980 = vadd.f32 %v1819, %v1979
        %v1981 = vpop.f32.mrb[0].mxu0
        %v1982 = vpop.f32.mrb[0].mxu0
        %v1983 = vadd.f32 %v1822, %v1982
        %v1984 = vpop.f32.mrb[0].mxu0
        %1985 = vmatprep.mubr.bf16.mxu0 0
        %1986 = vmatmul.mubr.bf16.gmra.mrb[0].mxu0 %v1730
        %v1987 = vpop.f32.mrb[0].mxu0
        %v1988 = vadd.f32 %v1827, %v1987
        %v1989 = vpop.f32.mrb[0].mxu0
        %v1990 = vpop.f32.mrb[0].mxu0
        %v1991 = vadd.f32 %v1830, %v1990
        %v1992 = vpop.f32.mrb[0].mxu0
        %1993 = vmatprep.mubr.bf16.mxu0 0
        %1994 = vmatmul.mubr.bf16.gmra.mrb[0].mxu0 %v1732
        %v1995 = vpop.f32.mrb[0].mxu0
        %v1996 = vadd.f32 %v1835, %v1995
        %v1997 = vpop.f32.mrb[0].mxu0
        %v1998 = vpop.f32.mrb[0].mxu0
        %v1999 = vadd.f32 %v1838, %v1998
        %v2000 = vpop.f32.mrb[0].mxu0
        %2001 = vmatprep.mubr.bf16.mxu0 0
        %2002 = vmatmul.mubr.bf16.gmra.mrb[0].mxu0 %v1734
        %v2003 = vpop.f32.mrb[0].mxu0
        %v2004 = vadd.f32 %v1843, %v2003
        %v2005 = vpop.f32.mrb[0].mxu0
        %v2006 = vpop.f32.mrb[0].mxu0
        %v2007 = vadd.f32 %v1846, %v2006
        %v2008 = vpop.f32.mrb[0].mxu0
        %2009 = vmatprep.mubr.bf16.mxu0 0
        %2010 = vmatmul.mubr.bf16.gmra.mrb[0].mxu0 %v1736
        %v2011 = vpop.f32.mrb[0].mxu0
        %v2012 = vadd.f32 %v1851, %v2011
        %v2013 = vpop.f32.mrb[0].mxu0
        %v2014 = vpop.f32.mrb[0].mxu0
        %v2015 = vadd.f32 %v1854, %v2014
        %v2016 = vpop.f32.mrb[0].mxu0
        %2017 = vmatprep.mubr.bf16.mxu0 0
        %2018 = vmatmul.mubr.bf16.gmra.mrb[0].mxu0 %v1738
        %v2019 = vpop.f32.mrb[0].mxu0
        %v2020 = vadd.f32 %v1859, %v2019
        %v2021 = vpop.f32.mrb[0].mxu0
        %v2022 = vpop.f32.mrb[0].mxu0
        %v2023 = vadd.f32 %v1862, %v2022
        %v2024 = vpop.f32.mrb[0].mxu0
        %2025 = vmatprep.mubr.bf16.mxu0 0
        %2026 = vmatmul.mubr.bf16.gmra.mrb[0].mxu0 %v1740
        %v2027 = vpop.f32.mrb[0].mxu0
        %v2028 = vadd.f32 %v1867, %v2027
        %v2029 = vpop.f32.mrb[0].mxu0
        %v2030 = vpop.f32.mrb[0].mxu0
        %v2031 = vadd.f32 %v1870, %v2030
        %v2032 = vpop.f32.mrb[0].mxu0
        %2033 = vmatprep.mubr.bf16.mxu0 0
        %2034 = vmatmul.mubr.bf16.gmra.mrb[0].mxu0 %v1742
        %v2035 = vpop.f32.mrb[0].mxu0
        %v2036 = vadd.f32 %v1875, %v2035
        %v2037 = vpop.f32.mrb[0].mxu0
        %v2038 = vpop.f32.mrb[0].mxu0
        %v2039 = vadd.f32 %v1878, %v2038
        %v2040 = vpop.f32.mrb[0].mxu0
        %2041 = vmatprep.mubr.bf16.mxu0 0
        %2042 = vmatmul.mubr.bf16.gmra.mrb[0].mxu0 %v1744
        %v2043 = vpop.f32.mrb[0].mxu0
        %v2044 = vadd.f32 %v1883, %v2043
        %v2045 = vpop.f32.mrb[0].mxu0
        %v2046 = vpop.f32.mrb[0].mxu0
        %v2047 = vadd.f32 %v1886, %v2046
        %v2048 = vpop.f32.mrb[0].mxu0
        %2049 = vmatprep.mubr.bf16.mxu0 0
        %2050 = vmatmul.mubr.bf16.gmra.mrb[0].mxu0 %v1746
        %v2051 = vpop.f32.mrb[0].mxu0
        %v2052 = vadd.f32 %v1891, %v2051
        %v2053 = vpop.f32.mrb[0].mxu0
        %v2054 = vpop.f32.mrb[0].mxu0
        %v2055 = vadd.f32 %v1894, %v2054
        %v2056 = vpop.f32.mrb[0].mxu0
        %2057 = vmatprep.mubr.bf16.mxu0 0
        %2058 = vmatmul.mubr.bf16.gmra.mrb[0].mxu0 %v1748
        %v2059 = vpop.f32.mrb[0].mxu0
        %v2060 = vadd.f32 %v1899, %v2059
        %v2061 = vpop.f32.mrb[0].mxu0
        %v2062 = vpop.f32.mrb[0].mxu0
        %v2063 = vadd.f32 %v1902, %v2062
        %v2064 = vpop.f32.mrb[0].mxu0
        %2065 = vmatprep.mubr.bf16.mxu0 0
        %2066 = vmatmul.mubr.bf16.gmra.mrb[0].mxu0 %v1750
        %v2067 = vpop.f32.mrb[0].mxu0
        %v2068 = vadd.f32 %v1907, %v2067
        %v2069 = vpop.f32.mrb[0].mxu0
        %v2070 = vpop.f32.mrb[0].mxu0
        %v2071 = vadd.f32 %v1910, %v2070
        %v2072 = vpop.f32.mrb[0].mxu0
        %2073 = vdwg.mxu0
        %v2074 = vmax.f32 %v1948, 0.0
        %v2075 = vmax.f32 %v1951, 0.0
        %v2076 = vmax.f32 %v1956, 0.0
        %v2077 = vmax.f32 %v1959, 0.0
        %v2078 = vmax.f32 %v1964, 0.0
        %v2079 = vmax.f32 %v1967, 0.0
        %v2080 = vmax.f32 %v1972, 0.0
        %v2081 = vmax.f32 %v1975, 0.0
        %v2082 = vmax.f32 %v1980, 0.0
        %v2083 = vmax.f32 %v1983, 0.0
        %v2084 = vmax.f32 %v1988, 0.0
        %v2085 = vmax.f32 %v1991, 0.0
        %v2086 = vmax.f32 %v1996, 0.0
        %v2087 = vmax.f32 %v1999, 0.0
        %v2088 = vmax.f32 %v2004, 0.0
        %v2089 = vmax.f32 %v2007, 0.0
        %v2090 = vmax.f32 %v2012, 0.0
        %v2091 = vmax.f32 %v2015, 0.0
        %v2092 = vmax.f32 %v2020, 0.0
        %v2093 = vmax.f32 %v2023, 0.0
        %v2094 = vmax.f32 %v2028, 0.0
        %v2095 = vmax.f32 %v2031, 0.0
        %v2096 = vmax.f32 %v2036, 0.0
        %v2097 = vmax.f32 %v2039, 0.0
        %v2098 = vmax.f32 %v2044, 0.0
        %v2099 = vmax.f32 %v2047, 0.0
        %v2100 = vmax.f32 %v2052, 0.0
        %v2101 = vmax.f32 %v2055, 0.0
        %v2102 = vmax.f32 %v2060, 0.0
        %v2103 = vmax.f32 %v2063, 0.0
        %v2104 = vmax.f32 %v2068, 0.0
        %v2105 = vmax.f32 %v2071, 0.0
        %v2106 = vpack.c.bf16 %v2075, %v2074
        %v2107 = vpack.c.bf16 %v2077, %v2076
        %v2108 = vpack.c.bf16 %v2079, %v2078
        %v2109 = vpack.c.bf16 %v2081, %v2080
        %v2110 = vpack.c.bf16 %v2083, %v2082
        %v2111 = vpack.c.bf16 %v2085, %v2084
        %v2112 = vpack.c.bf16 %v2087, %v2086
        %v2113 = vpack.c.bf16 %v2089, %v2088
        %v2114 = vpack.c.bf16 %v2091, %v2090
        %v2115 = vpack.c.bf16 %v2093, %v2092
        %v2116 = vpack.c.bf16 %v2095, %v2094
        %v2117 = vpack.c.bf16 %v2097, %v2096
        %v2118 = vpack.c.bf16 %v2099, %v2098
        %v2119 = vpack.c.bf16 %v2101, %v2100
        %v2120 = vpack.c.bf16 %v2103, %v2102
        %v2121 = vpack.c.bf16 %v2105, %v2104
        %v2122 = vld [vmem:[%s7] sm:$0xf]
        %v2123 = vld [vmem:[%s7 + $0x4] sm:$0xf]
        %v2124 = vld [vmem:[%s7 + $0x8] sm:$0xf]
        %v2125 = vld [vmem:[%s7 + $0xc] sm:$0xf]
        %v2126 = vld [vmem:[%s8] sm:$0x1]
        %v2128 = vlaneseq
        %v2129 = vshrl.u32 %v2128, 7
        %v2130 = vsub.s32 0, %v2129
        %v2131 = vrot.slane %v2126, %v2130
        %v2137 = vunpack.c.l.b16 %v2122
        %v2138 = vunpack.c.l.b16 %v2123
        %v2139 = vunpack.c.l.b16 %v2124
        %v2140 = vunpack.c.l.b16 %v2125
        %v2141 = vpack.c.b16 %v2138, %v2137
        %v2142 = vpack.c.b16 %v2140, %v2139
        %v2146 = vsel %vm1299, %v2106, 0
        %v2149 = vsel %vm1299, %v2107, 0
        %v2152 = vsel %vm1299, %v2108, 0
        %v2155 = vsel %vm1299, %v2109, 0
        %v2158 = vsel %vm1299, %v2110, 0
        %v2161 = vsel %vm1299, %v2111, 0
        %v2164 = vsel %vm1299, %v2112, 0
        %v2167 = vsel %vm1299, %v2113, 0
        %v2170 = vsel %vm1299, %v2114, 0
        %v2173 = vsel %vm1299, %v2115, 0
        %v2176 = vsel %vm1299, %v2116, 0
        %v2179 = vsel %vm1299, %v2117, 0
        %v2182 = vsel %vm1299, %v2118, 0
        %v2185 = vsel %vm1299, %v2119, 0
        %v2188 = vsel %vm1299, %v2120, 0
        %v2191 = vsel %vm1299, %v2121, 0
        %2193 = vmatprep.subr.bf16.mxu0 0
        %2194 = vmatpush1.bf16.msra.mxu0 %v2141
        %2195 = vmatprep.subr.bf16.mxu0 0
        %2196 = vmatpush1.bf16.msra.mxu0 %v2142
        %2197 = vmatprep.subr.bf16.mxu0 0
        %2198 = vmatpush1.bf16.msra.mxu0 0
        %2199 = vmatprep.subr.bf16.mxu0 0
        %2200 = vmatpush1.bf16.msra.mxu0 0
        %2201 = vmatprep.subr.bf16.mxu0 0
        %2202 = vmatpush1.bf16.msra.mxu0 0
        %2203 = vmatprep.subr.bf16.mxu0 0
        %2204 = vmatpush1.bf16.msra.mxu0 0
        %2205 = vmatprep.subr.bf16.mxu0 0
        %2206 = vmatpush1.bf16.msra.mxu0 0
        %2207 = vmatprep.subr.bf16.mxu0 0
        %2208 = vmatpush1.bf16.msra.mxu0 0
        %2209 = vmatprep.subr.bf16.mxu0 0
        %2210 = vmatpush1.bf16.msra.mxu0 0
        %2211 = vmatprep.subr.bf16.mxu0 0
        %2212 = vmatpush1.bf16.msra.mxu0 0
        %2213 = vmatprep.subr.bf16.mxu0 0
        %2214 = vmatpush1.bf16.msra.mxu0 0
        %2215 = vmatprep.subr.bf16.mxu0 0
        %2216 = vmatpush1.bf16.msra.mxu0 0
        %2217 = vmatprep.subr.bf16.mxu0 0
        %2218 = vmatpush1.bf16.msra.mxu0 0
        %2219 = vmatprep.subr.bf16.mxu0 0
        %2220 = vmatpush1.bf16.msra.mxu0 0
        %2221 = vmatprep.subr.bf16.mxu0 0
        %2222 = vmatpush1.bf16.msra.mxu0 0
        %2223 = vmatprep.subr.bf16.mxu0 0
        %2224 = vmatpush1.bf16.msra.mxu0 0
        %2225 = vmatprep.mubr.bf16.mxu0 0
        %2226 = vmatmul.mubr.bf16.gmra.mrb[0].mxu0 %v2146
        %v2227 = vpop.f32.mrb[0].mxu0
        %v2228 = vadd.f32 %v2131, %v2227
        %v2229 = vpop.f32.mrb[0].mxu0
        %v2230 = vpop.f32.mrb[0].mxu0
        %v2231 = vadd.f32 %v2131, %v2230
        %v2232 = vpop.f32.mrb[0].mxu0
        %2233 = vmatprep.mubr.bf16.mxu0 0
        %2234 = vmatmul.mubr.bf16.gmra.mrb[0].mxu0 %v2149
        %v2235 = vpop.f32.mrb[0].mxu0
        %v2236 = vadd.f32 %v2131, %v2235
        %v2237 = vpop.f32.mrb[0].mxu0
        %v2238 = vpop.f32.mrb[0].mxu0
        %v2239 = vadd.f32 %v2131, %v2238
        %v2240 = vpop.f32.mrb[0].mxu0
        %2241 = vmatprep.mubr.bf16.mxu0 0
        %2242 = vmatmul.mubr.bf16.gmra.mrb[0].mxu0 %v2152
        %v2243 = vpop.f32.mrb[0].mxu0
        %v2244 = vadd.f32 %v2131, %v2243
        %v2245 = vpop.f32.mrb[0].mxu0
        %v2246 = vpop.f32.mrb[0].mxu0
        %v2247 = vadd.f32 %v2131, %v2246
        %v2248 = vpop.f32.mrb[0].mxu0
        %2249 = vmatprep.mubr.bf16.mxu0 0
        %2250 = vmatmul.mubr.bf16.gmra.mrb[0].mxu0 %v2155
        %v2251 = vpop.f32.mrb[0].mxu0
        %v2252 = vadd.f32 %v2131, %v2251
        %v2253 = vpop.f32.mrb[0].mxu0
        %v2254 = vpop.f32.mrb[0].mxu0
        %v2255 = vadd.f32 %v2131, %v2254
        %v2256 = vpop.f32.mrb[0].mxu0
        %2257 = vmatprep.mubr.bf16.mxu0 0
        %2258 = vmatmul.mubr.bf16.gmra.mrb[0].mxu0 %v2158
        %v2259 = vpop.f32.mrb[0].mxu0
        %v2260 = vadd.f32 %v2131, %v2259
        %v2261 = vpop.f32.mrb[0].mxu0
        %v2262 = vpop.f32.mrb[0].mxu0
        %v2263 = vadd.f32 %v2131, %v2262
        %v2264 = vpop.f32.mrb[0].mxu0
        %2265 = vmatprep.mubr.bf16.mxu0 0
        %2266 = vmatmul.mubr.bf16.gmra.mrb[0].mxu0 %v2161
        %v2267 = vpop.f32.mrb[0].mxu0
        %v2268 = vadd.f32 %v2131, %v2267
        %v2269 = vpop.f32.mrb[0].mxu0
        %v2270 = vpop.f32.mrb[0].mxu0
        %v2271 = vadd.f32 %v2131, %v2270
        %v2272 = vpop.f32.mrb[0].mxu0
        %2273 = vmatprep.mubr.bf16.mxu0 0
        %2274 = vmatmul.mubr.bf16.gmra.mrb[0].mxu0 %v2164
        %v2275 = vpop.f32.mrb[0].mxu0
        %v2276 = vadd.f32 %v2131, %v2275
        %v2277 = vpop.f32.mrb[0].mxu0
        %v2278 = vpop.f32.mrb[0].mxu0
        %v2279 = vadd.f32 %v2131, %v2278
        %v2280 = vpop.f32.mrb[0].mxu0
        %2281 = vmatprep.mubr.bf16.mxu0 0
        %2282 = vmatmul.mubr.bf16.gmra.mrb[0].mxu0 %v2167
        %v2283 = vpop.f32.mrb[0].mxu0
        %v2284 = vadd.f32 %v2131, %v2283
        %v2285 = vpop.f32.mrb[0].mxu0
        %v2286 = vpop.f32.mrb[0].mxu0
        %v2287 = vadd.f32 %v2131, %v2286
        %v2288 = vpop.f32.mrb[0].mxu0
        %2289 = vmatprep.mubr.bf16.mxu0 0
        %2290 = vmatmul.mubr.bf16.gmra.mrb[0].mxu0 %v2170
        %v2291 = vpop.f32.mrb[0].mxu0
        %v2292 = vadd.f32 %v2131, %v2291
        %v2293 = vpop.f32.mrb[0].mxu0
        %v2294 = vpop.f32.mrb[0].mxu0
        %v2295 = vadd.f32 %v2131, %v2294
        %v2296 = vpop.f32.mrb[0].mxu0
        %2297 = vmatprep.mubr.bf16.mxu0 0
        %2298 = vmatmul.mubr.bf16.gmra.mrb[0].mxu0 %v2173
        %v2299 = vpop.f32.mrb[0].mxu0
        %v2300 = vadd.f32 %v2131, %v2299
        %v2301 = vpop.f32.mrb[0].mxu0
        %v2302 = vpop.f32.mrb[0].mxu0
        %v2303 = vadd.f32 %v2131, %v2302
        %v2304 = vpop.f32.mrb[0].mxu0
        %2305 = vmatprep.mubr.bf16.mxu0 0
        %2306 = vmatmul.mubr.bf16.gmra.mrb[0].mxu0 %v2176
        %v2307 = vpop.f32.mrb[0].mxu0
        %v2308 = vadd.f32 %v2131, %v2307
        %v2309 = vpop.f32.mrb[0].mxu0
        %v2310 = vpop.f32.mrb[0].mxu0
        %v2311 = vadd.f32 %v2131, %v2310
        %v2312 = vpop.f32.mrb[0].mxu0
        %2313 = vmatprep.mubr.bf16.mxu0 0
        %2314 = vmatmul.mubr.bf16.gmra.mrb[0].mxu0 %v2179
        %v2315 = vpop.f32.mrb[0].mxu0
        %v2316 = vadd.f32 %v2131, %v2315
        %v2317 = vpop.f32.mrb[0].mxu0
        %v2318 = vpop.f32.mrb[0].mxu0
        %v2319 = vadd.f32 %v2131, %v2318
        %v2320 = vpop.f32.mrb[0].mxu0
        %2321 = vmatprep.mubr.bf16.mxu0 0
        %2322 = vmatmul.mubr.bf16.gmra.mrb[0].mxu0 %v2182
        %v2323 = vpop.f32.mrb[0].mxu0
        %v2324 = vadd.f32 %v2131, %v2323
        %v2325 = vpop.f32.mrb[0].mxu0
        %v2326 = vpop.f32.mrb[0].mxu0
        %v2327 = vadd.f32 %v2131, %v2326
        %v2328 = vpop.f32.mrb[0].mxu0
        %2329 = vmatprep.mubr.bf16.mxu0 0
        %2330 = vmatmul.mubr.bf16.gmra.mrb[0].mxu0 %v2185
        %v2331 = vpop.f32.mrb[0].mxu0
        %v2332 = vadd.f32 %v2131, %v2331
        %v2333 = vpop.f32.mrb[0].mxu0
        %v2334 = vpop.f32.mrb[0].mxu0
        %v2335 = vadd.f32 %v2131, %v2334
        %v2336 = vpop.f32.mrb[0].mxu0
        %2337 = vmatprep.mubr.bf16.mxu0 0
        %2338 = vmatmul.mubr.bf16.gmra.mrb[0].mxu0 %v2188
        %v2339 = vpop.f32.mrb[0].mxu0
        %v2340 = vadd.f32 %v2131, %v2339
        %v2341 = vpop.f32.mrb[0].mxu0
        %v2342 = vpop.f32.mrb[0].mxu0
        %v2343 = vadd.f32 %v2131, %v2342
        %v2344 = vpop.f32.mrb[0].mxu0
        %2345 = vmatprep.mubr.bf16.mxu0 0
        %2346 = vmatmul.mubr.bf16.gmra.mrb[0].mxu0 %v2191
        %v2347 = vpop.f32.mrb[0].mxu0
        %v2348 = vadd.f32 %v2131, %v2347
        %v2349 = vpop.f32.mrb[0].mxu0
        %v2350 = vpop.f32.mrb[0].mxu0
        %v2351 = vadd.f32 %v2131, %v2350
        %v2352 = vpop.f32.mrb[0].mxu0
        %2353 = vdwg.mxu0
        %v2354 = vunpack.c.l.bf16 %v497
        %v2355 = vunpack.c.l.bf16 %v498
        %v2356 = vunpack.c.l.bf16 %v499
        %v2357 = vunpack.c.l.bf16 %v500
        %v2358 = vunpack.c.l.bf16 %v501
        %v2359 = vunpack.c.l.bf16 %v502
        %v2360 = vunpack.c.l.bf16 %v503
        %v2361 = vunpack.c.l.bf16 %v504
        %v2362 = vunpack.c.l.bf16 %v505
        %v2363 = vunpack.c.l.bf16 %v506
        %v2364 = vunpack.c.l.bf16 %v507
        %v2365 = vunpack.c.l.bf16 %v508
        %v2366 = vunpack.c.l.bf16 %v509
        %v2367 = vunpack.c.l.bf16 %v510
        %v2368 = vunpack.c.l.bf16 %v511
        %v2369 = vunpack.c.l.bf16 %v512
        %v2370 = vunpack.c.l.bf16 %v513
        %v2371 = vunpack.c.l.bf16 %v514
        %v2372 = vunpack.c.l.bf16 %v515
        %v2373 = vunpack.c.l.bf16 %v516
        %v2374 = vunpack.c.l.bf16 %v517
        %v2375 = vunpack.c.l.bf16 %v518
        %v2376 = vunpack.c.l.bf16 %v519
        %v2377 = vunpack.c.l.bf16 %v520
        %v2378 = vunpack.c.l.bf16 %v521
        %v2379 = vunpack.c.l.bf16 %v522
        %v2380 = vunpack.c.l.bf16 %v523
        %v2381 = vunpack.c.l.bf16 %v524
        %v2382 = vunpack.c.l.bf16 %v525
        %v2383 = vunpack.c.l.bf16 %v526
        %v2384 = vunpack.c.l.bf16 %v527
        %v2385 = vunpack.c.l.bf16 %v528
        %v2386 = vadd.f32 %v2228, %v2354
        %v2387 = vadd.f32 %v2231, %v2355
        %v2388 = vadd.f32 %v2236, %v2356
        %v2389 = vadd.f32 %v2239, %v2357
        %v2390 = vadd.f32 %v2244, %v2358
        %v2391 = vadd.f32 %v2247, %v2359
        %v2392 = vadd.f32 %v2252, %v2360
        %v2393 = vadd.f32 %v2255, %v2361
        %v2394 = vadd.f32 %v2260, %v2362
        %v2395 = vadd.f32 %v2263, %v2363
        %v2396 = vadd.f32 %v2268, %v2364
        %v2397 = vadd.f32 %v2271, %v2365
        %v2398 = vadd.f32 %v2276, %v2366
        %v2399 = vadd.f32 %v2279, %v2367
        %v2400 = vadd.f32 %v2284, %v2368
        %v2401 = vadd.f32 %v2287, %v2369
        %v2402 = vadd.f32 %v2292, %v2370
        %v2403 = vadd.f32 %v2295, %v2371
        %v2404 = vadd.f32 %v2300, %v2372
        %v2405 = vadd.f32 %v2303, %v2373
        %v2406 = vadd.f32 %v2308, %v2374
        %v2407 = vadd.f32 %v2311, %v2375
        %v2408 = vadd.f32 %v2316, %v2376
        %v2409 = vadd.f32 %v2319, %v2377
        %v2410 = vadd.f32 %v2324, %v2378
        %v2411 = vadd.f32 %v2327, %v2379
        %v2412 = vadd.f32 %v2332, %v2380
        %v2413 = vadd.f32 %v2335, %v2381
        %v2414 = vadd.f32 %v2340, %v2382
        %v2415 = vadd.f32 %v2343, %v2383
        %v2416 = vadd.f32 %v2348, %v2384
        %v2417 = vadd.f32 %v2351, %v2385
        %v2418 = vmax.f32 %v2386, 0.0
        %v2419 = vmax.f32 %v2387, 0.0
        %v2420 = vmax.f32 %v2388, 0.0
        %v2421 = vmax.f32 %v2389, 0.0
        %v2422 = vmax.f32 %v2390, 0.0
        %v2423 = vmax.f32 %v2391, 0.0
        %v2424 = vmax.f32 %v2392, 0.0
        %v2425 = vmax.f32 %v2393, 0.0
        %v2426 = vmax.f32 %v2394, 0.0
        %v2427 = vmax.f32 %v2395, 0.0
        %v2428 = vmax.f32 %v2396, 0.0
        %v2429 = vmax.f32 %v2397, 0.0
        %v2430 = vmax.f32 %v2398, 0.0
        %v2431 = vmax.f32 %v2399, 0.0
        %v2432 = vmax.f32 %v2400, 0.0
        %v2433 = vmax.f32 %v2401, 0.0
        %v2434 = vmax.f32 %v2402, 0.0
        %v2435 = vmax.f32 %v2403, 0.0
        %v2436 = vmax.f32 %v2404, 0.0
        %v2437 = vmax.f32 %v2405, 0.0
        %v2438 = vmax.f32 %v2406, 0.0
        %v2439 = vmax.f32 %v2407, 0.0
        %v2440 = vmax.f32 %v2408, 0.0
        %v2441 = vmax.f32 %v2409, 0.0
        %v2442 = vmax.f32 %v2410, 0.0
        %v2443 = vmax.f32 %v2411, 0.0
        %v2444 = vmax.f32 %v2412, 0.0
        %v2445 = vmax.f32 %v2413, 0.0
        %v2446 = vmax.f32 %v2414, 0.0
        %v2447 = vmax.f32 %v2415, 0.0
        %v2448 = vmax.f32 %v2416, 0.0
        %v2449 = vmax.f32 %v2417, 0.0
        %v2450 = vpack.c.bf16 %v2419, %v2418
        %v2451 = vpack.c.bf16 %v2421, %v2420
        %v2452 = vpack.c.bf16 %v2423, %v2422
        %v2453 = vpack.c.bf16 %v2425, %v2424
        %v2454 = vpack.c.bf16 %v2427, %v2426
        %v2455 = vpack.c.bf16 %v2429, %v2428
        %v2456 = vpack.c.bf16 %v2431, %v2430
        %v2457 = vpack.c.bf16 %v2433, %v2432
        %v2458 = vpack.c.bf16 %v2435, %v2434
        %v2459 = vpack.c.bf16 %v2437, %v2436
        %v2460 = vpack.c.bf16 %v2439, %v2438
        %v2461 = vpack.c.bf16 %v2441, %v2440
        %v2462 = vpack.c.bf16 %v2443, %v2442
        %v2463 = vpack.c.bf16 %v2445, %v2444
        %v2464 = vpack.c.bf16 %v2447, %v2446
        %v2465 = vpack.c.bf16 %v2449, %v2448
        %v2482 = vunpack.c.l.b16 %v2450
        %v2483 = vunpack.c.h.b16 %v2450
        %v2484 = vunpack.c.l.b16 %v2451
        %v2485 = vunpack.c.h.b16 %v2451
        %v2486 = vunpack.c.l.b16 %v2452
        %v2487 = vunpack.c.h.b16 %v2452
        %v2488 = vunpack.c.l.b16 %v2453
        %v2489 = vunpack.c.h.b16 %v2453
        %v2490 = vunpack.c.l.b16 %v2454
        %v2491 = vunpack.c.h.b16 %v2454
        %v2492 = vunpack.c.l.b16 %v2455
        %v2493 = vunpack.c.h.b16 %v2455
        %v2494 = vunpack.c.l.b16 %v2456
        %v2495 = vunpack.c.h.b16 %v2456
        %v2496 = vunpack.c.l.b16 %v2457
        %v2497 = vunpack.c.h.b16 %v2457
        %v2498 = vunpack.c.l.b16 %v2458
        %v2499 = vunpack.c.h.b16 %v2458
        %v2500 = vunpack.c.l.b16 %v2459
        %v2501 = vunpack.c.h.b16 %v2459
        %v2502 = vunpack.c.l.b16 %v2460
        %v2503 = vunpack.c.h.b16 %v2460
        %v2504 = vunpack.c.l.b16 %v2461
        %v2505 = vunpack.c.h.b16 %v2461
        %v2506 = vunpack.c.l.b16 %v2462
        %v2507 = vunpack.c.h.b16 %v2462
        %v2508 = vunpack.c.l.b16 %v2463
        %v2509 = vunpack.c.h.b16 %v2463
        %v2510 = vunpack.c.l.b16 %v2464
        %v2511 = vunpack.c.h.b16 %v2464
        %v2512 = vunpack.c.l.b16 %v2465
        %v2513 = vunpack.c.h.b16 %v2465
        %v2514 = vpack.c.b16 %v2482, %v2482
        %v2515 = vpack.c.b16 %v2483, %v2483
        %v2516 = vpack.c.b16 %v2484, %v2484
        %v2517 = vpack.c.b16 %v2485, %v2485
        %v2518 = vpack.c.b16 %v2486, %v2486
        %v2519 = vpack.c.b16 %v2487, %v2487
        %v2520 = vpack.c.b16 %v2488, %v2488
        %v2521 = vpack.c.b16 %v2489, %v2489
        %v2522 = vpack.c.b16 %v2490, %v2490
        %v2523 = vpack.c.b16 %v2491, %v2491
        %v2524 = vpack.c.b16 %v2492, %v2492
        %v2525 = vpack.c.b16 %v2493, %v2493
        %v2526 = vpack.c.b16 %v2494, %v2494
        %v2527 = vpack.c.b16 %v2495, %v2495
        %v2528 = vpack.c.b16 %v2496, %v2496
        %v2529 = vpack.c.b16 %v2497, %v2497
        %v2530 = vpack.c.b16 %v2498, %v2498
        %v2531 = vpack.c.b16 %v2499, %v2499
        %v2532 = vpack.c.b16 %v2500, %v2500
        %v2533 = vpack.c.b16 %v2501, %v2501
        %v2534 = vpack.c.b16 %v2502, %v2502
        %v2535 = vpack.c.b16 %v2503, %v2503
        %v2536 = vpack.c.b16 %v2504, %v2504
        %v2537 = vpack.c.b16 %v2505, %v2505
        %v2538 = vpack.c.b16 %v2506, %v2506
        %v2539 = vpack.c.b16 %v2507, %v2507
        %v2540 = vpack.c.b16 %v2508, %v2508
        %v2541 = vpack.c.b16 %v2509, %v2509
        %v2542 = vpack.c.b16 %v2510, %v2510
        %v2543 = vpack.c.b16 %v2511, %v2511
        %v2544 = vpack.c.b16 %v2512, %v2512
        %v2545 = vpack.c.b16 %v2513, %v2513
        %2578 = vst [vmem:[%s470] sm:$0xf] %v2514
        %2579 = vst [vmem:[%s470 + $0x4] sm:$0xf] %v2515
        %2580 = vst [vmem:[%s470 + $0x8] sm:$0xf] %v2516
        %2581 = vst [vmem:[%s470 + $0xc] sm:$0xf] %v2517
        %2582 = vst [vmem:[%s470 + $0x10] sm:$0xf] %v2518
        %2583 = vst [vmem:[%s470 + $0x14] sm:$0xf] %v2519
        %2584 = vst [vmem:[%s470 + $0x18] sm:$0xf] %v2520
        %2585 = vst [vmem:[%s470 + $0x1c] sm:$0xf] %v2521
        %2586 = vst [vmem:[%s470 + $0x20] sm:$0xf] %v2522
        %2587 = vst [vmem:[%s470 + $0x24] sm:$0xf] %v2523
        %2588 = vst [vmem:[%s470 + $0x28] sm:$0xf] %v2524
        %2589 = vst [vmem:[%s470 + $0x2c] sm:$0xf] %v2525
        %2590 = vst [vmem:[%s470 + $0x30] sm:$0xf] %v2526
        %2591 = vst [vmem:[%s470 + $0x34] sm:$0xf] %v2527
        %2592 = vst [vmem:[%s470 + $0x38] sm:$0xf] %v2528
        %2593 = vst [vmem:[%s470 + $0x3c] sm:$0xf] %v2529
        %2594 = vst [vmem:[%s470 + $0x40] sm:$0xf] %v2530
        %2595 = vst [vmem:[%s470 + $0x44] sm:$0xf] %v2531
        %2596 = vst [vmem:[%s470 + $0x48] sm:$0xf] %v2532
        %2597 = vst [vmem:[%s470 + $0x4c] sm:$0xf] %v2533
        %2598 = vst [vmem:[%s470 + $0x50] sm:$0xf] %v2534
        %2599 = vst [vmem:[%s470 + $0x54] sm:$0xf] %v2535
        %2600 = vst [vmem:[%s470 + $0x58] sm:$0xf] %v2536
        %2601 = vst [vmem:[%s470 + $0x5c] sm:$0xf] %v2537
        %2602 = vst [vmem:[%s470 + $0x60] sm:$0xf] %v2538
        %2603 = vst [vmem:[%s470 + $0x64] sm:$0xf] %v2539
        %2604 = vst [vmem:[%s470 + $0x68] sm:$0xf] %v2540
        %2605 = vst [vmem:[%s470 + $0x6c] sm:$0xf] %v2541
        %2606 = vst [vmem:[%s470 + $0x70] sm:$0xf] %v2542
        %2607 = vst [vmem:[%s470 + $0x74] sm:$0xf] %v2543
        %2608 = vst [vmem:[%s470 + $0x78] sm:$0xf] %v2544
        %2609 = vst [vmem:[%s470 + $0x7c] sm:$0xf] %v2545
        %s2610 = sand.u32 %s277, 1
        %s2611 = scalar_lea.sflag [#allocation4], %s2610
        %s2612 = sand.u32 %s277, 1
        %s2613 = smul.addr %s2612, 128
        %s2614 = scalar_lea.vmem [#allocation7], %s2613
        // Predicated region
        $region65: #{tpu_custom_call.1} parent=55 // pred_check
          %p2615 = pneg %p287
        $region66: #{tpu_custom_call.1} parent=55 // pred_check_branch
          %2617 = sbr.rel (%p2615) target = $region68
        $region67: #{tpu_custom_call.1} parent=55 // pred_region
          %s2618 = smul.u32 16, %s34
          %s2620 = ssub.s32 2048, 2048
          %2621 = vsyncadd %s2611, %s2620
          %s2622 = smul.addr %s2618, 2
          %s2623 = smul.addr %s33, 32
          %s2624 = sadd.s32 %s2622, %s2623
          %s2625 = smul.addr %s2624, 64
          %s2626 = scalar_lea.hbm %s9, %s2625
          %s2627 = sshll.u32 %s2614, 4
          %s2628 = int_to_ptr.vmem [resolvable:$true] %s2627
          %2633 = dma.vmem_to_hbm [thread:$0]  %s2628, 2048, %s2626, %s2611, 64, 64, 4
        $region68: #{tpu_custom_call.1} parent=55 // pred_fallthru
          _
      $region56: #{tpu_custom_call.1} parent=5 // pred_fallthru
        _
      %p2634 = scmp.le.s32.totalorder 2, %s24
      // Predicated region
      $region69: #{tpu_custom_call.1} parent=5 // pred_check
        %p2635 = pneg %p2634
      $region70: #{tpu_custom_call.1} parent=5 // pred_check_branch
        %2637 = sbr.rel (%p2635) target = $region72
      $region71: #{tpu_custom_call.1} parent=5 // pred_region
        %s2638 = ssub.s32 %s24, 2
        // Predicated region
        $region73: #{tpu_custom_call.1} parent=71 // pred_check
          %p2639 = pneg %p293
        $region74: #{tpu_custom_call.1} parent=71 // pred_check_branch
          %2641 = sbr.rel (%p2639) target = $region76
        $region75: #{tpu_custom_call.1} parent=71 // pred_region
          %s2642 = sand.u32 %s278, 1
          %s2643 = scalar_lea.sflag [#allocation4], %s2642
          %s2644 = sand.u32 %s278, 1
          %s2645 = smul.addr %s2644, 128
          %s2646 = scalar_lea.vmem [#allocation7], %s2645
          %2647 = dma.done %s2643, 2048
        $region76: #{tpu_custom_call.1} parent=71 // pred_fallthru
          _
      $region72: #{tpu_custom_call.1} parent=5 // pred_fallthru
        _
    $region6: #{tpu_custom_call.1} parent=1 // loop_footer
      %s28 = sadd.s32 1, %s24
    $region7: #{tpu_custom_call.1} parent=1 // loop_footer_branch
      %23 = sbr.rel target = $region3
    $region8: #{tpu_custom_call.1} parent=1 // loop_exit
      _
    %2648 = vsyncpa [#allocation3], 1
    %s2649 = scalar_lea.sflag [#allocation3], 1
    %2650 = vsyncpa %s2649, 1
    %2651 = vsyncpa [#allocation6], 1
    %s2652 = scalar_lea.sflag [#allocation6], 1
    %2653 = vsyncpa %s2652, 1
    %2654 = vsyncpa [#allocation4], 1
    %s2655 = scalar_lea.sflag [#allocation4], 1
    %2656 = vsyncpa %s2655, 1

// kernel: tpu_custom_call.1
$region0: #{tpu_custom_call.1}
  #allocation0 [shape = 'u32[]', space=smem, size = 0x4, offset = 0x4, fixed_abs, tag = 'smem constant byte address 0x4 - core index']
  #allocation1 [shape = 'u32[144,128]{1,0:T(1,128)}', space=vmem, size = 0x12000, scoped, tag = 'internal scratch']
  %s0 = inlined_call_operand.vmem [shape: bf16[2,16,16,128], index: 0, kind: input, shape index: {}]
  %s1 = inlined_call_operand.hbm [shape: bf16[2,16,16,128], index: 1, kind: input, shape index: {}]
  %s2 = inlined_call_operand.hbm [shape: bf16[2,16,16,128], index: 2, kind: input, shape index: {}]
  %s3 = inlined_call_operand.vmem [shape: bf16[128,32], index: 3, kind: input, shape index: {}]
  %s4 = inlined_call_operand.vmem [shape: f32[1,32], index: 4, kind: input, shape index: {}]
  %s5 = inlined_call_operand.vmem [shape: bf16[288,32], index: 5, kind: input, shape index: {}]
  %s6 = inlined_call_operand.vmem [shape: f32[1,32], index: 6, kind: input, shape index: {}]
  %s7 = inlined_call_operand.vmem [shape: bf16[32,128], index: 7, kind: input, shape index: {}]
  %s8 = inlined_call_operand.vmem [shape: f32[1,128], index: 8, kind: input, shape index: {}]
  %s9 = inlined_call_operand.hbm [shape: bf16[2,16,16,128], index: 9, kind: output, shape index: {}]
  %s10 = sld [smem:[#allocation0]]
  $region77: #{tpu_custom_call.1} parent=0
    _
  %s12 = ssub.s32 1, %s10
  %s13 = scalar_select 0, %s12, %s10
  $region1: #{tpu_custom_call.1} parent=0
    #allocation2 [shape = 'u8[131072]{0}', space=vmem, size = 0x20000, scoped, tag = 'input window, operand 1']
    #allocation3 [shape = 's32[2]{0}', space=sflag, size = 0x8, scoped, tag = 'scoped memory for tpu_custom_call.1']
    #allocation4 [shape = 's32[2]{0}', space=sflag, size = 0x8, scoped, tag = 'scoped memory for tpu_custom_call.1']
    #allocation5 [shape = 'u8[8192]{0}', space=vmem, size = 0x2000, scoped, tag = 'input window, operand 2']
    #allocation6 [shape = 's32[2]{0}', space=sflag, size = 0x8, scoped, tag = 'scoped memory for tpu_custom_call.1']
    #allocation7 [shape = 'u8[131072]{0}', space=vmem, size = 0x20000, scoped, tag = 'output window, operand 0']
    %14 = vsyncpa [#allocation3], 0
    %s15 = scalar_lea.sflag [#allocation3], 1
    %16 = vsyncpa %s15, 0
    %17 = vsyncpa [#allocation6], 0
    %s18 = scalar_lea.sflag [#allocation6], 1
    %19 = vsyncpa %s18, 0
    %20 = vsyncpa [#allocation4], 0
    %s21 = scalar_lea.sflag [#allocation4], 1
    %22 = vsyncpa %s21, 0
    loop: start=0, step=1, limit=4
    $region2: #{tpu_custom_call.1} parent=1 // loop_pre_header
      _
    $region3: #{tpu_custom_call.1} parent=1 // loop_header
      %s24 = sphi 0, %s28
      %p25 = scmp.ge.s32.totalorder %s24, 4
      %s31 = sphi 0, %s43
      %s32 = sphi 0, %s39
      %s33 = sphi 0, %s31
      %s34 = sphi 0, %s32
      %s35 = sphi 0, %s33
      %s36 = sphi 0, %s34
      %s56 = sphi 0, %s58
      %s59 = sphi 0, %s56
      %s60 = sphi 0, %s59
      %s76 = sphi 0, %s60
      %s84 = sphi 0, %s86
      %s87 = sphi 0, %s84
      %s88 = sphi 0, %s87
      %s104 = sphi 0, %s88
      %s120 = sphi 0, %s122
      %s123 = sphi 0, %s120
      %s124 = sphi 0, %s123
      %s140 = sphi 0, %s124
      %s144 = sphi 0, %s144
      %s146 = sphi 0, %s144
      %s147 = sphi 0, %s146
      %s161 = sphi 0, %s147
      %s165 = sphi 0, %s165
      %s167 = sphi 0, %s165
      %s168 = sphi 0, %s167
      %s182 = sphi 0, %s168
      %s186 = sphi 0, %s186
      %s188 = sphi 0, %s186
      %s189 = sphi 0, %s188
      %s203 = sphi 0, %s189
      %s207 = sphi 0, %s207
      %s209 = sphi 0, %s207
      %s210 = sphi 0, %s209
      %s224 = sphi 0, %s210
      %s228 = sphi 0, %s228
      %s230 = sphi 0, %s228
      %s231 = sphi 0, %s230
      %s245 = sphi 0, %s231
      %s249 = sphi 0, %s249
      %s251 = sphi 0, %s249
      %s252 = sphi 0, %s251
      %s266 = sphi 0, %s252
      %s274 = sphi 0, %s276
      %s277 = sphi 0, %s274
      %s278 = sphi 0, %s277
      %s294 = sphi 0, %s278
    $region4: #{tpu_custom_call.1} parent=1 // loop_header_branch
      %27 = sbr.rel (%p25) target = $region8
    $region5: #{tpu_custom_call.1} parent=1 // loop_body
      %s29 = ssub.s32 %s24, 1
      %s30 = ssub.s32 %s24, 2
      %s37 = sadd.s32 1, %s32
      %p38 = scmp.ge.s32.totalorder %s37, 1
      %s39 = scalar_select %p38, 0, %s37
      %s40 = sadd.s32 1, %s31
      %s41 = scalar_select %p38, %s40, %s31
      %p42 = scmp.ge.s32.totalorder %s41, 2
      %s43 = scalar_select %p42, 0, %s41
      %s44 = smul.u32 %s32, 16
      %s45 = ssub.s32 %s44, 1
      %p46 = scmp.gt.s32.totalorder %s45, 0
      %s47 = scalar_select %p46, %s45, 0
      %s48 = smul.u32 %s39, 16
      %s49 = ssub.s32 %s48, 1
      %p50 = scmp.gt.s32.totalorder %s49, 0
      %s51 = scalar_select %p50, %s49, 0
      %s52 = ssub.s32 %s31, %s43
      %s53 = ssub.s32 %s47, %s51
      %s54 = sor.u32 %s52, %s53
      %p55 = scmp.eq.s32.totalorder %s54, 0
      %s57 = sadd.s32 %s56, 1
      %s58 = scalar_select %p55, %s56, %s57
      %p61 = pneg %p55
      %p62 = scmp.eq.s32.totalorder %s24, 1
      %p63 = por %p61, %p62
      %p64 = scmp.ne.s32.totalorder %s56, %s59
      %p65 = scmp.eq.s32.totalorder %s24, 0
      %p66 = por %p64, %p65
      %p67 = scmp.ne.s32.totalorder %s56, %s59
      %p68 = scmp.eq.s32.totalorder %s29, 1
      %p69 = por %p67, %p68
      %p70 = scmp.ne.s32.totalorder %s59, %s60
      %p71 = scmp.eq.s32.totalorder %s29, 0
      %p72 = por %p70, %p71
      %p73 = scmp.ne.s32.totalorder %s59, %s60
      %p74 = scmp.eq.s32.totalorder %s30, 1
      %p75 = por %p73, %p74
      %p77 = scmp.ne.s32.totalorder %s60, %s76
      %p78 = scmp.eq.s32.totalorder %s30, 0
      %p79 = por %p77, %p78
      %s80 = ssub.s32 %s31, %s43
      %s81 = ssub.s32 %s32, %s39
      %s82 = sor.u32 %s80, %s81
      %p83 = scmp.eq.s32.totalorder %s82, 0
      %s85 = sadd.s32 %s84, 1
      %s86 = scalar_select %p83, %s84, %s85
      %p89 = pneg %p83
      %p90 = scmp.eq.s32.totalorder %s24, 1
      %p91 = por %p89, %p90
      %p92 = scmp.ne.s32.totalorder %s84, %s87
      %p93 = scmp.eq.s32.totalorder %s24, 0
      %p94 = por %p92, %p93
      %p95 = scmp.ne.s32.totalorder %s84, %s87
      %p96 = scmp.eq.s32.totalorder %s29, 1
      %p97 = por %p95, %p96
      %p98 = scmp.ne.s32.totalorder %s87, %s88
      %p99 = scmp.eq.s32.totalorder %s29, 0
      %p100 = por %p98, %p99
      %p101 = scmp.ne.s32.totalorder %s87, %s88
      %p102 = scmp.eq.s32.totalorder %s30, 1
      %p103 = por %p101, %p102
      %p105 = scmp.ne.s32.totalorder %s88, %s104
      %p106 = scmp.eq.s32.totalorder %s30, 0
      %p107 = por %p105, %p106
      %s108 = smul.u32 %s32, 16
      %s109 = sadd.s32 %s108, 16
      %p110 = scmp.lt.s32.totalorder %s109, 15
      %s111 = scalar_select %p110, %s109, 15
      %s112 = smul.u32 %s39, 16
      %s113 = sadd.s32 %s112, 16
      %p114 = scmp.lt.s32.totalorder %s113, 15
      %s115 = scalar_select %p114, %s113, 15
      %s116 = ssub.s32 %s31, %s43
      %s117 = ssub.s32 %s111, %s115
      %s118 = sor.u32 %s116, %s117
      %p119 = scmp.eq.s32.totalorder %s118, 0
      %s121 = sadd.s32 %s120, 1
      %s122 = scalar_select %p119, %s120, %s121
      %p125 = pneg %p119
      %p126 = scmp.eq.s32.totalorder %s24, 1
      %p127 = por %p125, %p126
      %p128 = scmp.ne.s32.totalorder %s120, %s123
      %p129 = scmp.eq.s32.totalorder %s24, 0
      %p130 = por %p128, %p129
      %p131 = scmp.ne.s32.totalorder %s120, %s123
      %p132 = scmp.eq.s32.totalorder %s29, 1
      %p133 = por %p131, %p132
      %p134 = scmp.ne.s32.totalorder %s123, %s124
      %p135 = scmp.eq.s32.totalorder %s29, 0
      %p136 = por %p134, %p135
      %p137 = scmp.ne.s32.totalorder %s123, %s124
      %p138 = scmp.eq.s32.totalorder %s30, 1
      %p139 = por %p137, %p138
      %p141 = scmp.ne.s32.totalorder %s124, %s140
      %p142 = scmp.eq.s32.totalorder %s30, 0
      %p143 = por %p141, %p142
      %s145 = sadd.s32 %s144, 1
      %p148 = scmp.eq.s32.totalorder %s24, 1
      %p149 = scmp.ne.s32.totalorder %s144, %s146
      %p150 = scmp.eq.s32.totalorder %s24, 0
      %p151 = por %p149, %p150
      %p152 = scmp.ne.s32.totalorder %s144, %s146
      %p153 = scmp.eq.s32.totalorder %s29, 1
      %p154 = por %p152, %p153
      %p155 = scmp.ne.s32.totalorder %s146, %s147
      %p156 = scmp.eq.s32.totalorder %s29, 0
      %p157 = por %p155, %p156
      %p158 = scmp.ne.s32.totalorder %s146, %s147
      %p159 = scmp.eq.s32.totalorder %s30, 1
      %p160 = por %p158, %p159
      %p162 = scmp.ne.s32.totalorder %s147, %s161
      %p163 = scmp.eq.s32.totalorder %s30, 0
      %p164 = por %p162, %p163
      %s166 = sadd.s32 %s165, 1
      %p169 = scmp.eq.s32.totalorder %s24, 1
      %p170 = scmp.ne.s32.totalorder %s165, %s167
      %p171 = scmp.eq.s32.totalorder %s24, 0
      %p172 = por %p170, %p171
      %p173 = scmp.ne.s32.totalorder %s165, %s167
      %p174 = scmp.eq.s32.totalorder %s29, 1
      %p175 = por %p173, %p174
      %p176 = scmp.ne.s32.totalorder %s167, %s168
      %p177 = scmp.eq.s32.totalorder %s29, 0
      %p178 = por %p176, %p177
      %p179 = scmp.ne.s32.totalorder %s167, %s168
      %p180 = scmp.eq.s32.totalorder %s30, 1
      %p181 = por %p179, %p180
      %p183 = scmp.ne.s32.totalorder %s168, %s182
      %p184 = scmp.eq.s32.totalorder %s30, 0
      %p185 = por %p183, %p184
      %s187 = sadd.s32 %s186, 1
      %p190 = scmp.eq.s32.totalorder %s24, 1
      %p191 = scmp.ne.s32.totalorder %s186, %s188
      %p192 = scmp.eq.s32.totalorder %s24, 0
      %p193 = por %p191, %p192
      %p194 = scmp.ne.s32.totalorder %s186, %s188
      %p195 = scmp.eq.s32.totalorder %s29, 1
      %p196 = por %p194, %p195
      %p197 = scmp.ne.s32.totalorder %s188, %s189
      %p198 = scmp.eq.s32.totalorder %s29, 0
      %p199 = por %p197, %p198
      %p200 = scmp.ne.s32.totalorder %s188, %s189
      %p201 = scmp.eq.s32.totalorder %s30, 1
      %p202 = por %p200, %p201
      %p204 = scmp.ne.s32.totalorder %s189, %s203
      %p205 = scmp.eq.s32.totalorder %s30, 0
      %p206 = por %p204, %p205
      %s208 = sadd.s32 %s207, 1
      %p211 = scmp.eq.s32.totalorder %s24, 1
      %p212 = scmp.ne.s32.totalorder %s207, %s209
      %p213 = scmp.eq.s32.totalorder %s24, 0
      %p214 = por %p212, %p213
      %p215 = scmp.ne.s32.totalorder %s207, %s209
      %p216 = scmp.eq.s32.totalorder %s29, 1
      %p217 = por %p215, %p216
      %p218 = scmp.ne.s32.totalorder %s209, %s210
      %p219 = scmp.eq.s32.totalorder %s29, 0
      %p220 = por %p218, %p219
      %p221 = scmp.ne.s32.totalorder %s209, %s210
      %p222 = scmp.eq.s32.totalorder %s30, 1
      %p223 = por %p221, %p222
      %p225 = scmp.ne.s32.totalorder %s210, %s224
      %p226 = scmp.eq.s32.totalorder %s30, 0
      %p227 = por %p225, %p226
      %s229 = sadd.s32 %s228, 1
      %p232 = scmp.eq.s32.totalorder %s24, 1
      %p233 = scmp.ne.s32.totalorder %s228, %s230
      %p234 = scmp.eq.s32.totalorder %s24, 0
      %p235 = por %p233, %p234
      %p236 = scmp.ne.s32.totalorder %s228, %s230
      %p237 = scmp.eq.s32.totalorder %s29, 1
      %p238 = por %p236, %p237
      %p239 = scmp.ne.s32.totalorder %s230, %s231
      %p240 = scmp.eq.s32.totalorder %s29, 0
      %p241 = por %p239, %p240
      %p242 = scmp.ne.s32.totalorder %s230, %s231
      %p243 = scmp.eq.s32.totalorder %s30, 1
      %p244 = por %p242, %p243
      %p246 = scmp.ne.s32.totalorder %s231, %s245
      %p247 = scmp.eq.s32.totalorder %s30, 0
      %p248 = por %p246, %p247
      %s250 = sadd.s32 %s249, 1
      %p253 = scmp.eq.s32.totalorder %s24, 1
      %p254 = scmp.ne.s32.totalorder %s249, %s251
      %p255 = scmp.eq.s32.totalorder %s24, 0
      %p256 = por %p254, %p255
      %p257 = scmp.ne.s32.totalorder %s249, %s251
      %p258 = scmp.eq.s32.totalorder %s29, 1
      %p259 = por %p257, %p258
      %p260 = scmp.ne.s32.totalorder %s251, %s252
      %p261 = scmp.eq.s32.totalorder %s29, 0
      %p262 = por %p260, %p261
      %p263 = scmp.ne.s32.totalorder %s251, %s252
      %p264 = scmp.eq.s32.totalorder %s30, 1
      %p265 = por %p263, %p264
      %p267 = scmp.ne.s32.totalorder %s252, %s266
      %p268 = scmp.eq.s32.totalorder %s30, 0
      %p269 = por %p267, %p268
      %s270 = ssub.s32 %s31, %s43
      %s271 = ssub.s32 %s32, %s39
      %s272 = sor.u32 %s270, %s271
      %p273 = scmp.eq.s32.totalorder %s272, 0
      %s275 = sadd.s32 %s274, 1
      %s276 = scalar_select %p273, %s274, %s275
      %p279 = pneg %p273
      %p280 = scmp.eq.s32.totalorder %s24, 1
      %p281 = por %p279, %p280
      %p282 = scmp.ne.s32.totalorder %s274, %s277
      %p283 = scmp.eq.s32.totalorder %s24, 0
      %p284 = por %p282, %p283
      %p285 = scmp.ne.s32.totalorder %s274, %s277
      %p286 = scmp.eq.s32.totalorder %s29, 1
      %p287 = por %p285, %p286
      %p288 = scmp.ne.s32.totalorder %s277, %s278
      %p289 = scmp.eq.s32.totalorder %s29, 0
      %p290 = por %p288, %p289
      %p291 = scmp.ne.s32.totalorder %s277, %s278
      %p292 = scmp.eq.s32.totalorder %s30, 1
      %p293 = por %p291, %p292
      %p295 = scmp.ne.s32.totalorder %s278, %s294
      %p296 = scmp.eq.s32.totalorder %s30, 0
      %p297 = por %p295, %p296
      %p298 = scmp.le.s32.totalorder 1, %s24
      %p299 = scmp.lt.s32.totalorder %s24, 3
      %p300 = pnand %p298, %p299
      %p301 = pneg %p300
      // Predicated region
      $region9: #{tpu_custom_call.1} parent=5 // pred_check
        _
      $region10: #{tpu_custom_call.1} parent=5 // pred_check_branch
        %303 = sbr.rel (%p300) target = $region12
      $region11: #{tpu_custom_call.1} parent=5 // pred_region
        %s304 = ssub.s32 %s24, 1
        // Predicated region
        $region13: #{tpu_custom_call.1} parent=11 // pred_check
          %p305 = pneg %p157
        $region14: #{tpu_custom_call.1} parent=11 // pred_check_branch
          %307 = sbr.rel (%p305) target = $region16
        $region15: #{tpu_custom_call.1} parent=11 // pred_region
          _
        $region16: #{tpu_custom_call.1} parent=11 // pred_fallthru
          _
        // Predicated region
        $region17: #{tpu_custom_call.1} parent=11 // pred_check
          %p308 = pneg %p178
        $region18: #{tpu_custom_call.1} parent=11 // pred_check_branch
          %310 = sbr.rel (%p308) target = $region20
        $region19: #{tpu_custom_call.1} parent=11 // pred_region
          _
        $region20: #{tpu_custom_call.1} parent=11 // pred_fallthru
          _
        // Predicated region
        $region21: #{tpu_custom_call.1} parent=11 // pred_check
          %p311 = pneg %p199
        $region22: #{tpu_custom_call.1} parent=11 // pred_check_branch
          %313 = sbr.rel (%p311) target = $region24
        $region23: #{tpu_custom_call.1} parent=11 // pred_region
          _
        $region24: #{tpu_custom_call.1} parent=11 // pred_fallthru
          _
        // Predicated region
        $region25: #{tpu_custom_call.1} parent=11 // pred_check
          %p314 = pneg %p220
        $region26: #{tpu_custom_call.1} parent=11 // pred_check_branch
          %316 = sbr.rel (%p314) target = $region28
        $region27: #{tpu_custom_call.1} parent=11 // pred_region
          _
        $region28: #{tpu_custom_call.1} parent=11 // pred_fallthru
          _
        // Predicated region
        $region29: #{tpu_custom_call.1} parent=11 // pred_check
          %p317 = pneg %p241
        $region30: #{tpu_custom_call.1} parent=11 // pred_check_branch
          %319 = sbr.rel (%p317) target = $region32
        $region31: #{tpu_custom_call.1} parent=11 // pred_region
          _
        $region32: #{tpu_custom_call.1} parent=11 // pred_fallthru
          _
        // Predicated region
        $region33: #{tpu_custom_call.1} parent=11 // pred_check
          %p320 = pneg %p262
        $region34: #{tpu_custom_call.1} parent=11 // pred_check_branch
          %322 = sbr.rel (%p320) target = $region36
        $region35: #{tpu_custom_call.1} parent=11 // pred_region
          _
        $region36: #{tpu_custom_call.1} parent=11 // pred_fallthru
          _
      $region12: #{tpu_custom_call.1} parent=5 // pred_fallthru
        _
      %p323 = scmp.lt.s32.totalorder %s24, 2
      // Predicated region
      $region37: #{tpu_custom_call.1} parent=5 // pred_check
        %p324 = pneg %p323
      $region38: #{tpu_custom_call.1} parent=5 // pred_check_branch
        %326 = sbr.rel (%p324) target = $region40
      $region39: #{tpu_custom_call.1} parent=5 // pred_region
        // Predicated region
        $region41: #{tpu_custom_call.1} parent=39 // pred_check
          %p327 = pneg %p66
        $region42: #{tpu_custom_call.1} parent=39 // pred_check_branch
          %329 = sbr.rel (%p327) target = $region44
        $region43: #{tpu_custom_call.1} parent=39 // pred_region
          %s330 = smul.u32 %s32, 16
          %s331 = ssub.s32 %s330, 1
          %p332 = scmp.gt.s32.totalorder %s331, 0
          %s333 = scalar_select %p332, %s331, 0
          %p334 = scmp.lt.s32.totalorder %s31, 1
          %s335 = scalar_select %p334, %s31, 1
          %p336 = scmp.lt.s32.totalorder %s333, 15
          %s337 = scalar_select %p336, %s333, 15
          %s338 = smul.addr %s337, 2
          %s339 = smul.addr %s335, 32
          %s340 = sadd.s32 %s338, %s339
          %s341 = smul.addr %s340, 4
          %s342 = scalar_lea.vmem %s0, %s341
          %s343 = smul.u32 %s32, 16
          %s344 = ssub.s32 %s343, 1
          %p345 = scmp.gt.s32.totalorder %s344, 0
          %s346 = scalar_select %p345, %s344, 0
        $region44: #{tpu_custom_call.1} parent=39 // pred_fallthru
          _
        // Predicated region
        $region45: #{tpu_custom_call.1} parent=39 // pred_check
          %p347 = pneg %p94
        $region46: #{tpu_custom_call.1} parent=39 // pred_check_branch
          %349 = sbr.rel (%p347) target = $region48
        $region47: #{tpu_custom_call.1} parent=39 // pred_region
          %s350 = sand.u32 %s84, 1
          %s351 = scalar_lea.sflag [#allocation3], %s350
          %s352 = sand.u32 %s84, 1
          %s353 = smul.addr %s352, 128
          %s354 = scalar_lea.vmem [#allocation2], %s353
          %s355 = smul.u32 16, %s32
          %s357 = ssub.s32 2048, 2048
          %358 = vsyncadd %s351, %s357
          %s359 = smul.addr %s355, 2
          %s360 = smul.addr %s31, 32
          %s361 = sadd.s32 %s359, %s360
          %s362 = smul.addr %s361, 64
          %s363 = scalar_lea.hbm %s1, %s362
          %s364 = sshll.u32 %s354, 4
          %s365 = int_to_ptr.vmem [resolvable:$true] %s364
          %370 = dma.hbm_to_vmem [thread:$0]  %s363, 2048, %s365, %s351, 64, 64, 4
        $region48: #{tpu_custom_call.1} parent=39 // pred_fallthru
          _
        // Predicated region
        $region49: #{tpu_custom_call.1} parent=39 // pred_check
          %p371 = pneg %p130
        $region50: #{tpu_custom_call.1} parent=39 // pred_check_branch
          %373 = sbr.rel (%p371) target = $region52
        $region51: #{tpu_custom_call.1} parent=39 // pred_region
          %s374 = sand.u32 %s120, 1
          %s375 = scalar_lea.sflag [#allocation6], %s374
          %s376 = sand.u32 %s120, 1
          %s377 = smul.addr %s376, 8
          %s378 = scalar_lea.vmem [#allocation5], %s377
          %s379 = smul.u32 %s32, 16
          %s380 = sadd.s32 %s379, 16
          %p381 = scmp.lt.s32.totalorder %s380, 15
          %s382 = scalar_select %p381, %s380, 15
          %s384 = ssub.s32 128, 128
          %385 = vsyncadd %s375, %s384
          %s386 = smul.addr %s382, 2
          %s387 = smul.addr %s31, 32
          %s388 = sadd.s32 %s386, %s387
          %s389 = smul.addr %s388, 64
          %s390 = scalar_lea.hbm %s2, %s389
          %s391 = sshll.u32 %s378, 4
          %s392 = int_to_ptr.vmem [resolvable:$true] %s391
          %397 = dma.hbm_to_vmem [thread:$0]  %s390, 128, %s392, %s375, 64, 64, 4
        $region52: #{tpu_custom_call.1} parent=39 // pred_fallthru
          _
      $region40: #{tpu_custom_call.1} parent=5 // pred_fallthru
        _
      %p398 = scmp.le.s32.totalorder 1, %s24
      %p399 = scmp.lt.s32.totalorder %s24, 3
      %p400 = pnand %p398, %p399
      %p401 = pneg %p400
      // Predicated region
      $region53: #{tpu_custom_call.1} parent=5 // pred_check
        _
      $region54: #{tpu_custom_call.1} parent=5 // pred_check_branch
        %403 = sbr.rel (%p400) target = $region56
      $region55: #{tpu_custom_call.1} parent=5 // pred_region
        %s404 = ssub.s32 %s24, 1
        %s405 = sand.u32 %s87, 1
        %s406 = scalar_lea.sflag [#allocation3], %s405
        %s407 = sand.u32 %s87, 1
        %s408 = smul.addr %s407, 128
        %s409 = scalar_lea.vmem [#allocation2], %s408
        // Predicated region
        $region57: #{tpu_custom_call.1} parent=55 // pred_check
          %p410 = pneg %p100
        $region58: #{tpu_custom_call.1} parent=55 // pred_check_branch
          %412 = sbr.rel (%p410) target = $region60
        $region59: #{tpu_custom_call.1} parent=55 // pred_region
          %413 = dma.done %s406, 2048
        $region60: #{tpu_custom_call.1} parent=55 // pred_fallthru
          _
        %s414 = sand.u32 %s123, 1
        %s415 = scalar_lea.sflag [#allocation6], %s414
        %s416 = sand.u32 %s123, 1
        %s417 = smul.addr %s416, 8
        %s418 = scalar_lea.vmem [#allocation5], %s417
        // Predicated region
        $region61: #{tpu_custom_call.1} parent=55 // pred_check
          %p419 = pneg %p136
        $region62: #{tpu_custom_call.1} parent=55 // pred_check_branch
          %421 = sbr.rel (%p419) target = $region64
        $region63: #{tpu_custom_call.1} parent=55 // pred_region
          %422 = dma.done %s415, 128
        $region64: #{tpu_custom_call.1} parent=55 // pred_fallthru
          _
        %s423 = smul.u32 %s34, 16
        %s424 = ssub.s32 %s423, 1
        %p425 = scmp.gt.s32.totalorder %s424, 0
        %s426 = scalar_select %p425, %s424, 0
        %p427 = scmp.lt.s32.totalorder %s33, 1
        %s428 = scalar_select %p427, %s33, 1
        %p429 = scmp.lt.s32.totalorder %s426, 15
        %s430 = scalar_select %p429, %s426, 15
        %s431 = smul.addr %s430, 2
        %s432 = smul.addr %s428, 32
        %s433 = sadd.s32 %s431, %s432
        %s434 = smul.addr %s433, 4
        %s435 = scalar_lea.vmem %s0, %s434
        %p436 = pneg %p72
        %p437 = pneg %p69
        %s438 = sand.u32 %s87, 1
        %s439 = scalar_lea.sflag [#allocation3], %s438
        %s440 = sand.u32 %s87, 1
        %s441 = smul.addr %s440, 128
        %s442 = scalar_lea.vmem [#allocation2], %s441
        %p443 = pneg %p100
        %p444 = pneg %p97
        %s445 = sand.u32 %s123, 1
        %s446 = scalar_lea.sflag [#allocation6], %s445
        %s447 = sand.u32 %s123, 1
        %s448 = smul.addr %s447, 8
        %s449 = scalar_lea.vmem [#allocation5], %s448
        %p450 = pneg %p136
        %p451 = pneg %p133
        %p452 = pneg %p157
        %p453 = pneg %p154
        %p454 = pneg %p178
        %p455 = pneg %p175
        %p456 = pneg %p199
        %p457 = pneg %p196
        %p458 = pneg %p220
        %p459 = pneg %p217
        %p460 = pneg %p241
        %p461 = pneg %p238
        %p462 = pneg %p262
        %p463 = pneg %p259
        %p464 = pneg %p290
        %p465 = pneg %p287
        %s466 = sand.u32 %s277, 1
        %s467 = scalar_lea.sflag [#allocation4], %s466
        %s468 = sand.u32 %s277, 1
        %s469 = smul.addr %s468, 128
        %s470 = scalar_lea.vmem [#allocation7], %s469
        %s471 = smul.u32 %s34, 16
        %s472 = ssub.s32 %s471, 1
        %p473 = scmp.gt.s32.totalorder %s472, 0
        %s474 = scalar_select %p473, %s472, 0
        %p475 = scmp.lt.s32.totalorder %s33, 1
        %s476 = scalar_select %p475, %s33, 1
        %p477 = scmp.lt.s32.totalorder %s474, 15
        %s478 = scalar_select %p477, %s474, 15
        %s479 = smul.addr %s478, 2
        %s480 = smul.addr %s476, 32
        %s481 = sadd.s32 %s479, %s480
        %s482 = smul.addr %s481, 4
        %s483 = scalar_lea.vmem %s0, %s482
        %s484 = smul.u32 %s34, 16
        %s485 = ssub.s32 %s484, 1
        %p486 = scmp.gt.s32.totalorder %s485, 0
        %s487 = scalar_select %p486, %s485, 0
        %s488 = smul.u32 16, %s34
        %s489 = smul.u32 %s34, 16
        %s490 = sadd.s32 %s489, 16
        %p491 = scmp.lt.s32.totalorder %s490, 15
        %s492 = scalar_select %p491, %s490, 15
        %s493 = smul.u32 16, %s34
        %v495 = vld [vmem:[%s483] sm:$0xf]
        %v496 = vld [vmem:[%s483 + $0x4] sm:$0xf]
        %v497 = vld [vmem:[%s409] sm:$0xf]
        %v498 = vld [vmem:[%s409 + $0x4] sm:$0xf]
        %v499 = vld [vmem:[%s409 + $0x8] sm:$0xf]
        %v500 = vld [vmem:[%s409 + $0xc] sm:$0xf]
        %v501 = vld [vmem:[%s409 + $0x10] sm:$0xf]
        %v502 = vld [vmem:[%s409 + $0x14] sm:$0xf]
        %v503 = vld [vmem:[%s409 + $0x18] sm:$0xf]
        %v504 = vld [vmem:[%s409 + $0x1c] sm:$0xf]
        %v505 = vld [vmem:[%s409 + $0x20] sm:$0xf]
        %v506 = vld [vmem:[%s409 + $0x24] sm:$0xf]
        %v507 = vld [vmem:[%s409 + $0x28] sm:$0xf]
        %v508 = vld [vmem:[%s409 + $0x2c] sm:$0xf]
        %v509 = vld [vmem:[%s409 + $0x30] sm:$0xf]
        %v510 = vld [vmem:[%s409 + $0x34] sm:$0xf]
        %v511 = vld [vmem:[%s409 + $0x38] sm:$0xf]
        %v512 = vld [vmem:[%s409 + $0x3c] sm:$0xf]
        %v513 = vld [vmem:[%s409 + $0x40] sm:$0xf]
        %v514 = vld [vmem:[%s409 + $0x44] sm:$0xf]
        %v515 = vld [vmem:[%s409 + $0x48] sm:$0xf]
        %v516 = vld [vmem:[%s409 + $0x4c] sm:$0xf]
        %v517 = vld [vmem:[%s409 + $0x50] sm:$0xf]
        %v518 = vld [vmem:[%s409 + $0x54] sm:$0xf]
        %v519 = vld [vmem:[%s409 + $0x58] sm:$0xf]
        %v520 = vld [vmem:[%s409 + $0x5c] sm:$0xf]
        %v521 = vld [vmem:[%s409 + $0x60] sm:$0xf]
        %v522 = vld [vmem:[%s409 + $0x64] sm:$0xf]
        %v523 = vld [vmem:[%s409 + $0x68] sm:$0xf]
        %v524 = vld [vmem:[%s409 + $0x6c] sm:$0xf]
        %v525 = vld [vmem:[%s409 + $0x70] sm:$0xf]
        %v526 = vld [vmem:[%s409 + $0x74] sm:$0xf]
        %v527 = vld [vmem:[%s409 + $0x78] sm:$0xf]
        %v528 = vld [vmem:[%s409 + $0x7c] sm:$0xf]
        %v529 = vld [vmem:[%s418] sm:$0xf]
        %v530 = vld [vmem:[%s418 + $0x4] sm:$0xf]
        %v531 = vld [vmem:[%s3] sm:$0xf]
        %v532 = vld [vmem:[%s3 + $0x4] sm:$0xf]
        %v533 = vld [vmem:[%s3 + $0x8] sm:$0xf]
        %v534 = vld [vmem:[%s3 + $0xc] sm:$0xf]
        %v535 = vld [vmem:[%s3 + $0x10] sm:$0xf]
        %v536 = vld [vmem:[%s3 + $0x14] sm:$0xf]
        %v537 = vld [vmem:[%s3 + $0x18] sm:$0xf]
        %v538 = vld [vmem:[%s3 + $0x1c] sm:$0xf]
        %v539 = vld [vmem:[%s3 + $0x20] sm:$0xf]
        %v540 = vld [vmem:[%s3 + $0x24] sm:$0xf]
        %v541 = vld [vmem:[%s3 + $0x28] sm:$0xf]
        %v542 = vld [vmem:[%s3 + $0x2c] sm:$0xf]
        %v543 = vld [vmem:[%s3 + $0x30] sm:$0xf]
        %v544 = vld [vmem:[%s3 + $0x34] sm:$0xf]
        %v545 = vld [vmem:[%s3 + $0x38] sm:$0xf]
        %v546 = vld [vmem:[%s3 + $0x3c] sm:$0xf]
        %v547 = vld [vmem:[%s4] sm:$0x1]
        %v549 = vlaneseq
        %v550 = vshrl.u32 %v549, 7
        %v551 = vsub.s32 0, %v550
        %v552 = vrot.slane %v547, %v551
        %v590 = vunpack.c.l.b16 %v495
        %v591 = vunpack.c.l.b16 %v496
        %v592 = vunpack.c.l.b16 %v497
        %v593 = vunpack.c.l.b16 %v498
        %v594 = vunpack.c.l.b16 %v499
        %v595 = vunpack.c.l.b16 %v500
        %v596 = vunpack.c.l.b16 %v501
        %v597 = vunpack.c.l.b16 %v502
        %v598 = vunpack.c.l.b16 %v503
        %v599 = vunpack.c.l.b16 %v504
        %v600 = vunpack.c.l.b16 %v505
        %v601 = vunpack.c.l.b16 %v506
        %v602 = vunpack.c.l.b16 %v507
        %v603 = vunpack.c.l.b16 %v508
        %v604 = vunpack.c.l.b16 %v509
        %v605 = vunpack.c.l.b16 %v510
        %v606 = vunpack.c.l.b16 %v511
        %v607 = vunpack.c.l.b16 %v512
        %v608 = vunpack.c.l.b16 %v513
        %v609 = vunpack.c.l.b16 %v514
        %v610 = vunpack.c.l.b16 %v515
        %v611 = vunpack.c.l.b16 %v516
        %v612 = vunpack.c.l.b16 %v517
        %v613 = vunpack.c.l.b16 %v518
        %v614 = vunpack.c.l.b16 %v519
        %v615 = vunpack.c.l.b16 %v520
        %v616 = vunpack.c.l.b16 %v521
        %v617 = vunpack.c.l.b16 %v522
        %v618 = vunpack.c.l.b16 %v523
        %v619 = vunpack.c.l.b16 %v524
        %v620 = vunpack.c.l.b16 %v525
        %v621 = vunpack.c.l.b16 %v526
        %v622 = vunpack.c.l.b16 %v527
        %v623 = vunpack.c.l.b16 %v528
        %v624 = vunpack.c.l.b16 %v529
        %v625 = vunpack.c.l.b16 %v530
        %v626 = vpack.c.b16 %v591, %v590
        %v627 = vpack.c.b16 %v593, %v592
        %v628 = vpack.c.b16 %v595, %v594
        %v629 = vpack.c.b16 %v597, %v596
        %v630 = vpack.c.b16 %v599, %v598
        %v631 = vpack.c.b16 %v601, %v600
        %v632 = vpack.c.b16 %v603, %v602
        %v633 = vpack.c.b16 %v605, %v604
        %v634 = vpack.c.b16 %v607, %v606
        %v635 = vpack.c.b16 %v609, %v608
        %v636 = vpack.c.b16 %v611, %v610
        %v637 = vpack.c.b16 %v613, %v612
        %v638 = vpack.c.b16 %v615, %v614
        %v639 = vpack.c.b16 %v617, %v616
        %v640 = vpack.c.b16 %v619, %v618
        %v641 = vpack.c.b16 %v621, %v620
        %v642 = vpack.c.b16 %v623, %v622
        %v643 = vpack.c.b16 %v625, %v624
        %v678 = vunpack.c.l.b16 %v531
        %v679 = vunpack.c.l.b16 %v532
        %v680 = vunpack.c.l.b16 %v533
        %v681 = vunpack.c.l.b16 %v534
        %v682 = vunpack.c.l.b16 %v535
        %v683 = vunpack.c.l.b16 %v536
        %v684 = vunpack.c.l.b16 %v537
        %v685 = vunpack.c.l.b16 %v538
        %v686 = vunpack.c.l.b16 %v539
        %v687 = vunpack.c.l.b16 %v540
        %v688 = vunpack.c.l.b16 %v541
        %v689 = vunpack.c.l.b16 %v542
        %v690 = vunpack.c.l.b16 %v543
        %v691 = vunpack.c.l.b16 %v544
        %v692 = vunpack.c.l.b16 %v545
        %v693 = vunpack.c.l.b16 %v546
        %v694 = vpack.c.b16 %v679, %v678
        %v695 = vpack.c.b16 %v681, %v680
        %v696 = vpack.c.b16 %v683, %v682
        %v697 = vpack.c.b16 %v685, %v684
        %v698 = vpack.c.b16 %v687, %v686
        %v699 = vpack.c.b16 %v689, %v688
        %v700 = vpack.c.b16 %v691, %v690
        %v701 = vpack.c.b16 %v693, %v692
        %710 = vmatprep.subr.bf16.mxu0 0
        %711 = vmatpush1.bf16.msra.mxu0 %v694
        %712 = vmatprep.subr.bf16.mxu0 0
        %713 = vmatpush1.bf16.msra.mxu0 %v695
        %714 = vmatprep.subr.bf16.mxu0 0
        %715 = vmatpush1.bf16.msra.mxu0 %v696
        %716 = vmatprep.subr.bf16.mxu0 0
        %717 = vmatpush1.bf16.msra.mxu0 %v697
        %718 = vmatprep.subr.bf16.mxu0 0
        %719 = vmatpush1.bf16.msra.mxu0 %v698
        %720 = vmatprep.subr.bf16.mxu0 0
        %721 = vmatpush1.bf16.msra.mxu0 %v699
        %722 = vmatprep.subr.bf16.mxu0 0
        %723 = vmatpush1.bf16.msra.mxu0 %v700
        %724 = vmatprep.subr.bf16.mxu0 0
        %725 = vmatpush1.bf16.msra.mxu0 %v701
        %726 = vmatprep.subr.bf16.mxu0 0
        %727 = vmatpush1.bf16.msra.mxu0 0
        %728 = vmatprep.subr.bf16.mxu0 0
        %729 = vmatpush1.bf16.msra.mxu0 0
        %730 = vmatprep.subr.bf16.mxu0 0
        %731 = vmatpush1.bf16.msra.mxu0 0
        %732 = vmatprep.subr.bf16.mxu0 0
        %733 = vmatpush1.bf16.msra.mxu0 0
        %734 = vmatprep.subr.bf16.mxu0 0
        %735 = vmatpush1.bf16.msra.mxu0 0
        %736 = vmatprep.subr.bf16.mxu0 0
        %737 = vmatpush1.bf16.msra.mxu0 0
        %738 = vmatprep.subr.bf16.mxu0 0
        %739 = vmatpush1.bf16.msra.mxu0 0
        %740 = vmatprep.subr.bf16.mxu0 0
        %741 = vmatpush1.bf16.msra.mxu0 0
        %742 = vmatprep.mubr.bf16.mxu0 0
        %743 = vmatmul.mubr.bf16.gmra.mrb[0].mxu0 %v626
        %v744 = vpop.f32.mrb[0].mxu0
        %v745 = vadd.f32 %v552, %v744
        %v746 = vpop.f32.mrb[0].mxu0
        %v747 = vpop.f32.mrb[0].mxu0
        %v748 = vadd.f32 %v552, %v747
        %v749 = vpop.f32.mrb[0].mxu0
        %750 = vmatprep.mubr.bf16.mxu0 0
        %751 = vmatmul.mubr.bf16.gmra.mrb[0].mxu0 %v627
        %v752 = vpop.f32.mrb[0].mxu0
        %v753 = vadd.f32 %v552, %v752
        %v754 = vpop.f32.mrb[0].mxu0
        %v755 = vpop.f32.mrb[0].mxu0
        %v756 = vadd.f32 %v552, %v755
        %v757 = vpop.f32.mrb[0].mxu0
        %758 = vmatprep.mubr.bf16.mxu0 0
        %759 = vmatmul.mubr.bf16.gmra.mrb[0].mxu0 %v628
        %v760 = vpop.f32.mrb[0].mxu0
        %v761 = vadd.f32 %v552, %v760
        %v762 = vpop.f32.mrb[0].mxu0
        %v763 = vpop.f32.mrb[0].mxu0
        %v764 = vadd.f32 %v552, %v763
        %v765 = vpop.f32.mrb[0].mxu0
        %766 = vmatprep.mubr.bf16.mxu0 0
        %767 = vmatmul.mubr.bf16.gmra.mrb[0].mxu0 %v629
        %v768 = vpop.f32.mrb[0].mxu0
        %v769 = vadd.f32 %v552, %v768
        %v770 = vpop.f32.mrb[0].mxu0
        %v771 = vpop.f32.mrb[0].mxu0
        %v772 = vadd.f32 %v552, %v771
        %v773 = vpop.f32.mrb[0].mxu0
        %774 = vmatprep.mubr.bf16.mxu0 0
        %775 = vmatmul.mubr.bf16.gmra.mrb[0].mxu0 %v630
        %v776 = vpop.f32.mrb[0].mxu0
        %v777 = vadd.f32 %v552, %v776
        %v778 = vpop.f32.mrb[0].mxu0
        %v779 = vpop.f32.mrb[0].mxu0
        %v780 = vadd.f32 %v552, %v779
        %v781 = vpop.f32.mrb[0].mxu0
        %782 = vmatprep.mubr.bf16.mxu0 0
        %783 = vmatmul.mubr.bf16.gmra.mrb[0].mxu0 %v631
        %v784 = vpop.f32.mrb[0].mxu0
        %v785 = vadd.f32 %v552, %v784
        %v786 = vpop.f32.mrb[0].mxu0
        %v787 = vpop.f32.mrb[0].mxu0
        %v788 = vadd.f32 %v552, %v787
        %v789 = vpop.f32.mrb[0].mxu0
        %790 = vmatprep.mubr.bf16.mxu0 0
        %791 = vmatmul.mubr.bf16.gmra.mrb[0].mxu0 %v632
        %v792 = vpop.f32.mrb[0].mxu0
        %v793 = vadd.f32 %v552, %v792
        %v794 = vpop.f32.mrb[0].mxu0
        %v795 = vpop.f32.mrb[0].mxu0
        %v796 = vadd.f32 %v552, %v795
        %v797 = vpop.f32.mrb[0].mxu0
        %798 = vmatprep.mubr.bf16.mxu0 0
        %799 = vmatmul.mubr.bf16.gmra.mrb[0].mxu0 %v633
        %v800 = vpop.f32.mrb[0].mxu0
        %v801 = vadd.f32 %v552, %v800
        %v802 = vpop.f32.mrb[0].mxu0
        %v803 = vpop.f32.mrb[0].mxu0
        %v804 = vadd.f32 %v552, %v803
        %v805 = vpop.f32.mrb[0].mxu0
        %806 = vmatprep.mubr.bf16.mxu0 0
        %807 = vmatmul.mubr.bf16.gmra.mrb[0].mxu0 %v634
        %v808 = vpop.f32.mrb[0].mxu0
        %v809 = vadd.f32 %v552, %v808
        %v810 = vpop.f32.mrb[0].mxu0
        %v811 = vpop.f32.mrb[0].mxu0
        %v812 = vadd.f32 %v552, %v811
        %v813 = vpop.f32.mrb[0].mxu0
        %814 = vmatprep.mubr.bf16.mxu0 0
        %815 = vmatmul.mubr.bf16.gmra.mrb[0].mxu0 %v635
        %v816 = vpop.f32.mrb[0].mxu0
        %v817 = vadd.f32 %v552, %v816
        %v818 = vpop.f32.mrb[0].mxu0
        %v819 = vpop.f32.mrb[0].mxu0
        %v820 = vadd.f32 %v552, %v819
        %v821 = vpop.f32.mrb[0].mxu0
        %822 = vmatprep.mubr.bf16.mxu0 0
        %823 = vmatmul.mubr.bf16.gmra.mrb[0].mxu0 %v636
        %v824 = vpop.f32.mrb[0].mxu0
        %v825 = vadd.f32 %v552, %v824
        %v826 = vpop.f32.mrb[0].mxu0
        %v827 = vpop.f32.mrb[0].mxu0
        %v828 = vadd.f32 %v552, %v827
        %v829 = vpop.f32.mrb[0].mxu0
        %830 = vmatprep.mubr.bf16.mxu0 0
        %831 = vmatmul.mubr.bf16.gmra.mrb[0].mxu0 %v637
        %v832 = vpop.f32.mrb[0].mxu0
        %v833 = vadd.f32 %v552, %v832
        %v834 = vpop.f32.mrb[0].mxu0
        %v835 = vpop.f32.mrb[0].mxu0
        %v836 = vadd.f32 %v552, %v835
        %v837 = vpop.f32.mrb[0].mxu0
        %838 = vmatprep.mubr.bf16.mxu0 0
        %839 = vmatmul.mubr.bf16.gmra.mrb[0].mxu0 %v638
        %v840 = vpop.f32.mrb[0].mxu0
        %v841 = vadd.f32 %v552, %v840
        %v842 = vpop.f32.mrb[0].mxu0
        %v843 = vpop.f32.mrb[0].mxu0
        %v844 = vadd.f32 %v552, %v843
        %v845 = vpop.f32.mrb[0].mxu0
        %846 = vmatprep.mubr.bf16.mxu0 0
        %847 = vmatmul.mubr.bf16.gmra.mrb[0].mxu0 %v639
        %v848 = vpop.f32.mrb[0].mxu0
        %v849 = vadd.f32 %v552, %v848
        %v850 = vpop.f32.mrb[0].mxu0
        %v851 = vpop.f32.mrb[0].mxu0
        %v852 = vadd.f32 %v552, %v851
        %v853 = vpop.f32.mrb[0].mxu0
        %854 = vmatprep.mubr.bf16.mxu0 0
        %855 = vmatmul.mubr.bf16.gmra.mrb[0].mxu0 %v640
        %v856 = vpop.f32.mrb[0].mxu0
        %v857 = vadd.f32 %v552, %v856
        %v858 = vpop.f32.mrb[0].mxu0
        %v859 = vpop.f32.mrb[0].mxu0
        %v860 = vadd.f32 %v552, %v859
        %v861 = vpop.f32.mrb[0].mxu0
        %862 = vmatprep.mubr.bf16.mxu0 0
        %863 = vmatmul.mubr.bf16.gmra.mrb[0].mxu0 %v641
        %v864 = vpop.f32.mrb[0].mxu0
        %v865 = vadd.f32 %v552, %v864
        %v866 = vpop.f32.mrb[0].mxu0
        %v867 = vpop.f32.mrb[0].mxu0
        %v868 = vadd.f32 %v552, %v867
        %v869 = vpop.f32.mrb[0].mxu0
        %870 = vmatprep.mubr.bf16.mxu0 0
        %871 = vmatmul.mubr.bf16.gmra.mrb[0].mxu0 %v642
        %v872 = vpop.f32.mrb[0].mxu0
        %v873 = vadd.f32 %v552, %v872
        %v874 = vpop.f32.mrb[0].mxu0
        %v875 = vpop.f32.mrb[0].mxu0
        %v876 = vadd.f32 %v552, %v875
        %v877 = vpop.f32.mrb[0].mxu0
        %878 = vmatprep.mubr.bf16.mxu0 0
        %879 = vmatmul.mubr.bf16.gmra.mrb[0].mxu0 %v643
        %v880 = vpop.f32.mrb[0].mxu0
        %v881 = vadd.f32 %v552, %v880
        %v882 = vpop.f32.mrb[0].mxu0
        %v883 = vpop.f32.mrb[0].mxu0
        %v884 = vadd.f32 %v552, %v883
        %v885 = vpop.f32.mrb[0].mxu0
        %886 = vdwg.mxu0
        %v887 = vmax.f32 %v745, 0.0
        %v888 = vmax.f32 %v748, 0.0
        %v889 = vmax.f32 %v753, 0.0
        %v890 = vmax.f32 %v756, 0.0
        %v891 = vmax.f32 %v761, 0.0
        %v892 = vmax.f32 %v764, 0.0
        %v893 = vmax.f32 %v769, 0.0
        %v894 = vmax.f32 %v772, 0.0
        %v895 = vmax.f32 %v777, 0.0
        %v896 = vmax.f32 %v780, 0.0
        %v897 = vmax.f32 %v785, 0.0
        %v898 = vmax.f32 %v788, 0.0
        %v899 = vmax.f32 %v793, 0.0
        %v900 = vmax.f32 %v796, 0.0
        %v901 = vmax.f32 %v801, 0.0
        %v902 = vmax.f32 %v804, 0.0
        %v903 = vmax.f32 %v809, 0.0
        %v904 = vmax.f32 %v812, 0.0
        %v905 = vmax.f32 %v817, 0.0
        %v906 = vmax.f32 %v820, 0.0
        %v907 = vmax.f32 %v825, 0.0
        %v908 = vmax.f32 %v828, 0.0
        %v909 = vmax.f32 %v833, 0.0
        %v910 = vmax.f32 %v836, 0.0
        %v911 = vmax.f32 %v841, 0.0
        %v912 = vmax.f32 %v844, 0.0
        %v913 = vmax.f32 %v849, 0.0
        %v914 = vmax.f32 %v852, 0.0
        %v915 = vmax.f32 %v857, 0.0
        %v916 = vmax.f32 %v860, 0.0
        %v917 = vmax.f32 %v865, 0.0
        %v918 = vmax.f32 %v868, 0.0
        %v919 = vmax.f32 %v873, 0.0
        %v920 = vmax.f32 %v876, 0.0
        %v921 = vmax.f32 %v881, 0.0
        %v922 = vmax.f32 %v884, 0.0
        %p923 = scmp.gt.s32.totalorder %s34, 0
        %s924 = scalar_select %p923, 1.0, 0.0
        %p925 = scmp.lt.s32.totalorder %s34, 0
        %s926 = scalar_select %p925, 1.0, 0.0
        %v927 = vstv %s926
        %v928 = vstv %s924
        %v929 = vmul.f32 %v887, %v928
        %v930 = vmul.f32 %v888, %v928
        %v931 = vmul.f32 %v921, %v927
        %v932 = vmul.f32 %v922, %v927
        %v933 = vpack.c.bf16 %v930, %v929
        %v934 = vpack.c.bf16 %v890, %v889
        %v935 = vpack.c.bf16 %v892, %v891
        %v936 = vpack.c.bf16 %v894, %v893
        %v937 = vpack.c.bf16 %v896, %v895
        %v938 = vpack.c.bf16 %v898, %v897
        %v939 = vpack.c.bf16 %v900, %v899
        %v940 = vpack.c.bf16 %v902, %v901
        %v941 = vpack.c.bf16 %v904, %v903
        %v942 = vpack.c.bf16 %v906, %v905
        %v943 = vpack.c.bf16 %v908, %v907
        %v944 = vpack.c.bf16 %v910, %v909
        %v945 = vpack.c.bf16 %v912, %v911
        %v946 = vpack.c.bf16 %v914, %v913
        %v947 = vpack.c.bf16 %v916, %v915
        %v948 = vpack.c.bf16 %v918, %v917
        %v949 = vpack.c.bf16 %v920, %v919
        %v950 = vpack.c.bf16 %v932, %v931
        %v952 = vshrl.u32 %v933, 16
        %v954 = vrot.slane %v952, 7
        %v955 = vshll.u32 %v933, 16
        %v957 = vor.u32 %v954, %v955
        %v959 = vshrl.u32 %v934, 16
        %v961 = vrot.slane %v959, 7
        %v962 = vshll.u32 %v934, 16
        %v964 = vor.u32 %v961, %v962
        %v966 = vshrl.u32 %v935, 16
        %v968 = vrot.slane %v966, 7
        %v969 = vshll.u32 %v935, 16
        %v971 = vor.u32 %v968, %v969
        %v973 = vshrl.u32 %v936, 16
        %v975 = vrot.slane %v973, 7
        %v976 = vshll.u32 %v936, 16
        %v978 = vor.u32 %v975, %v976
        %v980 = vshrl.u32 %v937, 16
        %v982 = vrot.slane %v980, 7
        %v983 = vshll.u32 %v937, 16
        %v985 = vor.u32 %v982, %v983
        %v987 = vshrl.u32 %v938, 16
        %v989 = vrot.slane %v987, 7
        %v990 = vshll.u32 %v938, 16
        %v992 = vor.u32 %v989, %v990
        %v994 = vshrl.u32 %v939, 16
        %v996 = vrot.slane %v994, 7
        %v997 = vshll.u32 %v939, 16
        %v999 = vor.u32 %v996, %v997
        %v1001 = vshrl.u32 %v940, 16
        %v1003 = vrot.slane %v1001, 7
        %v1004 = vshll.u32 %v940, 16
        %v1006 = vor.u32 %v1003, %v1004
        %v1008 = vshrl.u32 %v941, 16
        %v1010 = vrot.slane %v1008, 7
        %v1011 = vshll.u32 %v941, 16
        %v1013 = vor.u32 %v1010, %v1011
        %v1015 = vshrl.u32 %v942, 16
        %v1017 = vrot.slane %v1015, 7
        %v1018 = vshll.u32 %v942, 16
        %v1020 = vor.u32 %v1017, %v1018
        %v1022 = vshrl.u32 %v943, 16
        %v1024 = vrot.slane %v1022, 7
        %v1025 = vshll.u32 %v943, 16
        %v1027 = vor.u32 %v1024, %v1025
        %v1029 = vshrl.u32 %v944, 16
        %v1031 = vrot.slane %v1029, 7
        %v1032 = vshll.u32 %v944, 16
        %v1034 = vor.u32 %v1031, %v1032
        %v1036 = vshrl.u32 %v945, 16
        %v1038 = vrot.slane %v1036, 7
        %v1039 = vshll.u32 %v945, 16
        %v1041 = vor.u32 %v1038, %v1039
        %v1043 = vshrl.u32 %v946, 16
        %v1045 = vrot.slane %v1043, 7
        %v1046 = vshll.u32 %v946, 16
        %v1048 = vor.u32 %v1045, %v1046
        %v1050 = vshrl.u32 %v947, 16
        %v1052 = vrot.slane %v1050, 7
        %v1053 = vshll.u32 %v947, 16
        %v1055 = vor.u32 %v1052, %v1053
        %v1057 = vshrl.u32 %v948, 16
        %v1059 = vrot.slane %v1057, 7
        %v1060 = vshll.u32 %v948, 16
        %v1062 = vor.u32 %v1059, %v1060
        %v1064 = vshrl.u32 %v949, 16
        %v1066 = vrot.slane %v1064, 7
        %v1067 = vshll.u32 %v949, 16
        %v1069 = vor.u32 %v1066, %v1067
        %v1071 = vshrl.u32 %v950, 16
        %v1073 = vrot.slane %v1071, 7
        %v1074 = vshll.u32 %v950, 16
        %v1076 = vor.u32 %v1073, %v1074
        %vm1095 = vcmask 1040384
        %vm1096 = vsmask.f32 256
        %vm1097 = vmand %vm1095, %vm1096
        %v1098 = vsel %vm1097, 0, %v957
        %v1099 = vsel %vm1097, 0, %v964
        %v1100 = vsel %vm1097, 0, %v971
        %v1101 = vsel %vm1097, 0, %v978
        %v1102 = vsel %vm1097, 0, %v985
        %v1103 = vsel %vm1097, 0, %v992
        %v1104 = vsel %vm1097, 0, %v999
        %v1105 = vsel %vm1097, 0, %v1006
        %v1106 = vsel %vm1097, 0, %v1013
        %v1107 = vsel %vm1097, 0, %v1020
        %v1108 = vsel %vm1097, 0, %v1027
        %v1109 = vsel %vm1097, 0, %v1034
        %v1110 = vsel %vm1097, 0, %v1041
        %v1111 = vsel %vm1097, 0, %v1048
        %v1112 = vsel %vm1097, 0, %v1055
        %v1113 = vsel %vm1097, 0, %v1062
        %v1114 = vsel %vm1097, 0, %v1069
        %v1115 = vsel %vm1097, 0, %v1076
        %v1116 = vrot.slane %v955, 1
        %v1117 = vor.u32 %v952, %v1116
        %v1118 = vrot.slane %v962, 1
        %v1119 = vor.u32 %v959, %v1118
        %v1120 = vrot.slane %v969, 1
        %v1121 = vor.u32 %v966, %v1120
        %v1122 = vrot.slane %v976, 1
        %v1123 = vor.u32 %v973, %v1122
        %v1124 = vrot.slane %v983, 1
        %v1125 = vor.u32 %v980, %v1124
        %v1126 = vrot.slane %v990, 1
        %v1127 = vor.u32 %v987, %v1126
        %v1128 = vrot.slane %v997, 1
        %v1129 = vor.u32 %v994, %v1128
        %v1130 = vrot.slane %v1004, 1
        %v1131 = vor.u32 %v1001, %v1130
        %v1132 = vrot.slane %v1011, 1
        %v1133 = vor.u32 %v1008, %v1132
        %v1134 = vrot.slane %v1018, 1
        %v1135 = vor.u32 %v1015, %v1134
        %v1136 = vrot.slane %v1025, 1
        %v1137 = vor.u32 %v1022, %v1136
        %v1138 = vrot.slane %v1032, 1
        %v1139 = vor.u32 %v1029, %v1138
        %v1140 = vrot.slane %v1039, 1
        %v1141 = vor.u32 %v1036, %v1140
        %v1142 = vrot.slane %v1046, 1
        %v1143 = vor.u32 %v1043, %v1142
        %v1144 = vrot.slane %v1053, 1
        %v1145 = vor.u32 %v1050, %v1144
        %v1146 = vrot.slane %v1060, 1
        %v1147 = vor.u32 %v1057, %v1146
        %v1148 = vrot.slane %v1067, 1
        %v1149 = vor.u32 %v1064, %v1148
        %v1150 = vrot.slane %v1074, 1
        %v1151 = vor.u32 %v1071, %v1150
        %vm1170 = vcmask 1047552
        %vm1171 = vsmask.f32 7424
        %vm1172 = vmand %vm1170, %vm1171
        %v1173 = vsel %vm1172, %v1117, 0
        %v1174 = vsel %vm1172, %v1119, 0
        %v1175 = vsel %vm1172, %v1121, 0
        %v1176 = vsel %vm1172, %v1123, 0
        %v1177 = vsel %vm1172, %v1125, 0
        %v1178 = vsel %vm1172, %v1127, 0
        %v1179 = vsel %vm1172, %v1129, 0
        %v1180 = vsel %vm1172, %v1131, 0
        %v1181 = vsel %vm1172, %v1133, 0
        %v1182 = vsel %vm1172, %v1135, 0
        %v1183 = vsel %vm1172, %v1137, 0
        %v1184 = vsel %vm1172, %v1139, 0
        %v1185 = vsel %vm1172, %v1141, 0
        %v1186 = vsel %vm1172, %v1143, 0
        %v1187 = vsel %vm1172, %v1145, 0
        %v1188 = vsel %vm1172, %v1147, 0
        %v1189 = vsel %vm1172, %v1149, 0
        %v1190 = vsel %vm1172, %v1151, 0
        %1209 = vrot.lane.b32.xlu0 %v933, 32
        %v1210 = vpop.permute.xlu0 %1209
        %1211 = vrot.lane.b32.xlu0 %v934, 32
        %v1212 = vpop.permute.xlu0 %1211
        %1213 = vrot.lane.b32.xlu0 %v935, 32
        %v1214 = vpop.permute.xlu0 %1213
        %1215 = vrot.lane.b32.xlu0 %v936, 32
        %v1216 = vpop.permute.xlu0 %1215
        %1217 = vrot.lane.b32.xlu0 %v937, 32
        %v1218 = vpop.permute.xlu0 %1217
        %1219 = vrot.lane.b32.xlu0 %v938, 32
        %v1220 = vpop.permute.xlu0 %1219
        %1221 = vrot.lane.b32.xlu0 %v939, 32
        %v1222 = vpop.permute.xlu0 %1221
        %1223 = vrot.lane.b32.xlu0 %v940, 32
        %v1224 = vpop.permute.xlu0 %1223
        %1225 = vrot.lane.b32.xlu0 %v941, 32
        %v1226 = vpop.permute.xlu0 %1225
        %1227 = vrot.lane.b32.xlu0 %v942, 32
        %v1228 = vpop.permute.xlu0 %1227
        %1229 = vrot.lane.b32.xlu0 %v943, 32
        %v1230 = vpop.permute.xlu0 %1229
        %1231 = vrot.lane.b32.xlu0 %v944, 32
        %v1232 = vpop.permute.xlu0 %1231
        %1233 = vrot.lane.b32.xlu0 %v945, 32
        %v1234 = vpop.permute.xlu0 %1233
        %1235 = vrot.lane.b32.xlu0 %v946, 32
        %v1236 = vpop.permute.xlu0 %1235
        %1237 = vrot.lane.b32.xlu0 %v947, 32
        %v1238 = vpop.permute.xlu0 %1237
        %1239 = vrot.lane.b32.xlu0 %v948, 32
        %v1240 = vpop.permute.xlu0 %1239
        %1241 = vrot.lane.b32.xlu0 %v949, 32
        %v1242 = vpop.permute.xlu0 %1241
        %1243 = vrot.lane.b32.xlu0 %v950, 32
        %v1244 = vpop.permute.xlu0 %1243
        %1263 = vrot.lane.b32.xlu0 %v1173, 64
        %v1264 = vpop.permute.xlu0 %1263
        %1265 = vrot.lane.b32.xlu0 %v1174, 64
        %v1266 = vpop.permute.xlu0 %1265
        %1267 = vrot.lane.b32.xlu0 %v1175, 64
        %v1268 = vpop.permute.xlu0 %1267
        %1269 = vrot.lane.b32.xlu0 %v1176, 64
        %v1270 = vpop.permute.xlu0 %1269
        %1271 = vrot.lane.b32.xlu0 %v1177, 64
        %v1272 = vpop.permute.xlu0 %1271
        %1273 = vrot.lane.b32.xlu0 %v1178, 64
        %v1274 = vpop.permute.xlu0 %1273
        %1275 = vrot.lane.b32.xlu0 %v1179, 64
        %v1276 = vpop.permute.xlu0 %1275
        %1277 = vrot.lane.b32.xlu0 %v1180, 64
        %v1278 = vpop.permute.xlu0 %1277
        %1279 = vrot.lane.b32.xlu0 %v1181, 64
        %v1280 = vpop.permute.xlu0 %1279
        %1281 = vrot.lane.b32.xlu0 %v1182, 64
        %v1282 = vpop.permute.xlu0 %1281
        %1283 = vrot.lane.b32.xlu0 %v1183, 64
        %v1284 = vpop.permute.xlu0 %1283
        %1285 = vrot.lane.b32.xlu0 %v1184, 64
        %v1286 = vpop.permute.xlu0 %1285
        %1287 = vrot.lane.b32.xlu0 %v1185, 64
        %v1288 = vpop.permute.xlu0 %1287
        %1289 = vrot.lane.b32.xlu0 %v1186, 64
        %v1290 = vpop.permute.xlu0 %1289
        %1291 = vrot.lane.b32.xlu0 %v1187, 64
        %v1292 = vpop.permute.xlu0 %1291
        %1293 = vrot.lane.b32.xlu0 %v1188, 64
        %v1294 = vpop.permute.xlu0 %1293
        %1295 = vrot.lane.b32.xlu0 %v1189, 64
        %v1296 = vpop.permute.xlu0 %1295
        %1297 = vrot.lane.b32.xlu0 %v1190, 64
        %v1298 = vpop.permute.xlu0 %1297
        %vm1299 = vcmask 261120
        %v1302 = vsel %vm1299, %v1098, %v1210
        %v1305 = vsel %vm1299, %v1099, %v1212
        %v1308 = vsel %vm1299, %v1100, %v1214
        %v1311 = vsel %vm1299, %v1101, %v1216
        %v1314 = vsel %vm1299, %v1102, %v1218
        %v1317 = vsel %vm1299, %v1103, %v1220
        %v1320 = vsel %vm1299, %v1104, %v1222
        %v1323 = vsel %vm1299, %v1105, %v1224
        %v1326 = vsel %vm1299, %v1106, %v1226
        %v1329 = vsel %vm1299, %v1107, %v1228
        %v1332 = vsel %vm1299, %v1108, %v1230
        %v1335 = vsel %vm1299, %v1109, %v1232
        %v1338 = vsel %vm1299, %v1110, %v1234
        %v1341 = vsel %vm1299, %v1111, %v1236
        %v1344 = vsel %vm1299, %v1112, %v1238
        %v1347 = vsel %vm1299, %v1113, %v1240
        %v1350 = vsel %vm1299, %v1114, %v1242
        %v1353 = vsel %vm1299, %v1115, %v1244
        %vm1354 = vcmask 523264
        %v1356 = vsel %vm1354, %v1302, %v1264
        %v1358 = vsel %vm1354, %v1305, %v1266
        %v1360 = vsel %vm1354, %v1308, %v1268
        %v1362 = vsel %vm1354, %v1311, %v1270
        %v1364 = vsel %vm1354, %v1314, %v1272
        %v1366 = vsel %vm1354, %v1317, %v1274
        %v1368 = vsel %vm1354, %v1320, %v1276
        %v1370 = vsel %vm1354, %v1323, %v1278
        %v1372 = vsel %vm1354, %v1326, %v1280
        %v1374 = vsel %vm1354, %v1329, %v1282
        %v1376 = vsel %vm1354, %v1332, %v1284
        %v1378 = vsel %vm1354, %v1335, %v1286
        %v1380 = vsel %vm1354, %v1338, %v1288
        %v1382 = vsel %vm1354, %v1341, %v1290
        %v1384 = vsel %vm1354, %v1344, %v1292
        %v1386 = vsel %vm1354, %v1347, %v1294
        %v1388 = vsel %vm1354, %v1350, %v1296
        %v1390 = vsel %vm1354, %v1353, %v1298
        %1407 = vrot.lane.b32.xlu0 %v1358, 96
        %v1408 = vpop.permute.xlu0 %1407
        %1409 = vrot.lane.b32.xlu0 %v1360, 96
        %v1410 = vpop.permute.xlu0 %1409
        %1411 = vrot.lane.b32.xlu0 %v1362, 96
        %v1412 = vpop.permute.xlu0 %1411
        %1413 = vrot.lane.b32.xlu0 %v1364, 96
        %v1414 = vpop.permute.xlu0 %1413
        %1415 = vrot.lane.b32.xlu0 %v1366, 96
        %v1416 = vpop.permute.xlu0 %1415
        %1417 = vrot.lane.b32.xlu0 %v1368, 96
        %v1418 = vpop.permute.xlu0 %1417
        %1419 = vrot.lane.b32.xlu0 %v1370, 96
        %v1420 = vpop.permute.xlu0 %1419
        %1421 = vrot.lane.b32.xlu0 %v1372, 96
        %v1422 = vpop.permute.xlu0 %1421
        %1423 = vrot.lane.b32.xlu0 %v1374, 96
        %v1424 = vpop.permute.xlu0 %1423
        %1425 = vrot.lane.b32.xlu0 %v1376, 96
        %v1426 = vpop.permute.xlu0 %1425
        %1427 = vrot.lane.b32.xlu0 %v1378, 96
        %v1428 = vpop.permute.xlu0 %1427
        %1429 = vrot.lane.b32.xlu0 %v1380, 96
        %v1430 = vpop.permute.xlu0 %1429
        %1431 = vrot.lane.b32.xlu0 %v1382, 96
        %v1432 = vpop.permute.xlu0 %1431
        %1433 = vrot.lane.b32.xlu0 %v1384, 96
        %v1434 = vpop.permute.xlu0 %1433
        %1435 = vrot.lane.b32.xlu0 %v1386, 96
        %v1436 = vpop.permute.xlu0 %1435
        %1437 = vrot.lane.b32.xlu0 %v1388, 96
        %v1438 = vpop.permute.xlu0 %1437
        %1440 = vrot.lane.b32.xlu0 %v1360, 64
        %v1441 = vpop.permute.xlu0 %1440
        %1442 = vrot.lane.b32.xlu0 %v1362, 64
        %v1443 = vpop.permute.xlu0 %1442
        %1444 = vrot.lane.b32.xlu0 %v1364, 64
        %v1445 = vpop.permute.xlu0 %1444
        %1446 = vrot.lane.b32.xlu0 %v1366, 64
        %v1447 = vpop.permute.xlu0 %1446
        %1448 = vrot.lane.b32.xlu0 %v1368, 64
        %v1449 = vpop.permute.xlu0 %1448
        %1450 = vrot.lane.b32.xlu0 %v1370, 64
        %v1451 = vpop.permute.xlu0 %1450
        %1452 = vrot.lane.b32.xlu0 %v1372, 64
        %v1453 = vpop.permute.xlu0 %1452
        %1454 = vrot.lane.b32.xlu0 %v1374, 64
        %v1455 = vpop.permute.xlu0 %1454
        %1456 = vrot.lane.b32.xlu0 %v1376, 64
        %v1457 = vpop.permute.xlu0 %1456
        %1458 = vrot.lane.b32.xlu0 %v1378, 64
        %v1459 = vpop.permute.xlu0 %1458
        %1460 = vrot.lane.b32.xlu0 %v1380, 64
        %v1461 = vpop.permute.xlu0 %1460
        %1462 = vrot.lane.b32.xlu0 %v1382, 64
        %v1463 = vpop.permute.xlu0 %1462
        %1464 = vrot.lane.b32.xlu0 %v1384, 64
        %v1465 = vpop.permute.xlu0 %1464
        %1466 = vrot.lane.b32.xlu0 %v1386, 64
        %v1467 = vpop.permute.xlu0 %1466
        %1468 = vrot.lane.b32.xlu0 %v1388, 64
        %v1469 = vpop.permute.xlu0 %1468
        %1470 = vrot.lane.b32.xlu0 %v1390, 64
        %v1471 = vpop.permute.xlu0 %1470
        %vm1472 = vcmask 785408
        %v1474 = vsel %vm1472, %v1356, %v1408
        %v1477 = vsel %vm1472, %v1358, %v1410
        %v1480 = vsel %vm1472, %v1360, %v1412
        %v1483 = vsel %vm1472, %v1362, %v1414
        %v1486 = vsel %vm1472, %v1364, %v1416
        %v1489 = vsel %vm1472, %v1366, %v1418
        %v1492 = vsel %vm1472, %v1368, %v1420
        %v1495 = vsel %vm1472, %v1370, %v1422
        %v1498 = vsel %vm1472, %v1372, %v1424
        %v1501 = vsel %vm1472, %v1374, %v1426
        %v1504 = vsel %vm1472, %v1376, %v1428
        %v1507 = vsel %vm1472, %v1378, %v1430
        %v1510 = vsel %vm1472, %v1380, %v1432
        %v1513 = vsel %vm1472, %v1382, %v1434
        %v1516 = vsel %vm1472, %v1384, %v1436
        %v1519 = vsel %vm1472, %v1386, %v1438
        %v1522 = vsel %vm1354, %v1408, %v1441
        %v1525 = vsel %vm1354, %v1410, %v1443
        %v1528 = vsel %vm1354, %v1412, %v1445
        %v1531 = vsel %vm1354, %v1414, %v1447
        %v1534 = vsel %vm1354, %v1416, %v1449
        %v1537 = vsel %vm1354, %v1418, %v1451
        %v1540 = vsel %vm1354, %v1420, %v1453
        %v1543 = vsel %vm1354, %v1422, %v1455
        %v1546 = vsel %vm1354, %v1424, %v1457
        %v1549 = vsel %vm1354, %v1426, %v1459
        %v1552 = vsel %vm1354, %v1428, %v1461
        %v1555 = vsel %vm1354, %v1430, %v1463
        %v1558 = vsel %vm1354, %v1432, %v1465
        %v1561 = vsel %vm1354, %v1434, %v1467
        %v1564 = vsel %vm1354, %v1436, %v1469
        %v1567 = vsel %vm1354, %v1438, %v1471
        %v1569 = vld [vmem:[%s5] sm:$0xf]
        %v1570 = vld [vmem:[%s5 + $0x4] sm:$0xf]
        %v1571 = vld [vmem:[%s5 + $0x8] sm:$0xf]
        %v1572 = vld [vmem:[%s5 + $0xc] sm:$0xf]
        %v1573 = vld [vmem:[%s5 + $0x10] sm:$0xf]
        %v1574 = vld [vmem:[%s5 + $0x14] sm:$0xf]
        %v1575 = vld [vmem:[%s5 + $0x18] sm:$0xf]
        %v1576 = vld [vmem:[%s5 + $0x1c] sm:$0xf]
        %v1577 = vld [vmem:[%s5 + $0x20] sm:$0xf]
        %v1578 = vld [vmem:[%s5 + $0x24] sm:$0xf]
        %v1579 = vld [vmem:[%s5 + $0x28] sm:$0xf]
        %v1580 = vld [vmem:[%s5 + $0x2c] sm:$0xf]
        %v1581 = vld [vmem:[%s5 + $0x30] sm:$0xf]
        %v1582 = vld [vmem:[%s5 + $0x34] sm:$0xf]
        %v1583 = vld [vmem:[%s5 + $0x38] sm:$0xf]
        %v1584 = vld [vmem:[%s5 + $0x3c] sm:$0xf]
        %v1585 = vld [vmem:[%s5 + $0x40] sm:$0xf]
        %v1586 = vld [vmem:[%s5 + $0x44] sm:$0xf]
        %v1587 = vld [vmem:[%s5 + $0x48] sm:$0xf]
        %v1588 = vld [vmem:[%s5 + $0x4c] sm:$0xf]
        %v1589 = vld [vmem:[%s5 + $0x50] sm:$0xf]
        %v1590 = vld [vmem:[%s5 + $0x54] sm:$0xf]
        %v1591 = vld [vmem:[%s5 + $0x58] sm:$0xf]
        %v1592 = vld [vmem:[%s5 + $0x5c] sm:$0xf]
        %v1593 = vld [vmem:[%s5 + $0x60] sm:$0xf]
        %v1594 = vld [vmem:[%s5 + $0x64] sm:$0xf]
        %v1595 = vld [vmem:[%s5 + $0x68] sm:$0xf]
        %v1596 = vld [vmem:[%s5 + $0x6c] sm:$0xf]
        %v1597 = vld [vmem:[%s5 + $0x70] sm:$0xf]
        %v1598 = vld [vmem:[%s5 + $0x74] sm:$0xf]
        %v1599 = vld [vmem:[%s5 + $0x78] sm:$0xf]
        %v1600 = vld [vmem:[%s5 + $0x7c] sm:$0xf]
        %v1601 = vld [vmem:[%s5 + $0x80] sm:$0xf]
        %v1602 = vld [vmem:[%s5 + $0x84] sm:$0xf]
        %v1603 = vld [vmem:[%s5 + $0x88] sm:$0xf]
        %v1604 = vld [vmem:[%s5 + $0x8c] sm:$0xf]
        %v1605 = vld [vmem:[%s6] sm:$0x1]
        %v1607 = vlaneseq
        %v1608 = vshrl.u32 %v1607, 7
        %v1609 = vsub.s32 0, %v1608
        %v1610 = vrot.slane %v1605, %v1609
        %v1648 = vunpack.c.l.b16 %v1569
        %v1649 = vunpack.c.l.b16 %v1570
        %v1650 = vunpack.c.l.b16 %v1571
        %v1651 = vunpack.c.l.b16 %v1572
        %v1652 = vunpack.c.l.b16 %v1573
        %v1653 = vunpack.c.l.b16 %v1574
        %v1654 = vunpack.c.l.b16 %v1575
        %v1655 = vunpack.c.l.b16 %v1576
        %v1656 = vunpack.c.l.b16 %v1577
        %v1657 = vunpack.c.l.b16 %v1578
        %v1658 = vunpack.c.l.b16 %v1579
        %v1659 = vunpack.c.l.b16 %v1580
        %v1660 = vunpack.c.l.b16 %v1581
        %v1661 = vunpack.c.l.b16 %v1582
        %v1662 = vunpack.c.l.b16 %v1583
        %v1663 = vunpack.c.l.b16 %v1584
        %v1664 = vunpack.c.l.b16 %v1585
        %v1665 = vunpack.c.l.b16 %v1586
        %v1666 = vunpack.c.l.b16 %v1587
        %v1667 = vunpack.c.l.b16 %v1588
        %v1668 = vunpack.c.l.b16 %v1589
        %v1669 = vunpack.c.l.b16 %v1590
        %v1670 = vunpack.c.l.b16 %v1591
        %v1671 = vunpack.c.l.b16 %v1592
        %v1672 = vunpack.c.l.b16 %v1593
        %v1673 = vunpack.c.l.b16 %v1594
        %v1674 = vunpack.c.l.b16 %v1595
        %v1675 = vunpack.c.l.b16 %v1596
        %v1676 = vunpack.c.l.b16 %v1597
        %v1677 = vunpack.c.l.b16 %v1598
        %v1678 = vunpack.c.l.b16 %v1599
        %v1679 = vunpack.c.l.b16 %v1600
        %v1680 = vunpack.c.l.b16 %v1601
        %v1681 = vunpack.c.l.b16 %v1602
        %v1682 = vunpack.c.l.b16 %v1603
        %v1683 = vunpack.c.l.b16 %v1604
        %v1684 = vpack.c.b16 %v1649, %v1648
        %v1685 = vpack.c.b16 %v1651, %v1650
        %v1686 = vpack.c.b16 %v1653, %v1652
        %v1687 = vpack.c.b16 %v1655, %v1654
        %v1688 = vpack.c.b16 %v1657, %v1656
        %v1689 = vpack.c.b16 %v1659, %v1658
        %v1690 = vpack.c.b16 %v1661, %v1660
        %v1691 = vpack.c.b16 %v1663, %v1662
        %v1692 = vpack.c.b16 %v1665, %v1664
        %v1693 = vpack.c.b16 %v1667, %v1666
        %v1694 = vpack.c.b16 %v1669, %v1668
        %v1695 = vpack.c.b16 %v1671, %v1670
        %v1696 = vpack.c.b16 %v1673, %v1672
        %v1697 = vpack.c.b16 %v1675, %v1674
        %v1698 = vpack.c.b16 %v1677, %v1676
        %v1699 = vpack.c.b16 %v1679, %v1678
        %v1700 = vpack.c.b16 %v1681, %v1680
        %v1701 = vpack.c.b16 %v1683, %v1682
        %v1720 = vsel %vm1299, %v1441, 0
        %v1722 = vsel %vm1299, %v1443, 0
        %v1724 = vsel %vm1299, %v1445, 0
        %v1726 = vsel %vm1299, %v1447, 0
        %v1728 = vsel %vm1299, %v1449, 0
        %v1730 = vsel %vm1299, %v1451, 0
        %v1732 = vsel %vm1299, %v1453, 0
        %v1734 = vsel %vm1299, %v1455, 0
        %v1736 = vsel %vm1299, %v1457, 0
        %v1738 = vsel %vm1299, %v1459, 0
        %v1740 = vsel %vm1299, %v1461, 0
        %v1742 = vsel %vm1299, %v1463, 0
        %v1744 = vsel %vm1299, %v1465, 0
        %v1746 = vsel %vm1299, %v1467, 0
        %v1748 = vsel %vm1299, %v1469, 0
        %v1750 = vsel %vm1299, %v1471, 0
        %1752 = vmatprep.subr.bf16.mxu0 0
        %1753 = vmatpush1.bf16.msra.mxu0 %v1684
        %1754 = vmatprep.subr.bf16.mxu0 0
        %1755 = vmatpush1.bf16.msra.mxu0 %v1685
        %1756 = vmatprep.subr.bf16.mxu0 0
        %1757 = vmatpush1.bf16.msra.mxu0 %v1686
        %1758 = vmatprep.subr.bf16.mxu0 0
        %1759 = vmatpush1.bf16.msra.mxu0 %v1687
        %1760 = vmatprep.subr.bf16.mxu0 0
        %1761 = vmatpush1.bf16.msra.mxu0 %v1688
        %1762 = vmatprep.subr.bf16.mxu0 0
        %1763 = vmatpush1.bf16.msra.mxu0 %v1689
        %1764 = vmatprep.subr.bf16.mxu0 0
        %1765 = vmatpush1.bf16.msra.mxu0 %v1690
        %1766 = vmatprep.subr.bf16.mxu0 0
        %1767 = vmatpush1.bf16.msra.mxu0 %v1691
        %1768 = vmatprep.subr.bf16.mxu0 0
        %1769 = vmatpush1.bf16.msra.mxu0 %v1692
        %1770 = vmatprep.subr.bf16.mxu0 0
        %1771 = vmatpush1.bf16.msra.mxu0 %v1693
        %1772 = vmatprep.subr.bf16.mxu0 0
        %1773 = vmatpush1.bf16.msra.mxu0 %v1694
        %1774 = vmatprep.subr.bf16.mxu0 0
        %1775 = vmatpush1.bf16.msra.mxu0 %v1695
        %1776 = vmatprep.subr.bf16.mxu0 0
        %1777 = vmatpush1.bf16.msra.mxu0 %v1696
        %1778 = vmatprep.subr.bf16.mxu0 0
        %1779 = vmatpush1.bf16.msra.mxu0 %v1697
        %1780 = vmatprep.subr.bf16.mxu0 0
        %1781 = vmatpush1.bf16.msra.mxu0 %v1698
        %1782 = vmatprep.subr.bf16.mxu0 0
        %1783 = vmatpush1.bf16.msra.mxu0 %v1699
        %1784 = vmatprep.mubr.bf16.mxu0 %v1522
        %1785 = vmatmul.mubr.bf16.gmra.mrb[0].mxu0 %v1474
        %v1786 = vpop.f32.mrb[0].mxu0
        %v1787 = vadd.f32 %v1610, %v1786
        %v1788 = vpop.f32.mrb[0].mxu0
        %v1789 = vpop.f32.mrb[0].mxu0
        %v1790 = vadd.f32 %v1610, %v1789
        %v1791 = vpop.f32.mrb[0].mxu0
        %1792 = vmatprep.mubr.bf16.mxu0 %v1525
        %1793 = vmatmul.mubr.bf16.gmra.mrb[0].mxu0 %v1477
        %v1794 = vpop.f32.mrb[0].mxu0
        %v1795 = vadd.f32 %v1610, %v1794
        %v1796 = vpop.f32.mrb[0].mxu0
        %v1797 = vpop.f32.mrb[0].mxu0
        %v1798 = vadd.f32 %v1610, %v1797
        %v1799 = vpop.f32.mrb[0].mxu0
        %1800 = vmatprep.mubr.bf16.mxu0 %v1528
        %1801 = vmatmul.mubr.bf16.gmra.mrb[0].mxu0 %v1480
        %v1802 = vpop.f32.mrb[0].mxu0
        %v1803 = vadd.f32 %v1610, %v1802
        %v1804 = vpop.f32.mrb[0].mxu0
        %v1805 = vpop.f32.mrb[0].mxu0
        %v1806 = vadd.f32 %v1610, %v1805
        %v1807 = vpop.f32.mrb[0].mxu0
        %1808 = vmatprep.mubr.bf16.mxu0 %v1531
        %1809 = vmatmul.mubr.bf16.gmra.mrb[0].mxu0 %v1483
        %v1810 = vpop.f32.mrb[0].mxu0
        %v1811 = vadd.f32 %v1610, %v1810
        %v1812 = vpop.f32.mrb[0].mxu0
        %v1813 = vpop.f32.mrb[0].mxu0
        %v1814 = vadd.f32 %v1610, %v1813
        %v1815 = vpop.f32.mrb[0].mxu0
        %1816 = vmatprep.mubr.bf16.mxu0 %v1534
        %1817 = vmatmul.mubr.bf16.gmra.mrb[0].mxu0 %v1486
        %v1818 = vpop.f32.mrb[0].mxu0
        %v1819 = vadd.f32 %v1610, %v1818
        %v1820 = vpop.f32.mrb[0].mxu0
        %v1821 = vpop.f32.mrb[0].mxu0
        %v1822 = vadd.f32 %v1610, %v1821
        %v1823 = vpop.f32.mrb[0].mxu0
        %1824 = vmatprep.mubr.bf16.mxu0 %v1537
        %1825 = vmatmul.mubr.bf16.gmra.mrb[0].mxu0 %v1489
        %v1826 = vpop.f32.mrb[0].mxu0
        %v1827 = vadd.f32 %v1610, %v1826
        %v1828 = vpop.f32.mrb[0].mxu0
        %v1829 = vpop.f32.mrb[0].mxu0
        %v1830 = vadd.f32 %v1610, %v1829
        %v1831 = vpop.f32.mrb[0].mxu0
        %1832 = vmatprep.mubr.bf16.mxu0 %v1540
        %1833 = vmatmul.mubr.bf16.gmra.mrb[0].mxu0 %v1492
        %v1834 = vpop.f32.mrb[0].mxu0
        %v1835 = vadd.f32 %v1610, %v1834
        %v1836 = vpop.f32.mrb[0].mxu0
        %v1837 = vpop.f32.mrb[0].mxu0
        %v1838 = vadd.f32 %v1610, %v1837
        %v1839 = vpop.f32.mrb[0].mxu0
        %1840 = vmatprep.mubr.bf16.mxu0 %v1543
        %1841 = vmatmul.mubr.bf16.gmra.mrb[0].mxu0 %v1495
        %v1842 = vpop.f32.mrb[0].mxu0
        %v1843 = vadd.f32 %v1610, %v1842
        %v1844 = vpop.f32.mrb[0].mxu0
        %v1845 = vpop.f32.mrb[0].mxu0
        %v1846 = vadd.f32 %v1610, %v1845
        %v1847 = vpop.f32.mrb[0].mxu0
        %1848 = vmatprep.mubr.bf16.mxu0 %v1546
        %1849 = vmatmul.mubr.bf16.gmra.mrb[0].mxu0 %v1498
        %v1850 = vpop.f32.mrb[0].mxu0
        %v1851 = vadd.f32 %v1610, %v1850
        %v1852 = vpop.f32.mrb[0].mxu0
        %v1853 = vpop.f32.mrb[0].mxu0
        %v1854 = vadd.f32 %v1610, %v1853
        %v1855 = vpop.f32.mrb[0].mxu0
        %1856 = vmatprep.mubr.bf16.mxu0 %v1549
        %1857 = vmatmul.mubr.bf16.gmra.mrb[0].mxu0 %v1501
        %v1858 = vpop.f32.mrb[0].mxu0
        %v1859 = vadd.f32 %v1610, %v1858
        %v1860 = vpop.f32.mrb[0].mxu0
        %v1861 = vpop.f32.mrb[0].mxu0
        %v1862 = vadd.f32 %v1610, %v1861
        %v1863 = vpop.f32.mrb[0].mxu0
        %1864 = vmatprep.mubr.bf16.mxu0 %v1552
        %1865 = vmatmul.mubr.bf16.gmra.mrb[0].mxu0 %v1504
        %v1866 = vpop.f32.mrb[0].mxu0
        %v1867 = vadd.f32 %v1610, %v1866
        %v1868 = vpop.f32.mrb[0].mxu0
        %v1869 = vpop.f32.mrb[0].mxu0
        %v1870 = vadd.f32 %v1610, %v1869
        %v1871 = vpop.f32.mrb[0].mxu0
        %1872 = vmatprep.mubr.bf16.mxu0 %v1555
        %1873 = vmatmul.mubr.bf16.gmra.mrb[0].mxu0 %v1507
        %v1874 = vpop.f32.mrb[0].mxu0
        %v1875 = vadd.f32 %v1610, %v1874
        %v1876 = vpop.f32.mrb[0].mxu0
        %v1877 = vpop.f32.mrb[0].mxu0
        %v1878 = vadd.f32 %v1610, %v1877
        %v1879 = vpop.f32.mrb[0].mxu0
        %1880 = vmatprep.mubr.bf16.mxu0 %v1558
        %1881 = vmatmul.mubr.bf16.gmra.mrb[0].mxu0 %v1510
        %v1882 = vpop.f32.mrb[0].mxu0
        %v1883 = vadd.f32 %v1610, %v1882
        %v1884 = vpop.f32.mrb[0].mxu0
        %v1885 = vpop.f32.mrb[0].mxu0
        %v1886 = vadd.f32 %v1610, %v1885
        %v1887 = vpop.f32.mrb[0].mxu0
        %1888 = vmatprep.mubr.bf16.mxu0 %v1561
        %1889 = vmatmul.mubr.bf16.gmra.mrb[0].mxu0 %v1513
        %v1890 = vpop.f32.mrb[0].mxu0
        %v1891 = vadd.f32 %v1610, %v1890
        %v1892 = vpop.f32.mrb[0].mxu0
        %v1893 = vpop.f32.mrb[0].mxu0
        %v1894 = vadd.f32 %v1610, %v1893
        %v1895 = vpop.f32.mrb[0].mxu0
        %1896 = vmatprep.mubr.bf16.mxu0 %v1564
        %1897 = vmatmul.mubr.bf16.gmra.mrb[0].mxu0 %v1516
        %v1898 = vpop.f32.mrb[0].mxu0
        %v1899 = vadd.f32 %v1610, %v1898
        %v1900 = vpop.f32.mrb[0].mxu0
        %v1901 = vpop.f32.mrb[0].mxu0
        %v1902 = vadd.f32 %v1610, %v1901
        %v1903 = vpop.f32.mrb[0].mxu0
        %1904 = vmatprep.mubr.bf16.mxu0 %v1567
        %1905 = vmatmul.mubr.bf16.gmra.mrb[0].mxu0 %v1519
        %v1906 = vpop.f32.mrb[0].mxu0
        %v1907 = vadd.f32 %v1610, %v1906
        %v1908 = vpop.f32.mrb[0].mxu0
        %v1909 = vpop.f32.mrb[0].mxu0
        %v1910 = vadd.f32 %v1610, %v1909
        %v1911 = vpop.f32.mrb[0].mxu0
        %1912 = vdwg.mxu0
        %1913 = vmatprep.subr.bf16.mxu0 0
        %1914 = vmatpush1.bf16.msra.mxu0 %v1700
        %1915 = vmatprep.subr.bf16.mxu0 0
        %1916 = vmatpush1.bf16.msra.mxu0 %v1701
        %1917 = vmatprep.subr.bf16.mxu0 0
        %1918 = vmatpush1.bf16.msra.mxu0 0
        %1919 = vmatprep.subr.bf16.mxu0 0
        %1920 = vmatpush1.bf16.msra.mxu0 0
        %1921 = vmatprep.subr.bf16.mxu0 0
        %1922 = vmatpush1.bf16.msra.mxu0 0
        %1923 = vmatprep.subr.bf16.mxu0 0
        %1924 = vmatpush1.bf16.msra.mxu0 0
        %1925 = vmatprep.subr.bf16.mxu0 0
        %1926 = vmatpush1.bf16.msra.mxu0 0
        %1927 = vmatprep.subr.bf16.mxu0 0
        %1928 = vmatpush1.bf16.msra.mxu0 0
        %1929 = vmatprep.subr.bf16.mxu0 0
        %1930 = vmatpush1.bf16.msra.mxu0 0
        %1931 = vmatprep.subr.bf16.mxu0 0
        %1932 = vmatpush1.bf16.msra.mxu0 0
        %1933 = vmatprep.subr.bf16.mxu0 0
        %1934 = vmatpush1.bf16.msra.mxu0 0
        %1935 = vmatprep.subr.bf16.mxu0 0
        %1936 = vmatpush1.bf16.msra.mxu0 0
        %1937 = vmatprep.subr.bf16.mxu0 0
        %1938 = vmatpush1.bf16.msra.mxu0 0
        %1939 = vmatprep.subr.bf16.mxu0 0
        %1940 = vmatpush1.bf16.msra.mxu0 0
        %1941 = vmatprep.subr.bf16.mxu0 0
        %1942 = vmatpush1.bf16.msra.mxu0 0
        %1943 = vmatprep.subr.bf16.mxu0 0
        %1944 = vmatpush1.bf16.msra.mxu0 0
        %1945 = vmatprep.mubr.bf16.mxu0 0
        %1946 = vmatmul.mubr.bf16.gmra.mrb[0].mxu0 %v1720
        %v1947 = vpop.f32.mrb[0].mxu0
        %v1948 = vadd.f32 %v1787, %v1947
        %v1949 = vpop.f32.mrb[0].mxu0
        %v1950 = vpop.f32.mrb[0].mxu0
        %v1951 = vadd.f32 %v1790, %v1950
        %v1952 = vpop.f32.mrb[0].mxu0
        %1953 = vmatprep.mubr.bf16.mxu0 0
        %1954 = vmatmul.mubr.bf16.gmra.mrb[0].mxu0 %v1722
        %v1955 = vpop.f32.mrb[0].mxu0
        %v1956 = vadd.f32 %v1795, %v1955
        %v1957 = vpop.f32.mrb[0].mxu0
        %v1958 = vpop.f32.mrb[0].mxu0
        %v1959 = vadd.f32 %v1798, %v1958
        %v1960 = vpop.f32.mrb[0].mxu0
        %1961 = vmatprep.mubr.bf16.mxu0 0
        %1962 = vmatmul.mubr.bf16.gmra.mrb[0].mxu0 %v1724
        %v1963 = vpop.f32.mrb[0].mxu0
        %v1964 = vadd.f32 %v1803, %v1963
        %v1965 = vpop.f32.mrb[0].mxu0
        %v1966 = vpop.f32.mrb[0].mxu0
        %v1967 = vadd.f32 %v1806, %v1966
        %v1968 = vpop.f32.mrb[0].mxu0
        %1969 = vmatprep.mubr.bf16.mxu0 0
        %1970 = vmatmul.mubr.bf16.gmra.mrb[0].mxu0 %v1726
        %v1971 = vpop.f32.mrb[0].mxu0
        %v1972 = vadd.f32 %v1811, %v1971
        %v1973 = vpop.f32.mrb[0].mxu0
        %v1974 = vpop.f32.mrb[0].mxu0
        %v1975 = vadd.f32 %v1814, %v1974
        %v1976 = vpop.f32.mrb[0].mxu0
        %1977 = vmatprep.mubr.bf16.mxu0 0
        %1978 = vmatmul.mubr.bf16.gmra.mrb[0].mxu0 %v1728
        %v1979 = vpop.f32.mrb[0].mxu0
        %v1980 = vadd.f32 %v1819, %v1979
        %v1981 = vpop.f32.mrb[0].mxu0
        %v1982 = vpop.f32.mrb[0].mxu0
        %v1983 = vadd.f32 %v1822, %v1982
        %v1984 = vpop.f32.mrb[0].mxu0
        %1985 = vmatprep.mubr.bf16.mxu0 0
        %1986 = vmatmul.mubr.bf16.gmra.mrb[0].mxu0 %v1730
        %v1987 = vpop.f32.mrb[0].mxu0
        %v1988 = vadd.f32 %v1827, %v1987
        %v1989 = vpop.f32.mrb[0].mxu0
        %v1990 = vpop.f32.mrb[0].mxu0
        %v1991 = vadd.f32 %v1830, %v1990
        %v1992 = vpop.f32.mrb[0].mxu0
        %1993 = vmatprep.mubr.bf16.mxu0 0
        %1994 = vmatmul.mubr.bf16.gmra.mrb[0].mxu0 %v1732
        %v1995 = vpop.f32.mrb[0].mxu0
        %v1996 = vadd.f32 %v1835, %v1995
        %v1997 = vpop.f32.mrb[0].mxu0
        %v1998 = vpop.f32.mrb[0].mxu0
        %v1999 = vadd.f32 %v1838, %v1998
        %v2000 = vpop.f32.mrb[0].mxu0
        %2001 = vmatprep.mubr.bf16.mxu0 0
        %2002 = vmatmul.mubr.bf16.gmra.mrb[0].mxu0 %v1734
        %v2003 = vpop.f32.mrb[0].mxu0
        %v2004 = vadd.f32 %v1843, %v2003
        %v2005 = vpop.f32.mrb[0].mxu0
        %v2006 = vpop.f32.mrb[0].mxu0
        %v2007 = vadd.f32 %v1846, %v2006
        %v2008 = vpop.f32.mrb[0].mxu0
        %2009 = vmatprep.mubr.bf16.mxu0 0
        %2010 = vmatmul.mubr.bf16.gmra.mrb[0].mxu0 %v1736
        %v2011 = vpop.f32.mrb[0].mxu0
        %v2012 = vadd.f32 %v1851, %v2011
        %v2013 = vpop.f32.mrb[0].mxu0
        %v2014 = vpop.f32.mrb[0].mxu0
        %v2015 = vadd.f32 %v1854, %v2014
        %v2016 = vpop.f32.mrb[0].mxu0
        %2017 = vmatprep.mubr.bf16.mxu0 0
        %2018 = vmatmul.mubr.bf16.gmra.mrb[0].mxu0 %v1738
        %v2019 = vpop.f32.mrb[0].mxu0
        %v2020 = vadd.f32 %v1859, %v2019
        %v2021 = vpop.f32.mrb[0].mxu0
        %v2022 = vpop.f32.mrb[0].mxu0
        %v2023 = vadd.f32 %v1862, %v2022
        %v2024 = vpop.f32.mrb[0].mxu0
        %2025 = vmatprep.mubr.bf16.mxu0 0
        %2026 = vmatmul.mubr.bf16.gmra.mrb[0].mxu0 %v1740
        %v2027 = vpop.f32.mrb[0].mxu0
        %v2028 = vadd.f32 %v1867, %v2027
        %v2029 = vpop.f32.mrb[0].mxu0
        %v2030 = vpop.f32.mrb[0].mxu0
        %v2031 = vadd.f32 %v1870, %v2030
        %v2032 = vpop.f32.mrb[0].mxu0
        %2033 = vmatprep.mubr.bf16.mxu0 0
        %2034 = vmatmul.mubr.bf16.gmra.mrb[0].mxu0 %v1742
        %v2035 = vpop.f32.mrb[0].mxu0
        %v2036 = vadd.f32 %v1875, %v2035
        %v2037 = vpop.f32.mrb[0].mxu0
        %v2038 = vpop.f32.mrb[0].mxu0
        %v2039 = vadd.f32 %v1878, %v2038
        %v2040 = vpop.f32.mrb[0].mxu0
        %2041 = vmatprep.mubr.bf16.mxu0 0
        %2042 = vmatmul.mubr.bf16.gmra.mrb[0].mxu0 %v1744
        %v2043 = vpop.f32.mrb[0].mxu0
        %v2044 = vadd.f32 %v1883, %v2043
        %v2045 = vpop.f32.mrb[0].mxu0
        %v2046 = vpop.f32.mrb[0].mxu0
        %v2047 = vadd.f32 %v1886, %v2046
        %v2048 = vpop.f32.mrb[0].mxu0
        %2049 = vmatprep.mubr.bf16.mxu0 0
        %2050 = vmatmul.mubr.bf16.gmra.mrb[0].mxu0 %v1746
        %v2051 = vpop.f32.mrb[0].mxu0
        %v2052 = vadd.f32 %v1891, %v2051
        %v2053 = vpop.f32.mrb[0].mxu0
        %v2054 = vpop.f32.mrb[0].mxu0
        %v2055 = vadd.f32 %v1894, %v2054
        %v2056 = vpop.f32.mrb[0].mxu0
        %2057 = vmatprep.mubr.bf16.mxu0 0
        %2058 = vmatmul.mubr.bf16.gmra.mrb[0].mxu0 %v1748
        %v2059 = vpop.f32.mrb[0].mxu0
        %v2060 = vadd.f32 %v1899, %v2059
        %v2061 = vpop.f32.mrb[0].mxu0
        %v2062 = vpop.f32.mrb[0].mxu0
        %v2063 = vadd.f32 %v1902, %v2062
        %v2064 = vpop.f32.mrb[0].mxu0
        %2065 = vmatprep.mubr.bf16.mxu0 0
        %2066 = vmatmul.mubr.bf16.gmra.mrb[0].mxu0 %v1750
        %v2067 = vpop.f32.mrb[0].mxu0
        %v2068 = vadd.f32 %v1907, %v2067
        %v2069 = vpop.f32.mrb[0].mxu0
        %v2070 = vpop.f32.mrb[0].mxu0
        %v2071 = vadd.f32 %v1910, %v2070
        %v2072 = vpop.f32.mrb[0].mxu0
        %2073 = vdwg.mxu0
        %v2074 = vmax.f32 %v1948, 0.0
        %v2075 = vmax.f32 %v1951, 0.0
        %v2076 = vmax.f32 %v1956, 0.0
        %v2077 = vmax.f32 %v1959, 0.0
        %v2078 = vmax.f32 %v1964, 0.0
        %v2079 = vmax.f32 %v1967, 0.0
        %v2080 = vmax.f32 %v1972, 0.0
        %v2081 = vmax.f32 %v1975, 0.0
        %v2082 = vmax.f32 %v1980, 0.0
        %v2083 = vmax.f32 %v1983, 0.0
        %v2084 = vmax.f32 %v1988, 0.0
        %v2085 = vmax.f32 %v1991, 0.0
        %v2086 = vmax.f32 %v1996, 0.0
        %v2087 = vmax.f32 %v1999, 0.0
        %v2088 = vmax.f32 %v2004, 0.0
        %v2089 = vmax.f32 %v2007, 0.0
        %v2090 = vmax.f32 %v2012, 0.0
        %v2091 = vmax.f32 %v2015, 0.0
        %v2092 = vmax.f32 %v2020, 0.0
        %v2093 = vmax.f32 %v2023, 0.0
        %v2094 = vmax.f32 %v2028, 0.0
        %v2095 = vmax.f32 %v2031, 0.0
        %v2096 = vmax.f32 %v2036, 0.0
        %v2097 = vmax.f32 %v2039, 0.0
        %v2098 = vmax.f32 %v2044, 0.0
        %v2099 = vmax.f32 %v2047, 0.0
        %v2100 = vmax.f32 %v2052, 0.0
        %v2101 = vmax.f32 %v2055, 0.0
        %v2102 = vmax.f32 %v2060, 0.0
        %v2103 = vmax.f32 %v2063, 0.0
        %v2104 = vmax.f32 %v2068, 0.0
        %v2105 = vmax.f32 %v2071, 0.0
        %v2106 = vpack.c.bf16 %v2075, %v2074
        %v2107 = vpack.c.bf16 %v2077, %v2076
        %v2108 = vpack.c.bf16 %v2079, %v2078
        %v2109 = vpack.c.bf16 %v2081, %v2080
        %v2110 = vpack.c.bf16 %v2083, %v2082
        %v2111 = vpack.c.bf16 %v2085, %v2084
        %v2112 = vpack.c.bf16 %v2087, %v2086
        %v2113 = vpack.c.bf16 %v2089, %v2088
        %v2114 = vpack.c.bf16 %v2091, %v2090
        %v2115 = vpack.c.bf16 %v2093, %v2092
        %v2116 = vpack.c.bf16 %v2095, %v2094
        %v2117 = vpack.c.bf16 %v2097, %v2096
        %v2118 = vpack.c.bf16 %v2099, %v2098
        %v2119 = vpack.c.bf16 %v2101, %v2100
        %v2120 = vpack.c.bf16 %v2103, %v2102
        %v2121 = vpack.c.bf16 %v2105, %v2104
        %v2122 = vld [vmem:[%s7] sm:$0xf]
        %v2123 = vld [vmem:[%s7 + $0x4] sm:$0xf]
        %v2124 = vld [vmem:[%s7 + $0x8] sm:$0xf]
        %v2125 = vld [vmem:[%s7 + $0xc] sm:$0xf]
        %v2126 = vld [vmem:[%s8] sm:$0x1]
        %v2128 = vlaneseq
        %v2129 = vshrl.u32 %v2128, 7
        %v2130 = vsub.s32 0, %v2129
        %v2131 = vrot.slane %v2126, %v2130
        %v2137 = vunpack.c.l.b16 %v2122
        %v2138 = vunpack.c.l.b16 %v2123
        %v2139 = vunpack.c.l.b16 %v2124
        %v2140 = vunpack.c.l.b16 %v2125
        %v2141 = vpack.c.b16 %v2138, %v2137
        %v2142 = vpack.c.b16 %v2140, %v2139
        %v2146 = vsel %vm1299, %v2106, 0
        %v2149 = vsel %vm1299, %v2107, 0
        %v2152 = vsel %vm1299, %v2108, 0
        %v2155 = vsel %vm1299, %v2109, 0
        %v2158 = vsel %vm1299, %v2110, 0
        %v2161 = vsel %vm1299, %v2111, 0
        %v2164 = vsel %vm1299, %v2112, 0
        %v2167 = vsel %vm1299, %v2113, 0
        %v2170 = vsel %vm1299, %v2114, 0
        %v2173 = vsel %vm1299, %v2115, 0
        %v2176 = vsel %vm1299, %v2116, 0
        %v2179 = vsel %vm1299, %v2117, 0
        %v2182 = vsel %vm1299, %v2118, 0
        %v2185 = vsel %vm1299, %v2119, 0
        %v2188 = vsel %vm1299, %v2120, 0
        %v2191 = vsel %vm1299, %v2121, 0
        %2193 = vmatprep.subr.bf16.mxu0 0
        %2194 = vmatpush1.bf16.msra.mxu0 %v2141
        %2195 = vmatprep.subr.bf16.mxu0 0
        %2196 = vmatpush1.bf16.msra.mxu0 %v2142
        %2197 = vmatprep.subr.bf16.mxu0 0
        %2198 = vmatpush1.bf16.msra.mxu0 0
        %2199 = vmatprep.subr.bf16.mxu0 0
        %2200 = vmatpush1.bf16.msra.mxu0 0
        %2201 = vmatprep.subr.bf16.mxu0 0
        %2202 = vmatpush1.bf16.msra.mxu0 0
        %2203 = vmatprep.subr.bf16.mxu0 0
        %2204 = vmatpush1.bf16.msra.mxu0 0
        %2205 = vmatprep.subr.bf16.mxu0 0
        %2206 = vmatpush1.bf16.msra.mxu0 0
        %2207 = vmatprep.subr.bf16.mxu0 0
        %2208 = vmatpush1.bf16.msra.mxu0 0
        %2209 = vmatprep.subr.bf16.mxu0 0
        %2210 = vmatpush1.bf16.msra.mxu0 0
        %2211 = vmatprep.subr.bf16.mxu0 0
        %2212 = vmatpush1.bf16.msra.mxu0 0
        %2213 = vmatprep.subr.bf16.mxu0 0
        %2214 = vmatpush1.bf16.msra.mxu0 0
        %2215 = vmatprep.subr.bf16.mxu0 0
        %2216 = vmatpush1.bf16.msra.mxu0 0
        %2217 = vmatprep.subr.bf16.mxu0 0
        %2218 = vmatpush1.bf16.msra.mxu0 0
        %2219 = vmatprep.subr.bf16.mxu0 0
        %2220 = vmatpush1.bf16.msra.mxu0 0
        %2221 = vmatprep.subr.bf16.mxu0 0
        %2222 = vmatpush1.bf16.msra.mxu0 0
        %2223 = vmatprep.subr.bf16.mxu0 0
        %2224 = vmatpush1.bf16.msra.mxu0 0
        %2225 = vmatprep.mubr.bf16.mxu0 0
        %2226 = vmatmul.mubr.bf16.gmra.mrb[0].mxu0 %v2146
        %v2227 = vpop.f32.mrb[0].mxu0
        %v2228 = vadd.f32 %v2131, %v2227
        %v2229 = vpop.f32.mrb[0].mxu0
        %v2230 = vpop.f32.mrb[0].mxu0
        %v2231 = vadd.f32 %v2131, %v2230
        %v2232 = vpop.f32.mrb[0].mxu0
        %2233 = vmatprep.mubr.bf16.mxu0 0
        %2234 = vmatmul.mubr.bf16.gmra.mrb[0].mxu0 %v2149
        %v2235 = vpop.f32.mrb[0].mxu0
        %v2236 = vadd.f32 %v2131, %v2235
        %v2237 = vpop.f32.mrb[0].mxu0
        %v2238 = vpop.f32.mrb[0].mxu0
        %v2239 = vadd.f32 %v2131, %v2238
        %v2240 = vpop.f32.mrb[0].mxu0
        %2241 = vmatprep.mubr.bf16.mxu0 0
        %2242 = vmatmul.mubr.bf16.gmra.mrb[0].mxu0 %v2152
        %v2243 = vpop.f32.mrb[0].mxu0
        %v2244 = vadd.f32 %v2131, %v2243
        %v2245 = vpop.f32.mrb[0].mxu0
        %v2246 = vpop.f32.mrb[0].mxu0
        %v2247 = vadd.f32 %v2131, %v2246
        %v2248 = vpop.f32.mrb[0].mxu0
        %2249 = vmatprep.mubr.bf16.mxu0 0
        %2250 = vmatmul.mubr.bf16.gmra.mrb[0].mxu0 %v2155
        %v2251 = vpop.f32.mrb[0].mxu0
        %v2252 = vadd.f32 %v2131, %v2251
        %v2253 = vpop.f32.mrb[0].mxu0
        %v2254 = vpop.f32.mrb[0].mxu0
        %v2255 = vadd.f32 %v2131, %v2254
        %v2256 = vpop.f32.mrb[0].mxu0
        %2257 = vmatprep.mubr.bf16.mxu0 0
        %2258 = vmatmul.mubr.bf16.gmra.mrb[0].mxu0 %v2158
        %v2259 = vpop.f32.mrb[0].mxu0
        %v2260 = vadd.f32 %v2131, %v2259
        %v2261 = vpop.f32.mrb[0].mxu0
        %v2262 = vpop.f32.mrb[0].mxu0
        %v2263 = vadd.f32 %v2131, %v2262
        %v2264 = vpop.f32.mrb[0].mxu0
        %2265 = vmatprep.mubr.bf16.mxu0 0
        %2266 = vmatmul.mubr.bf16.gmra.mrb[0].mxu0 %v2161
        %v2267 = vpop.f32.mrb[0].mxu0
        %v2268 = vadd.f32 %v2131, %v2267
        %v2269 = vpop.f32.mrb[0].mxu0
        %v2270 = vpop.f32.mrb[0].mxu0
        %v2271 = vadd.f32 %v2131, %v2270
        %v2272 = vpop.f32.mrb[0].mxu0
        %2273 = vmatprep.mubr.bf16.mxu0 0
        %2274 = vmatmul.mubr.bf16.gmra.mrb[0].mxu0 %v2164
        %v2275 = vpop.f32.mrb[0].mxu0
        %v2276 = vadd.f32 %v2131, %v2275
        %v2277 = vpop.f32.mrb[0].mxu0
        %v2278 = vpop.f32.mrb[0].mxu0
        %v2279 = vadd.f32 %v2131, %v2278
        %v2280 = vpop.f32.mrb[0].mxu0
        %2281 = vmatprep.mubr.bf16.mxu0 0
        %2282 = vmatmul.mubr.bf16.gmra.mrb[0].mxu0 %v2167
        %v2283 = vpop.f32.mrb[0].mxu0
        %v2284 = vadd.f32 %v2131, %v2283
        %v2285 = vpop.f32.mrb[0].mxu0
        %v2286 = vpop.f32.mrb[0].mxu0
        %v2287 = vadd.f32 %v2131, %v2286
        %v2288 = vpop.f32.mrb[0].mxu0
        %2289 = vmatprep.mubr.bf16.mxu0 0
        %2290 = vmatmul.mubr.bf16.gmra.mrb[0].mxu0 %v2170
        %v2291 = vpop.f32.mrb[0].mxu0
        %v2292 = vadd.f32 %v2131, %v2291
        %v2293 = vpop.f32.mrb[0].mxu0
        %v2294 = vpop.f32.mrb[0].mxu0
        %v2295 = vadd.f32 %v2131, %v2294
        %v2296 = vpop.f32.mrb[0].mxu0
        %2297 = vmatprep.mubr.bf16.mxu0 0
        %2298 = vmatmul.mubr.bf16.gmra.mrb[0].mxu0 %v2173
        %v2299 = vpop.f32.mrb[0].mxu0
        %v2300 = vadd.f32 %v2131, %v2299
        %v2301 = vpop.f32.mrb[0].mxu0
        %v2302 = vpop.f32.mrb[0].mxu0
        %v2303 = vadd.f32 %v2131, %v2302
        %v2304 = vpop.f32.mrb[0].mxu0
        %2305 = vmatprep.mubr.bf16.mxu0 0
        %2306 = vmatmul.mubr.bf16.gmra.mrb[0].mxu0 %v2176
        %v2307 = vpop.f32.mrb[0].mxu0
        %v2308 = vadd.f32 %v2131, %v2307
        %v2309 = vpop.f32.mrb[0].mxu0
        %v2310 = vpop.f32.mrb[0].mxu0
        %v2311 = vadd.f32 %v2131, %v2310
        %v2312 = vpop.f32.mrb[0].mxu0
        %2313 = vmatprep.mubr.bf16.mxu0 0
        %2314 = vmatmul.mubr.bf16.gmra.mrb[0].mxu0 %v2179
        %v2315 = vpop.f32.mrb[0].mxu0
        %v2316 = vadd.f32 %v2131, %v2315
        %v2317 = vpop.f32.mrb[0].mxu0
        %v2318 = vpop.f32.mrb[0].mxu0
        %v2319 = vadd.f32 %v2131, %v2318
        %v2320 = vpop.f32.mrb[0].mxu0
        %2321 = vmatprep.mubr.bf16.mxu0 0
        %2322 = vmatmul.mubr.bf16.gmra.mrb[0].mxu0 %v2182
        %v2323 = vpop.f32.mrb[0].mxu0
        %v2324 = vadd.f32 %v2131, %v2323
        %v2325 = vpop.f32.mrb[0].mxu0
        %v2326 = vpop.f32.mrb[0].mxu0
        %v2327 = vadd.f32 %v2131, %v2326
        %v2328 = vpop.f32.mrb[0].mxu0
        %2329 = vmatprep.mubr.bf16.mxu0 0
        %2330 = vmatmul.mubr.bf16.gmra.mrb[0].mxu0 %v2185
        %v2331 = vpop.f32.mrb[0].mxu0
        %v2332 = vadd.f32 %v2131, %v2331
        %v2333 = vpop.f32.mrb[0].mxu0
        %v2334 = vpop.f32.mrb[0].mxu0
        %v2335 = vadd.f32 %v2131, %v2334
        %v2336 = vpop.f32.mrb[0].mxu0
        %2337 = vmatprep.mubr.bf16.mxu0 0
        %2338 = vmatmul.mubr.bf16.gmra.mrb[0].mxu0 %v2188
        %v2339 = vpop.f32.mrb[0].mxu0
        %v2340 = vadd.f32 %v2131, %v2339
        %v2341 = vpop.f32.mrb[0].mxu0
        %v2342 = vpop.f32.mrb[0].mxu0
        %v2343 = vadd.f32 %v2131, %v2342
        %v2344 = vpop.f32.mrb[0].mxu0
        %2345 = vmatprep.mubr.bf16.mxu0 0
        %2346 = vmatmul.mubr.bf16.gmra.mrb[0].mxu0 %v2191
        %v2347 = vpop.f32.mrb[0].mxu0
        %v2348 = vadd.f32 %v2131, %v2347
        %v2349 = vpop.f32.mrb[0].mxu0
        %v2350 = vpop.f32.mrb[0].mxu0
        %v2351 = vadd.f32 %v2131, %v2350
        %v2352 = vpop.f32.mrb[0].mxu0
        %2353 = vdwg.mxu0
        %v2354 = vunpack.c.l.bf16 %v497
        %v2355 = vunpack.c.l.bf16 %v498
        %v2356 = vunpack.c.l.bf16 %v499
        %v2357 = vunpack.c.l.bf16 %v500
        %v2358 = vunpack.c.l.bf16 %v501
        %v2359 = vunpack.c.l.bf16 %v502
        %v2360 = vunpack.c.l.bf16 %v503
        %v2361 = vunpack.c.l.bf16 %v504
        %v2362 = vunpack.c.l.bf16 %v505
        %v2363 = vunpack.c.l.bf16 %v506
        %v2364 = vunpack.c.l.bf16 %v507
        %v2365 = vunpack.c.l.bf16 %v508
        %v2366 = vunpack.c.l.bf16 %v509
        %v2367 = vunpack.c.l.bf16 %v510
        %v2368 = vunpack.c.l.bf16 %v511
        %v2369 = vunpack.c.l.bf16 %v512
        %v2370 = vunpack.c.l.bf16 %v513
        %v2371 = vunpack.c.l.bf16 %v514
        %v2372 = vunpack.c.l.bf16 %v515
        %v2373 = vunpack.c.l.bf16 %v516
        %v2374 = vunpack.c.l.bf16 %v517
        %v2375 = vunpack.c.l.bf16 %v518
        %v2376 = vunpack.c.l.bf16 %v519
        %v2377 = vunpack.c.l.bf16 %v520
        %v2378 = vunpack.c.l.bf16 %v521
        %v2379 = vunpack.c.l.bf16 %v522
        %v2380 = vunpack.c.l.bf16 %v523
        %v2381 = vunpack.c.l.bf16 %v524
        %v2382 = vunpack.c.l.bf16 %v525
        %v2383 = vunpack.c.l.bf16 %v526
        %v2384 = vunpack.c.l.bf16 %v527
        %v2385 = vunpack.c.l.bf16 %v528
        %v2386 = vadd.f32 %v2228, %v2354
        %v2387 = vadd.f32 %v2231, %v2355
        %v2388 = vadd.f32 %v2236, %v2356
        %v2389 = vadd.f32 %v2239, %v2357
        %v2390 = vadd.f32 %v2244, %v2358
        %v2391 = vadd.f32 %v2247, %v2359
        %v2392 = vadd.f32 %v2252, %v2360
        %v2393 = vadd.f32 %v2255, %v2361
        %v2394 = vadd.f32 %v2260, %v2362
        %v2395 = vadd.f32 %v2263, %v2363
        %v2396 = vadd.f32 %v2268, %v2364
        %v2397 = vadd.f32 %v2271, %v2365
        %v2398 = vadd.f32 %v2276, %v2366
        %v2399 = vadd.f32 %v2279, %v2367
        %v2400 = vadd.f32 %v2284, %v2368
        %v2401 = vadd.f32 %v2287, %v2369
        %v2402 = vadd.f32 %v2292, %v2370
        %v2403 = vadd.f32 %v2295, %v2371
        %v2404 = vadd.f32 %v2300, %v2372
        %v2405 = vadd.f32 %v2303, %v2373
        %v2406 = vadd.f32 %v2308, %v2374
        %v2407 = vadd.f32 %v2311, %v2375
        %v2408 = vadd.f32 %v2316, %v2376
        %v2409 = vadd.f32 %v2319, %v2377
        %v2410 = vadd.f32 %v2324, %v2378
        %v2411 = vadd.f32 %v2327, %v2379
        %v2412 = vadd.f32 %v2332, %v2380
        %v2413 = vadd.f32 %v2335, %v2381
        %v2414 = vadd.f32 %v2340, %v2382
        %v2415 = vadd.f32 %v2343, %v2383
        %v2416 = vadd.f32 %v2348, %v2384
        %v2417 = vadd.f32 %v2351, %v2385
        %v2418 = vmax.f32 %v2386, 0.0
        %v2419 = vmax.f32 %v2387, 0.0
        %v2420 = vmax.f32 %v2388, 0.0
        %v2421 = vmax.f32 %v2389, 0.0
        %v2422 = vmax.f32 %v2390, 0.0
        %v2423 = vmax.f32 %v2391, 0.0
        %v2424 = vmax.f32 %v2392, 0.0
        %v2425 = vmax.f32 %v2393, 0.0
        %v2426 = vmax.f32 %v2394, 0.0
        %v2427 = vmax.f32 %v2395, 0.0
        %v2428 = vmax.f32 %v2396, 0.0
        %v2429 = vmax.f32 %v2397, 0.0
        %v2430 = vmax.f32 %v2398, 0.0
        %v2431 = vmax.f32 %v2399, 0.0
        %v2432 = vmax.f32 %v2400, 0.0
        %v2433 = vmax.f32 %v2401, 0.0
        %v2434 = vmax.f32 %v2402, 0.0
        %v2435 = vmax.f32 %v2403, 0.0
        %v2436 = vmax.f32 %v2404, 0.0
        %v2437 = vmax.f32 %v2405, 0.0
        %v2438 = vmax.f32 %v2406, 0.0
        %v2439 = vmax.f32 %v2407, 0.0
        %v2440 = vmax.f32 %v2408, 0.0
        %v2441 = vmax.f32 %v2409, 0.0
        %v2442 = vmax.f32 %v2410, 0.0
        %v2443 = vmax.f32 %v2411, 0.0
        %v2444 = vmax.f32 %v2412, 0.0
        %v2445 = vmax.f32 %v2413, 0.0
        %v2446 = vmax.f32 %v2414, 0.0
        %v2447 = vmax.f32 %v2415, 0.0
        %v2448 = vmax.f32 %v2416, 0.0
        %v2449 = vmax.f32 %v2417, 0.0
        %v2450 = vpack.c.bf16 %v2419, %v2418
        %v2451 = vpack.c.bf16 %v2421, %v2420
        %v2452 = vpack.c.bf16 %v2423, %v2422
        %v2453 = vpack.c.bf16 %v2425, %v2424
        %v2454 = vpack.c.bf16 %v2427, %v2426
        %v2455 = vpack.c.bf16 %v2429, %v2428
        %v2456 = vpack.c.bf16 %v2431, %v2430
        %v2457 = vpack.c.bf16 %v2433, %v2432
        %v2458 = vpack.c.bf16 %v2435, %v2434
        %v2459 = vpack.c.bf16 %v2437, %v2436
        %v2460 = vpack.c.bf16 %v2439, %v2438
        %v2461 = vpack.c.bf16 %v2441, %v2440
        %v2462 = vpack.c.bf16 %v2443, %v2442
        %v2463 = vpack.c.bf16 %v2445, %v2444
        %v2464 = vpack.c.bf16 %v2447, %v2446
        %v2465 = vpack.c.bf16 %v2449, %v2448
        %v2482 = vunpack.c.l.b16 %v2450
        %v2483 = vunpack.c.h.b16 %v2450
        %v2484 = vunpack.c.l.b16 %v2451
        %v2485 = vunpack.c.h.b16 %v2451
        %v2486 = vunpack.c.l.b16 %v2452
        %v2487 = vunpack.c.h.b16 %v2452
        %v2488 = vunpack.c.l.b16 %v2453
        %v2489 = vunpack.c.h.b16 %v2453
        %v2490 = vunpack.c.l.b16 %v2454
        %v2491 = vunpack.c.h.b16 %v2454
        %v2492 = vunpack.c.l.b16 %v2455
        %v2493 = vunpack.c.h.b16 %v2455
        %v2494 = vunpack.c.l.b16 %v2456
        %v2495 = vunpack.c.h.b16 %v2456
        %v2496 = vunpack.c.l.b16 %v2457
        %v2497 = vunpack.c.h.b16 %v2457
        %v2498 = vunpack.c.l.b16 %v2458
        %v2499 = vunpack.c.h.b16 %v2458
        %v2500 = vunpack.c.l.b16 %v2459
        %v2501 = vunpack.c.h.b16 %v2459
        %v2502 = vunpack.c.l.b16 %v2460
        %v2503 = vunpack.c.h.b16 %v2460
        %v2504 = vunpack.c.l.b16 %v2461
        %v2505 = vunpack.c.h.b16 %v2461
        %v2506 = vunpack.c.l.b16 %v2462
        %v2507 = vunpack.c.h.b16 %v2462
        %v2508 = vunpack.c.l.b16 %v2463
        %v2509 = vunpack.c.h.b16 %v2463
        %v2510 = vunpack.c.l.b16 %v2464
        %v2511 = vunpack.c.h.b16 %v2464
        %v2512 = vunpack.c.l.b16 %v2465
        %v2513 = vunpack.c.h.b16 %v2465
        %v2514 = vpack.c.b16 %v2482, %v2482
        %v2515 = vpack.c.b16 %v2483, %v2483
        %v2516 = vpack.c.b16 %v2484, %v2484
        %v2517 = vpack.c.b16 %v2485, %v2485
        %v2518 = vpack.c.b16 %v2486, %v2486
        %v2519 = vpack.c.b16 %v2487, %v2487
        %v2520 = vpack.c.b16 %v2488, %v2488
        %v2521 = vpack.c.b16 %v2489, %v2489
        %v2522 = vpack.c.b16 %v2490, %v2490
        %v2523 = vpack.c.b16 %v2491, %v2491
        %v2524 = vpack.c.b16 %v2492, %v2492
        %v2525 = vpack.c.b16 %v2493, %v2493
        %v2526 = vpack.c.b16 %v2494, %v2494
        %v2527 = vpack.c.b16 %v2495, %v2495
        %v2528 = vpack.c.b16 %v2496, %v2496
        %v2529 = vpack.c.b16 %v2497, %v2497
        %v2530 = vpack.c.b16 %v2498, %v2498
        %v2531 = vpack.c.b16 %v2499, %v2499
        %v2532 = vpack.c.b16 %v2500, %v2500
        %v2533 = vpack.c.b16 %v2501, %v2501
        %v2534 = vpack.c.b16 %v2502, %v2502
        %v2535 = vpack.c.b16 %v2503, %v2503
        %v2536 = vpack.c.b16 %v2504, %v2504
        %v2537 = vpack.c.b16 %v2505, %v2505
        %v2538 = vpack.c.b16 %v2506, %v2506
        %v2539 = vpack.c.b16 %v2507, %v2507
        %v2540 = vpack.c.b16 %v2508, %v2508
        %v2541 = vpack.c.b16 %v2509, %v2509
        %v2542 = vpack.c.b16 %v2510, %v2510
        %v2543 = vpack.c.b16 %v2511, %v2511
        %v2544 = vpack.c.b16 %v2512, %v2512
        %v2545 = vpack.c.b16 %v2513, %v2513
        %2578 = vst [vmem:[%s470] sm:$0xf] %v2514
        %2579 = vst [vmem:[%s470 + $0x4] sm:$0xf] %v2515
        %2580 = vst [vmem:[%s470 + $0x8] sm:$0xf] %v2516
        %2581 = vst [vmem:[%s470 + $0xc] sm:$0xf] %v2517
        %2582 = vst [vmem:[%s470 + $0x10] sm:$0xf] %v2518
        %2583 = vst [vmem:[%s470 + $0x14] sm:$0xf] %v2519
        %2584 = vst [vmem:[%s470 + $0x18] sm:$0xf] %v2520
        %2585 = vst [vmem:[%s470 + $0x1c] sm:$0xf] %v2521
        %2586 = vst [vmem:[%s470 + $0x20] sm:$0xf] %v2522
        %2587 = vst [vmem:[%s470 + $0x24] sm:$0xf] %v2523
        %2588 = vst [vmem:[%s470 + $0x28] sm:$0xf] %v2524
        %2589 = vst [vmem:[%s470 + $0x2c] sm:$0xf] %v2525
        %2590 = vst [vmem:[%s470 + $0x30] sm:$0xf] %v2526
        %2591 = vst [vmem:[%s470 + $0x34] sm:$0xf] %v2527
        %2592 = vst [vmem:[%s470 + $0x38] sm:$0xf] %v2528
        %2593 = vst [vmem:[%s470 + $0x3c] sm:$0xf] %v2529
        %2594 = vst [vmem:[%s470 + $0x40] sm:$0xf] %v2530
        %2595 = vst [vmem:[%s470 + $0x44] sm:$0xf] %v2531
        %2596 = vst [vmem:[%s470 + $0x48] sm:$0xf] %v2532
        %2597 = vst [vmem:[%s470 + $0x4c] sm:$0xf] %v2533
        %2598 = vst [vmem:[%s470 + $0x50] sm:$0xf] %v2534
        %2599 = vst [vmem:[%s470 + $0x54] sm:$0xf] %v2535
        %2600 = vst [vmem:[%s470 + $0x58] sm:$0xf] %v2536
        %2601 = vst [vmem:[%s470 + $0x5c] sm:$0xf] %v2537
        %2602 = vst [vmem:[%s470 + $0x60] sm:$0xf] %v2538
        %2603 = vst [vmem:[%s470 + $0x64] sm:$0xf] %v2539
        %2604 = vst [vmem:[%s470 + $0x68] sm:$0xf] %v2540
        %2605 = vst [vmem:[%s470 + $0x6c] sm:$0xf] %v2541
        %2606 = vst [vmem:[%s470 + $0x70] sm:$0xf] %v2542
        %2607 = vst [vmem:[%s470 + $0x74] sm:$0xf] %v2543
        %2608 = vst [vmem:[%s470 + $0x78] sm:$0xf] %v2544
        %2609 = vst [vmem:[%s470 + $0x7c] sm:$0xf] %v2545
        %s2610 = sand.u32 %s277, 1
        %s2611 = scalar_lea.sflag [#allocation4], %s2610
        %s2612 = sand.u32 %s277, 1
        %s2613 = smul.addr %s2612, 128
        %s2614 = scalar_lea.vmem [#allocation7], %s2613
        // Predicated region
        $region65: #{tpu_custom_call.1} parent=55 // pred_check
          %p2615 = pneg %p287
        $region66: #{tpu_custom_call.1} parent=55 // pred_check_branch
          %2617 = sbr.rel (%p2615) target = $region68
        $region67: #{tpu_custom_call.1} parent=55 // pred_region
          %s2618 = smul.u32 16, %s34
          %s2620 = ssub.s32 2048, 2048
          %2621 = vsyncadd %s2611, %s2620
          %s2622 = smul.addr %s2618, 2
          %s2623 = smul.addr %s33, 32
          %s2624 = sadd.s32 %s2622, %s2623
          %s2625 = smul.addr %s2624, 64
          %s2626 = scalar_lea.hbm %s9, %s2625
          %s2627 = sshll.u32 %s2614, 4
          %s2628 = int_to_ptr.vmem [resolvable:$true] %s2627
          %2633 = dma.vmem_to_hbm [thread:$0]  %s2628, 2048, %s2626, %s2611, 64, 64, 4
        $region68: #{tpu_custom_call.1} parent=55 // pred_fallthru
          _
      $region56: #{tpu_custom_call.1} parent=5 // pred_fallthru
        _
      %p2634 = scmp.le.s32.totalorder 2, %s24
      // Predicated region
      $region69: #{tpu_custom_call.1} parent=5 // pred_check
        %p2635 = pneg %p2634
      $region70: #{tpu_custom_call.1} parent=5 // pred_check_branch
        %2637 = sbr.rel (%p2635) target = $region72
      $region71: #{tpu_custom_call.1} parent=5 // pred_region
        %s2638 = ssub.s32 %s24, 2
        // Predicated region
        $region73: #{tpu_custom_call.1} parent=71 // pred_check
          %p2639 = pneg %p293
        $region74: #{tpu_custom_call.1} parent=71 // pred_check_branch
          %2641 = sbr.rel (%p2639) target = $region76
        $region75: #{tpu_custom_call.1} parent=71 // pred_region
          %s2642 = sand.u32 %s278, 1
          %s2643 = scalar_lea.sflag [#allocation4], %s2642
          %s2644 = sand.u32 %s278, 1
          %s2645 = smul.addr %s2644, 128
          %s2646 = scalar_lea.vmem [#allocation7], %s2645
          %2647 = dma.done %s2643, 2048
        $region76: #{tpu_custom_call.1} parent=71 // pred_fallthru
          _
      $region72: #{tpu_custom_call.1} parent=5 // pred_fallthru
        _
    $region6: #{tpu_custom_call.1} parent=1 // loop_footer
      %s28 = sadd.s32 1, %s24
    $region7: #{tpu_custom_call.1} parent=1 // loop_footer_branch
      %23 = sbr.rel target = $region3
    $region8: #{tpu_custom_call.1} parent=1 // loop_exit
      _
    %2648 = vsyncpa [#allocation3], 1
    %s2649 = scalar_lea.sflag [#allocation3], 1
    %2650 = vsyncpa %s2649, 1
    %2651 = vsyncpa [#allocation6], 1
    %s2652 = scalar_lea.sflag [#allocation6], 1
    %2653 = vsyncpa %s2652, 1
    %2654 = vsyncpa [#allocation4], 1
    %s2655 = scalar_lea.sflag [#allocation4], 1
    %2656 = vsyncpa %s2655, 1

</llo_original>
